<compile_context>
chip_gen: v7x
topology: tpu7x:2x2x1
jax: 0.10.0
libtpu: 0.0.40
codegen_flags: <defaults>
</compile_context>

<pallas_src>
import functools

import jax
import jax.numpy as jnp
import numpy as np
from jax import lax
from jax.experimental import pallas as pl
from jax.experimental.pallas import tpu as pltpu

EPS = 1e-5  # PyTorch GroupNorm default eps


# --------------------------------- kernel ---------------------------------- #
def _ghost_ffn_kernel(x_ref, pw_w_ref, pw_g_ref, pw_b_ref,
                      dw_mw_ref, dw_g_ref, dw_b_ref,
                      fc_w_ref, fc_b_ref, o_ref, *, H, W, C, paths, block_b):
    HW = H * W
    rows = block_b * HW
    inv_n = 1.0 / float(HW * C)

    def group_norm(t, gamma, beta):
        # GroupNorm(1, C): per-sample stats over that sample's full (H*W, C)
        # slab; two-pass mean/var (no E[x^2]-E[x]^2 cancellation), rsqrt on EUP.
        outs = []
        for i in range(block_b):
            ti = t[i * HW:(i + 1) * HW, :]            # 8-aligned static slice
            mean = jnp.sum(ti) * inv_n
            d = ti - mean
            var = jnp.sum(d * d) * inv_n
            scale = gamma * lax.rsqrt(var + EPS)      # (1, C)
            outs.append(d * scale + beta)
        return outs[0] if block_b == 1 else jnp.concatenate(outs, axis=0)

    def dw_conv3x3(t, conv_idx):
        # Depthwise 3x3, stride 1, zero padding 1 (groups=C, no bias).
        # Tap k = (dy+1)*3 + (dx+1) reads token (h+dy, w+dx) = row r + dy*W+dx,
        # realized as a sublane roll (XLU).  Border / cross-sample / wrapped
        # reads are already zeroed inside the pre-masked tap weights dw_mw.
        acc = t * dw_mw_ref[conv_idx * 9 + 4]         # center tap, no shift
        for dy in (-1, 0, 1):
            for dx in (-1, 0, 1):
                if dy == 0 and dx == 0:
                    continue
                shift = (-(dy * W + dx)) % rows
                acc = acc + (pltpu.roll(t, shift=shift, axis=0)
                             * dw_mw_ref[conv_idx * 9 + (dy + 1) * 3 + (dx + 1)])
        return acc

    # pw_conv: 1x1 conv (bias-free) as a dense GEMM; bf16 operands, f32 MXU acc.
    x = x_ref[...]                                     # (rows, C) token slab
    h = jnp.dot(x.astype(jnp.bfloat16), pw_w_ref[...],
                preferred_element_type=jnp.float32)
    h = group_norm(h, pw_g_ref[...], pw_b_ref[...])

    # Ghost paths: path p applies (p+1) x (dw3x3 conv + GroupNorm).  Hardswish
    # is elementwise so per-path == post-concat; the fc 1x1 conv is accumulated
    # per path (no concat copy) with the bias fused into the last add.
    out = None
    conv_idx = 0
    for p in range(paths):
        t = h
        for _ in range(p + 1):
            t = dw_conv3x3(t, conv_idx)
            t = group_norm(t, dw_g_ref[conv_idx], dw_b_ref[conv_idx])
            conv_idx += 1
        hs = (t * jnp.clip(t + 3.0, 0.0, 6.0) * (1.0 / 6.0)).astype(jnp.bfloat16)
        d = jnp.dot(hs, fc_w_ref[p], preferred_element_type=jnp.float32)
        out = d if out is None else out + d
    o_ref[...] = out + fc_b_ref[...]                   # Dropout2d(p=0) == id


# ------------------------- one-time weight prep ----------------------------- #
def prepare_ghost_ffn_params(params, H, W, paths, block_b):
    """Out-of-hot-path prep: bf16 casts for the MXU GEMM operands and the 3x3
    zero-padding border masks baked into the depthwise tap weights."""
    C = params["pw_w"].shape[0]
    HW = H * W
    n_dw = paths * (paths + 1) // 2
    f32, bf16 = jnp.float32, jnp.bfloat16

    # Validity mask per tap over one sample's H*W token rows, tiled over the
    # block_b samples that share one (block_b*H*W, C) slab.
    r = np.arange(HW)
    hh, ww = r // W, r % W
    masks = np.zeros((9, HW), np.float32)
    for dy in (-1, 0, 1):
        for dx in (-1, 0, 1):
            ok = np.ones(HW, bool)
            if dy == -1:
                ok &= hh >= 1
            elif dy == 1:
                ok &= hh <= H - 2
            if dx == -1:
                ok &= ww >= 1
            elif dx == 1:
                ok &= ww <= W - 2
            masks[(dy + 1) * 3 + (dx + 1)] = ok
    masks = np.tile(masks, (1, block_b))                       # (9, block_b*HW)

    dw_w = params["dw_w"].astype(f32).reshape(n_dw, 9, 1, C)
    dw_mw = jnp.asarray(masks)[None, :, :, None] * dw_w        # (n_dw,9,rows,C)
    dw_mw = dw_mw.reshape(n_dw * 9, block_b * HW, C)
    # TODO(synk): at large H*W, recompute mask*w per conv in-kernel instead of
    # materializing (n_dw*9, rows, C) masked weights.

    return {
        "block_b": block_b,
        "pw_w": params["pw_w"].astype(bf16),                   # (C, C)
        "pw_g": params["pw_gw"].astype(f32).reshape(1, C),
        "pw_b": params["pw_gb"].astype(f32).reshape(1, C),
        "dw_mw": dw_mw,                                        # f32
        "dw_g": params["dw_gw"].astype(f32).reshape(n_dw, 1, C),
        "dw_b": params["dw_gb"].astype(f32).reshape(n_dw, 1, C),
        "fc_w": params["fc_w"].astype(bf16).reshape(paths, C, C),
        "fc_b": params["fc_b"].astype(f32).reshape(1, C),
    }


def default_block_b(B):
    """Largest per-step sample count that still leaves >= 2 grid steps."""
    if B <= 1:
        return 1
    best = 1
    for d in range(1, B + 1):
        if B % d == 0 and B // d >= 2:
            best = d
    return best


# ------------------------------- hot wrapper -------------------------------- #
def ghost_ffn_pallas(x, prep, H, W, paths):
    """x: (B, L, C) float32; prep: output of prepare_ghost_ffn_params."""
    B, L, C = x.shape
    HW = H * W
    assert L == HW, "token count must equal H*W"
    bb = int(prep["block_b"])
    assert B % bb == 0, "batch must be divisible by block_b"
    n_dw = paths * (paths + 1) // 2
    rows = bb * HW

    x_rows = x.reshape(B * HW, C)                # free: same row-major buffer

    kernel = functools.partial(_ghost_ffn_kernel, H=H, W=W, C=C,
                               paths=paths, block_b=bb)

    flops = (2 * B * HW * C * C                  # pw GEMM
             + 2 * B * HW * (paths * C) * C      # fc GEMM (per-path accumulated)
             + 17 * n_dw * B * HW * C            # depthwise 3x3 taps
             + 8 * (1 + n_dw) * B * HW * C)      # GroupNorm + hardswish
    bytes_accessed = int(
        x_rows.size * x_rows.dtype.itemsize + B * HW * C * 4
        + sum(int(np.prod(v.shape)) * v.dtype.itemsize
              for k, v in prep.items() if k != "block_b"))

    grid_spec = pltpu.PrefetchScalarGridSpec(
        num_scalar_prefetch=0,
        grid=(B // bb,),
        in_specs=[
            pl.BlockSpec((rows, C), lambda b: (b, 0)),               # x tokens
            pl.BlockSpec((C, C), lambda b: (0, 0)),                  # pw weight
            pl.BlockSpec((1, C), lambda b: (0, 0)),                  # pw GN gamma
            pl.BlockSpec((1, C), lambda b: (0, 0)),                  # pw GN beta
            pl.BlockSpec((n_dw * 9, rows, C), lambda b: (0, 0, 0)),  # masked dw taps
            pl.BlockSpec((n_dw, 1, C), lambda b: (0, 0, 0)),         # dw GN gammas
            pl.BlockSpec((n_dw, 1, C), lambda b: (0, 0, 0)),         # dw GN betas
            pl.BlockSpec((paths, C, C), lambda b: (0, 0, 0)),        # fc weight
            pl.BlockSpec((1, C), lambda b: (0, 0)),                  # fc bias
        ],
        out_specs=pl.BlockSpec((rows, C), lambda b: (b, 0)),
    )
    # NOTE: constant-index weight specs could use pipeline_mode=pl.Buffered(1)
    # to halve their VMEM residency at real CSWin stage sizes.
    out = pl.pallas_call(
        kernel,
        out_shape=jax.ShapeDtypeStruct((B * HW, C), jnp.float32),
        grid_spec=grid_spec,
        compiler_params=pltpu.CompilerParams(
            dimension_semantics=("parallel",)),    # megacore: samples split
        cost_estimate=pl.CostEstimate(
            flops=flops, transcendentals=B * (1 + n_dw),
            bytes_accessed=bytes_accessed),
    )(x_rows, prep["pw_w"], prep["pw_g"], prep["pw_b"],
      prep["dw_mw"], prep["dw_g"], prep["dw_b"], prep["fc_w"], prep["fc_b"])

    return out.reshape(B, L, C)


# ------------------------- pure-JAX reference (XLA) ------------------------- #
def _gn_ref(t, gamma, beta):
    mean = jnp.mean(t, axis=(1, 2, 3), keepdims=True)
    var = jnp.mean(jnp.square(t - mean), axis=(1, 2, 3), keepdims=True)
    return ((t - mean) / jnp.sqrt(var + EPS)) * gamma.reshape(1, 1, 1, -1) \
        + beta.reshape(1, 1, 1, -1)


def ghost_ffn_ref(x, params, H, W, paths):
    B, L, C = x.shape
    xi = x.reshape(B, H, W, C)  # NHWC view (equivalent to the torch NCHW path)
    h = jnp.einsum('bhwc,cd->bhwd', xi, params['pw_w'],
                   precision=lax.Precision.HIGHEST)
    h = _gn_ref(h, params['pw_gw'], params['pw_gb'])
    idx = 0
    outs = []
    for p in range(paths):
        t = h
        for _ in range(p + 1):
            w = params['dw_w'][idx].reshape(3, 3, 1, C)
            t = lax.conv_general_dilated(
                t, w, (1, 1), 'SAME',
                dimension_numbers=('NHWC', 'HWIO', 'NHWC'),
                feature_group_count=C,
                precision=lax.Precision.HIGHEST)
            t = _gn_ref(t, params['dw_gw'][idx], params['dw_gb'][idx])
            idx += 1
        outs.append(t)
    y = jnp.concatenate(outs, axis=-1)
    y = y * jnp.clip(y + 3.0, 0.0, 6.0) / 6.0
    out = jnp.einsum('bhwc,cd->bhwd', y, params['fc_w'],
                     precision=lax.Precision.HIGHEST)
    out = out + params['fc_b'].reshape(1, 1, 1, -1)
    return out.reshape(B, L, C)


# ---------------------------------- main ------------------------------------ #
if __name__ == "__main__":
    B, C, H, W = 4, 32, 8, 8        # in_features = C
    paths = 2                        # == mlp_ratio for GhostFFN
    L = H * W
    n_dw = paths * (paths + 1) // 2  # total depthwise ConvActNorm blocks

    key = jax.random.PRNGKey(0)
    ks = jax.random.split(key, 10)
    params = {
        "pw_w": 0.2 * jax.random.normal(ks[0], (C, C), jnp.float32),
        "pw_gw": 1.0 + 0.1 * jax.random.normal(ks[1], (1, C), jnp.float32),
        "pw_gb": 0.05 * jax.random.normal(ks[2], (1, C), jnp.float32),
        "dw_w": 0.3 * jax.random.normal(ks[3], (n_dw, 9, C), jnp.float32),
        "dw_gw": 1.0 + 0.1 * jax.random.normal(ks[4], (n_dw, 1, C), jnp.float32),
        "dw_gb": 0.05 * jax.random.normal(ks[5], (n_dw, 1, C), jnp.float32),
        "fc_w": 0.1 * jax.random.normal(ks[6], (paths * C, C), jnp.float32),
        "fc_b": 0.05 * jax.random.normal(ks[7], (1, C), jnp.float32),
    }
    x = jax.random.normal(ks[8], (B, L, C), jnp.float32)

    # One-time prep (outside the hot path), then the fused kernel.
    prep = prepare_ghost_ffn_params(params, H, W, paths,
                                    block_b=default_block_b(B))
    out = ghost_ffn_pallas(x, prep, H, W, paths)
    out = jax.block_until_ready(out)

    ref = ghost_ffn_ref(x, params, H, W, paths)
    # bf16 MXU operands (applied per the perf review) relax the f32 tolerance.
    np.testing.assert_allclose(np.asarray(out), np.asarray(ref),
                               rtol=2e-2, atol=2e-2)
    print("KERNEL_OK")
</pallas_src>

<mosaic_0001>
module attributes {stable_mosaic.version = 11 : i64} {
  func.func @_ghost_ffn_kernel(%arg0: i32, %arg1: memref<128x32xf32, #tpu.memory_space<vmem>>, %arg2: memref<32x32xbf16, #tpu.memory_space<vmem>>, %arg3: memref<1x32xf32, #tpu.memory_space<vmem>>, %arg4: memref<1x32xf32, #tpu.memory_space<vmem>>, %arg5: memref<27x128x32xf32, #tpu.memory_space<vmem>>, %arg6: memref<3x1x32xf32, #tpu.memory_space<vmem>>, %arg7: memref<3x1x32xf32, #tpu.memory_space<vmem>>, %arg8: memref<2x32x32xbf16, #tpu.memory_space<vmem>>, %arg9: memref<1x32xf32, #tpu.memory_space<vmem>>, %arg10: memref<128x32xf32, #tpu.memory_space<vmem>>) attributes {dimension_semantics = [#tpu.dimension_semantics<parallel>], iteration_bounds = array<i64: 2>, scalar_prefetch = 0 : i64, scratch_operands = 0 : i64, tpu.core_type = #tpu.core_type<tc>, window_params = [{transform_indices = @transform_0, window_bounds = array<i64: 128, 32>}, {pipeline_mode = #tpu.pipeline_mode<synchronous>, transform_indices = @transform_1, window_bounds = array<i64: 32, 32>}, {pipeline_mode = #tpu.pipeline_mode<synchronous>, transform_indices = @transform_2, window_bounds = array<i64: 1, 32>}, {pipeline_mode = #tpu.pipeline_mode<synchronous>, transform_indices = @transform_3, window_bounds = array<i64: 1, 32>}, {pipeline_mode = #tpu.pipeline_mode<synchronous>, transform_indices = @transform_4, window_bounds = array<i64: 27, 128, 32>}, {pipeline_mode = #tpu.pipeline_mode<synchronous>, transform_indices = @transform_5, window_bounds = array<i64: 3, 1, 32>}, {pipeline_mode = #tpu.pipeline_mode<synchronous>, transform_indices = @transform_6, window_bounds = array<i64: 3, 1, 32>}, {pipeline_mode = #tpu.pipeline_mode<synchronous>, transform_indices = @transform_7, window_bounds = array<i64: 2, 32, 32>}, {pipeline_mode = #tpu.pipeline_mode<synchronous>, transform_indices = @transform_8, window_bounds = array<i64: 1, 32>}, {transform_indices = @transform_9, window_bounds = array<i64: 128, 32>}]} {
    %c0 = arith.constant 0 : index
    %c0_0 = arith.constant 0 : index
    %0 = vector.load %arg1[%c0, %c0_0] : memref<128x32xf32, #tpu.memory_space<vmem>>, vector<128x32xf32>
    %1 = arith.truncf %0 : vector<128x32xf32> to vector<128x32xbf16>
    %c0_1 = arith.constant 0 : index
    %c0_2 = arith.constant 0 : index
    %2 = vector.load %arg2[%c0_1, %c0_2] : memref<32x32xbf16, #tpu.memory_space<vmem>>, vector<32x32xbf16>
    %cst = arith.constant dense<0.000000e+00> : vector<128x32xf32>
    %3 = tpu.matmul %1, %2, %cst {dimension_numbers = #tpu.dot_dimension_numbers<[1], [0], [0], [1], [0, 0, 1, 1], [], []>} : vector<128x32xbf16>, vector<32x32xbf16>, vector<128x32xf32> -> vector<128x32xf32>
    %c0_3 = arith.constant 0 : index
    %c0_4 = arith.constant 0 : index
    %4 = vector.load %arg3[%c0_3, %c0_4] : memref<1x32xf32, #tpu.memory_space<vmem>>, vector<1x32xf32>
    %c0_5 = arith.constant 0 : index
    %c0_6 = arith.constant 0 : index
    %5 = vector.load %arg4[%c0_5, %c0_6] : memref<1x32xf32, #tpu.memory_space<vmem>>, vector<1x32xf32>
    %6 = vector.extract_strided_slice %3 {offsets = [0, 0], sizes = [64, 32], strides = [1, 1]} : vector<128x32xf32> to vector<64x32xf32>
    %7 = vector.shape_cast %6 : vector<64x32xf32> to vector<1x64x32xf32>
    %cst_7 = arith.constant dense<0.000000e+00> : vector<1xf32>
    %8 = vector.multi_reduction <add>, %7, %cst_7 [1, 2] : vector<1x64x32xf32> to vector<1xf32>
    %9 = vector.shape_cast %8 : vector<1xf32> to vector<1x1x1xf32>
    %10 = vector.extract %9[0, 0, 0] : f32 from vector<1x1x1xf32>
    %cst_8 = arith.constant 4.8828125E-4 : f32
    %11 = arith.mulf %10, %cst_8 : f32
    %12 = vector.broadcast %11 : f32 to vector<64x32xf32>
    %13 = arith.subf %6, %12 : vector<64x32xf32>
    %14 = arith.mulf %13, %13 : vector<64x32xf32>
    %15 = vector.shape_cast %14 : vector<64x32xf32> to vector<1x64x32xf32>
    %cst_9 = arith.constant dense<0.000000e+00> : vector<1xf32>
    %16 = vector.multi_reduction <add>, %15, %cst_9 [1, 2] : vector<1x64x32xf32> to vector<1xf32>
    %17 = vector.shape_cast %16 : vector<1xf32> to vector<1x1x1xf32>
    %18 = vector.extract %17[0, 0, 0] : f32 from vector<1x1x1xf32>
    %cst_10 = arith.constant 4.8828125E-4 : f32
    %19 = arith.mulf %18, %cst_10 : f32
    %cst_11 = arith.constant 9.99999974E-6 : f32
    %20 = arith.addf %19, %cst_11 : f32
    %21 = math.rsqrt %20 : f32
    %22 = vector.broadcast %21 : f32 to vector<1x32xf32>
    %23 = arith.mulf %4, %22 : vector<1x32xf32>
    %24 = vector.broadcast %23 : vector<1x32xf32> to vector<64x32xf32>
    %25 = arith.mulf %13, %24 : vector<64x32xf32>
    %26 = vector.broadcast %5 : vector<1x32xf32> to vector<64x32xf32>
    %27 = arith.addf %25, %26 : vector<64x32xf32>
    %28 = vector.extract_strided_slice %3 {offsets = [64, 0], sizes = [64, 32], strides = [1, 1]} : vector<128x32xf32> to vector<64x32xf32>
    %29 = vector.shape_cast %28 : vector<64x32xf32> to vector<1x64x32xf32>
    %cst_12 = arith.constant dense<0.000000e+00> : vector<1xf32>
    %30 = vector.multi_reduction <add>, %29, %cst_12 [1, 2] : vector<1x64x32xf32> to vector<1xf32>
    %31 = vector.shape_cast %30 : vector<1xf32> to vector<1x1x1xf32>
    %32 = vector.extract %31[0, 0, 0] : f32 from vector<1x1x1xf32>
    %cst_13 = arith.constant 4.8828125E-4 : f32
    %33 = arith.mulf %32, %cst_13 : f32
    %34 = vector.broadcast %33 : f32 to vector<64x32xf32>
    %35 = arith.subf %28, %34 : vector<64x32xf32>
    %36 = arith.mulf %35, %35 : vector<64x32xf32>
    %37 = vector.shape_cast %36 : vector<64x32xf32> to vector<1x64x32xf32>
    %cst_14 = arith.constant dense<0.000000e+00> : vector<1xf32>
    %38 = vector.multi_reduction <add>, %37, %cst_14 [1, 2] : vector<1x64x32xf32> to vector<1xf32>
    %39 = vector.shape_cast %38 : vector<1xf32> to vector<1x1x1xf32>
    %40 = vector.extract %39[0, 0, 0] : f32 from vector<1x1x1xf32>
    %cst_15 = arith.constant 4.8828125E-4 : f32
    %41 = arith.mulf %40, %cst_15 : f32
    %cst_16 = arith.constant 9.99999974E-6 : f32
    %42 = arith.addf %41, %cst_16 : f32
    %43 = math.rsqrt %42 : f32
    %44 = vector.broadcast %43 : f32 to vector<1x32xf32>
    %45 = arith.mulf %4, %44 : vector<1x32xf32>
    %46 = vector.broadcast %45 : vector<1x32xf32> to vector<64x32xf32>
    %47 = arith.mulf %35, %46 : vector<64x32xf32>
    %48 = vector.broadcast %5 : vector<1x32xf32> to vector<64x32xf32>
    %49 = arith.addf %47, %48 : vector<64x32xf32>
    %50 = tpu.concatenate %27, %49 in 0 : vector<64x32xf32>, vector<64x32xf32> -> vector<128x32xf32>
    %c4 = arith.constant 4 : index
    %c0_17 = arith.constant 0 : index
    %c0_18 = arith.constant 0 : index
    %51 = vector.load %arg5[%c4, %c0_17, %c0_18] : memref<27x128x32xf32, #tpu.memory_space<vmem>>, vector<1x128x32xf32>
    %52 = vector.shape_cast %51 : vector<1x128x32xf32> to vector<128x32xf32>
    %53 = arith.mulf %50, %52 : vector<128x32xf32>
    %c9_i32 = arith.constant 9 : i32
    %54 = tpu.dynamic_rotate %50 by %c9_i32 dim 0 : vector<128x32xf32>, i32 -> vector<128x32xf32>
    %c0_19 = arith.constant 0 : index
    %c0_20 = arith.constant 0 : index
    %c0_21 = arith.constant 0 : index
    %55 = vector.load %arg5[%c0_19, %c0_20, %c0_21] : memref<27x128x32xf32, #tpu.memory_space<vmem>>, vector<1x128x32xf32>
    %56 = vector.shape_cast %55 : vector<1x128x32xf32> to vector<128x32xf32>
    %57 = arith.mulf %54, %56 : vector<128x32xf32>
    %58 = arith.addf %53, %57 : vector<128x32xf32>
    %c8_i32 = arith.constant 8 : i32
    %59 = tpu.dynamic_rotate %50 by %c8_i32 dim 0 : vector<128x32xf32>, i32 -> vector<128x32xf32>
    %c1 = arith.constant 1 : index
    %c0_22 = arith.constant 0 : index
    %c0_23 = arith.constant 0 : index
    %60 = vector.load %arg5[%c1, %c0_22, %c0_23] : memref<27x128x32xf32, #tpu.memory_space<vmem>>, vector<1x128x32xf32>
    %61 = vector.shape_cast %60 : vector<1x128x32xf32> to vector<128x32xf32>
    %62 = arith.mulf %59, %61 : vector<128x32xf32>
    %63 = arith.addf %58, %62 : vector<128x32xf32>
    %c7_i32 = arith.constant 7 : i32
    %64 = tpu.dynamic_rotate %50 by %c7_i32 dim 0 : vector<128x32xf32>, i32 -> vector<128x32xf32>
    %c2 = arith.constant 2 : index
    %c0_24 = arith.constant 0 : index
    %c0_25 = arith.constant 0 : index
    %65 = vector.load %arg5[%c2, %c0_24, %c0_25] : memref<27x128x32xf32, #tpu.memory_space<vmem>>, vector<1x128x32xf32>
    %66 = vector.shape_cast %65 : vector<1x128x32xf32> to vector<128x32xf32>
    %67 = arith.mulf %64, %66 : vector<128x32xf32>
    %68 = arith.addf %63, %67 : vector<128x32xf32>
    %c1_i32 = arith.constant 1 : i32
    %69 = tpu.dynamic_rotate %50 by %c1_i32 dim 0 : vector<128x32xf32>, i32 -> vector<128x32xf32>
    %c3 = arith.constant 3 : index
    %c0_26 = arith.constant 0 : index
    %c0_27 = arith.constant 0 : index
    %70 = vector.load %arg5[%c3, %c0_26, %c0_27] : memref<27x128x32xf32, #tpu.memory_space<vmem>>, vector<1x128x32xf32>
    %71 = vector.shape_cast %70 : vector<1x128x32xf32> to vector<128x32xf32>
    %72 = arith.mulf %69, %71 : vector<128x32xf32>
    %73 = arith.addf %68, %72 : vector<128x32xf32>
    %c127_i32 = arith.constant 127 : i32
    %74 = tpu.dynamic_rotate %50 by %c127_i32 dim 0 : vector<128x32xf32>, i32 -> vector<128x32xf32>
    %c5 = arith.constant 5 : index
    %c0_28 = arith.constant 0 : index
    %c0_29 = arith.constant 0 : index
    %75 = vector.load %arg5[%c5, %c0_28, %c0_29] : memref<27x128x32xf32, #tpu.memory_space<vmem>>, vector<1x128x32xf32>
    %76 = vector.shape_cast %75 : vector<1x128x32xf32> to vector<128x32xf32>
    %77 = arith.mulf %74, %76 : vector<128x32xf32>
    %78 = arith.addf %73, %77 : vector<128x32xf32>
    %c121_i32 = arith.constant 121 : i32
    %79 = tpu.dynamic_rotate %50 by %c121_i32 dim 0 : vector<128x32xf32>, i32 -> vector<128x32xf32>
    %c6 = arith.constant 6 : index
    %c0_30 = arith.constant 0 : index
    %c0_31 = arith.constant 0 : index
    %80 = vector.load %arg5[%c6, %c0_30, %c0_31] : memref<27x128x32xf32, #tpu.memory_space<vmem>>, vector<1x128x32xf32>
    %81 = vector.shape_cast %80 : vector<1x128x32xf32> to vector<128x32xf32>
    %82 = arith.mulf %79, %81 : vector<128x32xf32>
    %83 = arith.addf %78, %82 : vector<128x32xf32>
    %c120_i32 = arith.constant 120 : i32
    %84 = tpu.dynamic_rotate %50 by %c120_i32 dim 0 : vector<128x32xf32>, i32 -> vector<128x32xf32>
    %c7 = arith.constant 7 : index
    %c0_32 = arith.constant 0 : index
    %c0_33 = arith.constant 0 : index
    %85 = vector.load %arg5[%c7, %c0_32, %c0_33] : memref<27x128x32xf32, #tpu.memory_space<vmem>>, vector<1x128x32xf32>
    %86 = vector.shape_cast %85 : vector<1x128x32xf32> to vector<128x32xf32>
    %87 = arith.mulf %84, %86 : vector<128x32xf32>
    %88 = arith.addf %83, %87 : vector<128x32xf32>
    %c119_i32 = arith.constant 119 : i32
    %89 = tpu.dynamic_rotate %50 by %c119_i32 dim 0 : vector<128x32xf32>, i32 -> vector<128x32xf32>
    %c8 = arith.constant 8 : index
    %c0_34 = arith.constant 0 : index
    %c0_35 = arith.constant 0 : index
    %90 = vector.load %arg5[%c8, %c0_34, %c0_35] : memref<27x128x32xf32, #tpu.memory_space<vmem>>, vector<1x128x32xf32>
    %91 = vector.shape_cast %90 : vector<1x128x32xf32> to vector<128x32xf32>
    %92 = arith.mulf %89, %91 : vector<128x32xf32>
    %93 = arith.addf %88, %92 : vector<128x32xf32>
    %c0_36 = arith.constant 0 : index
    %c0_37 = arith.constant 0 : index
    %c0_38 = arith.constant 0 : index
    %94 = vector.load %arg6[%c0_36, %c0_37, %c0_38] : memref<3x1x32xf32, #tpu.memory_space<vmem>>, vector<1x1x32xf32>
    %95 = vector.shape_cast %94 : vector<1x1x32xf32> to vector<1x32xf32>
    %c0_39 = arith.constant 0 : index
    %c0_40 = arith.constant 0 : index
    %c0_41 = arith.constant 0 : index
    %96 = vector.load %arg7[%c0_39, %c0_40, %c0_41] : memref<3x1x32xf32, #tpu.memory_space<vmem>>, vector<1x1x32xf32>
    %97 = vector.shape_cast %96 : vector<1x1x32xf32> to vector<1x32xf32>
    %98 = vector.extract_strided_slice %93 {offsets = [0, 0], sizes = [64, 32], strides = [1, 1]} : vector<128x32xf32> to vector<64x32xf32>
    %99 = vector.shape_cast %98 : vector<64x32xf32> to vector<1x64x32xf32>
    %cst_42 = arith.constant dense<0.000000e+00> : vector<1xf32>
    %100 = vector.multi_reduction <add>, %99, %cst_42 [1, 2] : vector<1x64x32xf32> to vector<1xf32>
    %101 = vector.shape_cast %100 : vector<1xf32> to vector<1x1x1xf32>
    %102 = vector.extract %101[0, 0, 0] : f32 from vector<1x1x1xf32>
    %cst_43 = arith.constant 4.8828125E-4 : f32
    %103 = arith.mulf %102, %cst_43 : f32
    %104 = vector.broadcast %103 : f32 to vector<64x32xf32>
    %105 = arith.subf %98, %104 : vector<64x32xf32>
    %106 = arith.mulf %105, %105 : vector<64x32xf32>
    %107 = vector.shape_cast %106 : vector<64x32xf32> to vector<1x64x32xf32>
    %cst_44 = arith.constant dense<0.000000e+00> : vector<1xf32>
    %108 = vector.multi_reduction <add>, %107, %cst_44 [1, 2] : vector<1x64x32xf32> to vector<1xf32>
    %109 = vector.shape_cast %108 : vector<1xf32> to vector<1x1x1xf32>
    %110 = vector.extract %109[0, 0, 0] : f32 from vector<1x1x1xf32>
    %cst_45 = arith.constant 4.8828125E-4 : f32
    %111 = arith.mulf %110, %cst_45 : f32
    %cst_46 = arith.constant 9.99999974E-6 : f32
    %112 = arith.addf %111, %cst_46 : f32
    %113 = math.rsqrt %112 : f32
    %114 = vector.broadcast %113 : f32 to vector<1x32xf32>
    %115 = arith.mulf %95, %114 : vector<1x32xf32>
    %116 = vector.broadcast %115 : vector<1x32xf32> to vector<64x32xf32>
    %117 = arith.mulf %105, %116 : vector<64x32xf32>
    %118 = vector.broadcast %97 : vector<1x32xf32> to vector<64x32xf32>
    %119 = arith.addf %117, %118 : vector<64x32xf32>
    %120 = vector.extract_strided_slice %93 {offsets = [64, 0], sizes = [64, 32], strides = [1, 1]} : vector<128x32xf32> to vector<64x32xf32>
    %121 = vector.shape_cast %120 : vector<64x32xf32> to vector<1x64x32xf32>
    %cst_47 = arith.constant dense<0.000000e+00> : vector<1xf32>
    %122 = vector.multi_reduction <add>, %121, %cst_47 [1, 2] : vector<1x64x32xf32> to vector<1xf32>
    %123 = vector.shape_cast %122 : vector<1xf32> to vector<1x1x1xf32>
    %124 = vector.extract %123[0, 0, 0] : f32 from vector<1x1x1xf32>
    %cst_48 = arith.constant 4.8828125E-4 : f32
    %125 = arith.mulf %124, %cst_48 : f32
    %126 = vector.broadcast %125 : f32 to vector<64x32xf32>
    %127 = arith.subf %120, %126 : vector<64x32xf32>
    %128 = arith.mulf %127, %127 : vector<64x32xf32>
    %129 = vector.shape_cast %128 : vector<64x32xf32> to vector<1x64x32xf32>
    %cst_49 = arith.constant dense<0.000000e+00> : vector<1xf32>
    %130 = vector.multi_reduction <add>, %129, %cst_49 [1, 2] : vector<1x64x32xf32> to vector<1xf32>
    %131 = vector.shape_cast %130 : vector<1xf32> to vector<1x1x1xf32>
    %132 = vector.extract %131[0, 0, 0] : f32 from vector<1x1x1xf32>
    %cst_50 = arith.constant 4.8828125E-4 : f32
    %133 = arith.mulf %132, %cst_50 : f32
    %cst_51 = arith.constant 9.99999974E-6 : f32
    %134 = arith.addf %133, %cst_51 : f32
    %135 = math.rsqrt %134 : f32
    %136 = vector.broadcast %135 : f32 to vector<1x32xf32>
    %137 = arith.mulf %95, %136 : vector<1x32xf32>
    %138 = vector.broadcast %137 : vector<1x32xf32> to vector<64x32xf32>
    %139 = arith.mulf %127, %138 : vector<64x32xf32>
    %140 = vector.broadcast %97 : vector<1x32xf32> to vector<64x32xf32>
    %141 = arith.addf %139, %140 : vector<64x32xf32>
    %142 = tpu.concatenate %119, %141 in 0 : vector<64x32xf32>, vector<64x32xf32> -> vector<128x32xf32>
    %cst_52 = arith.constant 3.000000e+00 : f32
    %143 = vector.broadcast %cst_52 : f32 to vector<128x32xf32>
    %144 = arith.addf %142, %143 : vector<128x32xf32>
    %cst_53 = arith.constant 0.000000e+00 : f32
    %cst_54 = arith.constant 6.000000e+00 : f32
    %145 = vector.broadcast %cst_53 : f32 to vector<128x32xf32>
    %146 = arith.maximumf %145, %144 : vector<128x32xf32>
    %147 = vector.broadcast %cst_54 : f32 to vector<128x32xf32>
    %148 = arith.minimumf %147, %146 : vector<128x32xf32>
    %149 = arith.mulf %142, %148 : vector<128x32xf32>
    %cst_55 = arith.constant 0.166666672 : f32
    %150 = vector.broadcast %cst_55 : f32 to vector<128x32xf32>
    %151 = arith.mulf %149, %150 : vector<128x32xf32>
    %152 = arith.truncf %151 : vector<128x32xf32> to vector<128x32xbf16>
    %c0_56 = arith.constant 0 : index
    %c0_57 = arith.constant 0 : index
    %c0_58 = arith.constant 0 : index
    %153 = vector.load %arg8[%c0_56, %c0_57, %c0_58] : memref<2x32x32xbf16, #tpu.memory_space<vmem>>, vector<1x32x32xbf16>
    %154 = vector.shape_cast %153 : vector<1x32x32xbf16> to vector<32x32xbf16>
    %cst_59 = arith.constant dense<0.000000e+00> : vector<128x32xf32>
    %155 = tpu.matmul %152, %154, %cst_59 {dimension_numbers = #tpu.dot_dimension_numbers<[1], [0], [0], [1], [0, 0, 1, 1], [], []>} : vector<128x32xbf16>, vector<32x32xbf16>, vector<128x32xf32> -> vector<128x32xf32>
    %c13 = arith.constant 13 : index
    %c0_60 = arith.constant 0 : index
    %c0_61 = arith.constant 0 : index
    %156 = vector.load %arg5[%c13, %c0_60, %c0_61] : memref<27x128x32xf32, #tpu.memory_space<vmem>>, vector<1x128x32xf32>
    %157 = vector.shape_cast %156 : vector<1x128x32xf32> to vector<128x32xf32>
    %158 = arith.mulf %50, %157 : vector<128x32xf32>
    %c9_i32_62 = arith.constant 9 : i32
    %159 = tpu.dynamic_rotate %50 by %c9_i32_62 dim 0 : vector<128x32xf32>, i32 -> vector<128x32xf32>
    %c9 = arith.constant 9 : index
    %c0_63 = arith.constant 0 : index
    %c0_64 = arith.constant 0 : index
    %160 = vector.load %arg5[%c9, %c0_63, %c0_64] : memref<27x128x32xf32, #tpu.memory_space<vmem>>, vector<1x128x32xf32>
    %161 = vector.shape_cast %160 : vector<1x128x32xf32> to vector<128x32xf32>
    %162 = arith.mulf %159, %161 : vector<128x32xf32>
    %163 = arith.addf %158, %162 : vector<128x32xf32>
    %c8_i32_65 = arith.constant 8 : i32
    %164 = tpu.dynamic_rotate %50 by %c8_i32_65 dim 0 : vector<128x32xf32>, i32 -> vector<128x32xf32>
    %c10 = arith.constant 10 : index
    %c0_66 = arith.constant 0 : index
    %c0_67 = arith.constant 0 : index
    %165 = vector.load %arg5[%c10, %c0_66, %c0_67] : memref<27x128x32xf32, #tpu.memory_space<vmem>>, vector<1x128x32xf32>
    %166 = vector.shape_cast %165 : vector<1x128x32xf32> to vector<128x32xf32>
    %167 = arith.mulf %164, %166 : vector<128x32xf32>
    %168 = arith.addf %163, %167 : vector<128x32xf32>
    %c7_i32_68 = arith.constant 7 : i32
    %169 = tpu.dynamic_rotate %50 by %c7_i32_68 dim 0 : vector<128x32xf32>, i32 -> vector<128x32xf32>
    %c11 = arith.constant 11 : index
    %c0_69 = arith.constant 0 : index
    %c0_70 = arith.constant 0 : index
    %170 = vector.load %arg5[%c11, %c0_69, %c0_70] : memref<27x128x32xf32, #tpu.memory_space<vmem>>, vector<1x128x32xf32>
    %171 = vector.shape_cast %170 : vector<1x128x32xf32> to vector<128x32xf32>
    %172 = arith.mulf %169, %171 : vector<128x32xf32>
    %173 = arith.addf %168, %172 : vector<128x32xf32>
    %c1_i32_71 = arith.constant 1 : i32
    %174 = tpu.dynamic_rotate %50 by %c1_i32_71 dim 0 : vector<128x32xf32>, i32 -> vector<128x32xf32>
    %c12 = arith.constant 12 : index
    %c0_72 = arith.constant 0 : index
    %c0_73 = arith.constant 0 : index
    %175 = vector.load %arg5[%c12, %c0_72, %c0_73] : memref<27x128x32xf32, #tpu.memory_space<vmem>>, vector<1x128x32xf32>
    %176 = vector.shape_cast %175 : vector<1x128x32xf32> to vector<128x32xf32>
    %177 = arith.mulf %174, %176 : vector<128x32xf32>
    %178 = arith.addf %173, %177 : vector<128x32xf32>
    %c127_i32_74 = arith.constant 127 : i32
    %179 = tpu.dynamic_rotate %50 by %c127_i32_74 dim 0 : vector<128x32xf32>, i32 -> vector<128x32xf32>
    %c14 = arith.constant 14 : index
    %c0_75 = arith.constant 0 : index
    %c0_76 = arith.constant 0 : index
    %180 = vector.load %arg5[%c14, %c0_75, %c0_76] : memref<27x128x32xf32, #tpu.memory_space<vmem>>, vector<1x128x32xf32>
    %181 = vector.shape_cast %180 : vector<1x128x32xf32> to vector<128x32xf32>
    %182 = arith.mulf %179, %181 : vector<128x32xf32>
    %183 = arith.addf %178, %182 : vector<128x32xf32>
    %c121_i32_77 = arith.constant 121 : i32
    %184 = tpu.dynamic_rotate %50 by %c121_i32_77 dim 0 : vector<128x32xf32>, i32 -> vector<128x32xf32>
    %c15 = arith.constant 15 : index
    %c0_78 = arith.constant 0 : index
    %c0_79 = arith.constant 0 : index
    %185 = vector.load %arg5[%c15, %c0_78, %c0_79] : memref<27x128x32xf32, #tpu.memory_space<vmem>>, vector<1x128x32xf32>
    %186 = vector.shape_cast %185 : vector<1x128x32xf32> to vector<128x32xf32>
    %187 = arith.mulf %184, %186 : vector<128x32xf32>
    %188 = arith.addf %183, %187 : vector<128x32xf32>
    %c120_i32_80 = arith.constant 120 : i32
    %189 = tpu.dynamic_rotate %50 by %c120_i32_80 dim 0 : vector<128x32xf32>, i32 -> vector<128x32xf32>
    %c16 = arith.constant 16 : index
    %c0_81 = arith.constant 0 : index
    %c0_82 = arith.constant 0 : index
    %190 = vector.load %arg5[%c16, %c0_81, %c0_82] : memref<27x128x32xf32, #tpu.memory_space<vmem>>, vector<1x128x32xf32>
    %191 = vector.shape_cast %190 : vector<1x128x32xf32> to vector<128x32xf32>
    %192 = arith.mulf %189, %191 : vector<128x32xf32>
    %193 = arith.addf %188, %192 : vector<128x32xf32>
    %c119_i32_83 = arith.constant 119 : i32
    %194 = tpu.dynamic_rotate %50 by %c119_i32_83 dim 0 : vector<128x32xf32>, i32 -> vector<128x32xf32>
    %c17 = arith.constant 17 : index
    %c0_84 = arith.constant 0 : index
    %c0_85 = arith.constant 0 : index
    %195 = vector.load %arg5[%c17, %c0_84, %c0_85] : memref<27x128x32xf32, #tpu.memory_space<vmem>>, vector<1x128x32xf32>
    %196 = vector.shape_cast %195 : vector<1x128x32xf32> to vector<128x32xf32>
    %197 = arith.mulf %194, %196 : vector<128x32xf32>
    %198 = arith.addf %193, %197 : vector<128x32xf32>
    %c1_86 = arith.constant 1 : index
    %c0_87 = arith.constant 0 : index
    %c0_88 = arith.constant 0 : index
    %199 = vector.load %arg6[%c1_86, %c0_87, %c0_88] : memref<3x1x32xf32, #tpu.memory_space<vmem>>, vector<1x1x32xf32>
    %200 = vector.shape_cast %199 : vector<1x1x32xf32> to vector<1x32xf32>
    %c1_89 = arith.constant 1 : index
    %c0_90 = arith.constant 0 : index
    %c0_91 = arith.constant 0 : index
    %201 = vector.load %arg7[%c1_89, %c0_90, %c0_91] : memref<3x1x32xf32, #tpu.memory_space<vmem>>, vector<1x1x32xf32>
    %202 = vector.shape_cast %201 : vector<1x1x32xf32> to vector<1x32xf32>
    %203 = vector.extract_strided_slice %198 {offsets = [0, 0], sizes = [64, 32], strides = [1, 1]} : vector<128x32xf32> to vector<64x32xf32>
    %204 = vector.shape_cast %203 : vector<64x32xf32> to vector<1x64x32xf32>
    %cst_92 = arith.constant dense<0.000000e+00> : vector<1xf32>
    %205 = vector.multi_reduction <add>, %204, %cst_92 [1, 2] : vector<1x64x32xf32> to vector<1xf32>
    %206 = vector.shape_cast %205 : vector<1xf32> to vector<1x1x1xf32>
    %207 = vector.extract %206[0, 0, 0] : f32 from vector<1x1x1xf32>
    %cst_93 = arith.constant 4.8828125E-4 : f32
    %208 = arith.mulf %207, %cst_93 : f32
    %209 = vector.broadcast %208 : f32 to vector<64x32xf32>
    %210 = arith.subf %203, %209 : vector<64x32xf32>
    %211 = arith.mulf %210, %210 : vector<64x32xf32>
    %212 = vector.shape_cast %211 : vector<64x32xf32> to vector<1x64x32xf32>
    %cst_94 = arith.constant dense<0.000000e+00> : vector<1xf32>
    %213 = vector.multi_reduction <add>, %212, %cst_94 [1, 2] : vector<1x64x32xf32> to vector<1xf32>
    %214 = vector.shape_cast %213 : vector<1xf32> to vector<1x1x1xf32>
    %215 = vector.extract %214[0, 0, 0] : f32 from vector<1x1x1xf32>
    %cst_95 = arith.constant 4.8828125E-4 : f32
    %216 = arith.mulf %215, %cst_95 : f32
    %cst_96 = arith.constant 9.99999974E-6 : f32
    %217 = arith.addf %216, %cst_96 : f32
    %218 = math.rsqrt %217 : f32
    %219 = vector.broadcast %218 : f32 to vector<1x32xf32>
    %220 = arith.mulf %200, %219 : vector<1x32xf32>
    %221 = vector.broadcast %220 : vector<1x32xf32> to vector<64x32xf32>
    %222 = arith.mulf %210, %221 : vector<64x32xf32>
    %223 = vector.broadcast %202 : vector<1x32xf32> to vector<64x32xf32>
    %224 = arith.addf %222, %223 : vector<64x32xf32>
    %225 = vector.extract_strided_slice %198 {offsets = [64, 0], sizes = [64, 32], strides = [1, 1]} : vector<128x32xf32> to vector<64x32xf32>
    %226 = vector.shape_cast %225 : vector<64x32xf32> to vector<1x64x32xf32>
    %cst_97 = arith.constant dense<0.000000e+00> : vector<1xf32>
    %227 = vector.multi_reduction <add>, %226, %cst_97 [1, 2] : vector<1x64x32xf32> to vector<1xf32>
    %228 = vector.shape_cast %227 : vector<1xf32> to vector<1x1x1xf32>
    %229 = vector.extract %228[0, 0, 0] : f32 from vector<1x1x1xf32>
    %cst_98 = arith.constant 4.8828125E-4 : f32
    %230 = arith.mulf %229, %cst_98 : f32
    %231 = vector.broadcast %230 : f32 to vector<64x32xf32>
    %232 = arith.subf %225, %231 : vector<64x32xf32>
    %233 = arith.mulf %232, %232 : vector<64x32xf32>
    %234 = vector.shape_cast %233 : vector<64x32xf32> to vector<1x64x32xf32>
    %cst_99 = arith.constant dense<0.000000e+00> : vector<1xf32>
    %235 = vector.multi_reduction <add>, %234, %cst_99 [1, 2] : vector<1x64x32xf32> to vector<1xf32>
    %236 = vector.shape_cast %235 : vector<1xf32> to vector<1x1x1xf32>
    %237 = vector.extract %236[0, 0, 0] : f32 from vector<1x1x1xf32>
    %cst_100 = arith.constant 4.8828125E-4 : f32
    %238 = arith.mulf %237, %cst_100 : f32
    %cst_101 = arith.constant 9.99999974E-6 : f32
    %239 = arith.addf %238, %cst_101 : f32
    %240 = math.rsqrt %239 : f32
    %241 = vector.broadcast %240 : f32 to vector<1x32xf32>
    %242 = arith.mulf %200, %241 : vector<1x32xf32>
    %243 = vector.broadcast %242 : vector<1x32xf32> to vector<64x32xf32>
    %244 = arith.mulf %232, %243 : vector<64x32xf32>
    %245 = vector.broadcast %202 : vector<1x32xf32> to vector<64x32xf32>
    %246 = arith.addf %244, %245 : vector<64x32xf32>
    %247 = tpu.concatenate %224, %246 in 0 : vector<64x32xf32>, vector<64x32xf32> -> vector<128x32xf32>
    %c22 = arith.constant 22 : index
    %c0_102 = arith.constant 0 : index
    %c0_103 = arith.constant 0 : index
    %248 = vector.load %arg5[%c22, %c0_102, %c0_103] : memref<27x128x32xf32, #tpu.memory_space<vmem>>, vector<1x128x32xf32>
    %249 = vector.shape_cast %248 : vector<1x128x32xf32> to vector<128x32xf32>
    %250 = arith.mulf %247, %249 : vector<128x32xf32>
    %c9_i32_104 = arith.constant 9 : i32
    %251 = tpu.dynamic_rotate %247 by %c9_i32_104 dim 0 : vector<128x32xf32>, i32 -> vector<128x32xf32>
    %c18 = arith.constant 18 : index
    %c0_105 = arith.constant 0 : index
    %c0_106 = arith.constant 0 : index
    %252 = vector.load %arg5[%c18, %c0_105, %c0_106] : memref<27x128x32xf32, #tpu.memory_space<vmem>>, vector<1x128x32xf32>
    %253 = vector.shape_cast %252 : vector<1x128x32xf32> to vector<128x32xf32>
    %254 = arith.mulf %251, %253 : vector<128x32xf32>
    %255 = arith.addf %250, %254 : vector<128x32xf32>
    %c8_i32_107 = arith.constant 8 : i32
    %256 = tpu.dynamic_rotate %247 by %c8_i32_107 dim 0 : vector<128x32xf32>, i32 -> vector<128x32xf32>
    %c19 = arith.constant 19 : index
    %c0_108 = arith.constant 0 : index
    %c0_109 = arith.constant 0 : index
    %257 = vector.load %arg5[%c19, %c0_108, %c0_109] : memref<27x128x32xf32, #tpu.memory_space<vmem>>, vector<1x128x32xf32>
    %258 = vector.shape_cast %257 : vector<1x128x32xf32> to vector<128x32xf32>
    %259 = arith.mulf %256, %258 : vector<128x32xf32>
    %260 = arith.addf %255, %259 : vector<128x32xf32>
    %c7_i32_110 = arith.constant 7 : i32
    %261 = tpu.dynamic_rotate %247 by %c7_i32_110 dim 0 : vector<128x32xf32>, i32 -> vector<128x32xf32>
    %c20 = arith.constant 20 : index
    %c0_111 = arith.constant 0 : index
    %c0_112 = arith.constant 0 : index
    %262 = vector.load %arg5[%c20, %c0_111, %c0_112] : memref<27x128x32xf32, #tpu.memory_space<vmem>>, vector<1x128x32xf32>
    %263 = vector.shape_cast %262 : vector<1x128x32xf32> to vector<128x32xf32>
    %264 = arith.mulf %261, %263 : vector<128x32xf32>
    %265 = arith.addf %260, %264 : vector<128x32xf32>
    %c1_i32_113 = arith.constant 1 : i32
    %266 = tpu.dynamic_rotate %247 by %c1_i32_113 dim 0 : vector<128x32xf32>, i32 -> vector<128x32xf32>
    %c21 = arith.constant 21 : index
    %c0_114 = arith.constant 0 : index
    %c0_115 = arith.constant 0 : index
    %267 = vector.load %arg5[%c21, %c0_114, %c0_115] : memref<27x128x32xf32, #tpu.memory_space<vmem>>, vector<1x128x32xf32>
    %268 = vector.shape_cast %267 : vector<1x128x32xf32> to vector<128x32xf32>
    %269 = arith.mulf %266, %268 : vector<128x32xf32>
    %270 = arith.addf %265, %269 : vector<128x32xf32>
    %c127_i32_116 = arith.constant 127 : i32
    %271 = tpu.dynamic_rotate %247 by %c127_i32_116 dim 0 : vector<128x32xf32>, i32 -> vector<128x32xf32>
    %c23 = arith.constant 23 : index
    %c0_117 = arith.constant 0 : index
    %c0_118 = arith.constant 0 : index
    %272 = vector.load %arg5[%c23, %c0_117, %c0_118] : memref<27x128x32xf32, #tpu.memory_space<vmem>>, vector<1x128x32xf32>
    %273 = vector.shape_cast %272 : vector<1x128x32xf32> to vector<128x32xf32>
    %274 = arith.mulf %271, %273 : vector<128x32xf32>
    %275 = arith.addf %270, %274 : vector<128x32xf32>
    %c121_i32_119 = arith.constant 121 : i32
    %276 = tpu.dynamic_rotate %247 by %c121_i32_119 dim 0 : vector<128x32xf32>, i32 -> vector<128x32xf32>
    %c24 = arith.constant 24 : index
    %c0_120 = arith.constant 0 : index
    %c0_121 = arith.constant 0 : index
    %277 = vector.load %arg5[%c24, %c0_120, %c0_121] : memref<27x128x32xf32, #tpu.memory_space<vmem>>, vector<1x128x32xf32>
    %278 = vector.shape_cast %277 : vector<1x128x32xf32> to vector<128x32xf32>
    %279 = arith.mulf %276, %278 : vector<128x32xf32>
    %280 = arith.addf %275, %279 : vector<128x32xf32>
    %c120_i32_122 = arith.constant 120 : i32
    %281 = tpu.dynamic_rotate %247 by %c120_i32_122 dim 0 : vector<128x32xf32>, i32 -> vector<128x32xf32>
    %c25 = arith.constant 25 : index
    %c0_123 = arith.constant 0 : index
    %c0_124 = arith.constant 0 : index
    %282 = vector.load %arg5[%c25, %c0_123, %c0_124] : memref<27x128x32xf32, #tpu.memory_space<vmem>>, vector<1x128x32xf32>
    %283 = vector.shape_cast %282 : vector<1x128x32xf32> to vector<128x32xf32>
    %284 = arith.mulf %281, %283 : vector<128x32xf32>
    %285 = arith.addf %280, %284 : vector<128x32xf32>
    %c119_i32_125 = arith.constant 119 : i32
    %286 = tpu.dynamic_rotate %247 by %c119_i32_125 dim 0 : vector<128x32xf32>, i32 -> vector<128x32xf32>
    %c26 = arith.constant 26 : index
    %c0_126 = arith.constant 0 : index
    %c0_127 = arith.constant 0 : index
    %287 = vector.load %arg5[%c26, %c0_126, %c0_127] : memref<27x128x32xf32, #tpu.memory_space<vmem>>, vector<1x128x32xf32>
    %288 = vector.shape_cast %287 : vector<1x128x32xf32> to vector<128x32xf32>
    %289 = arith.mulf %286, %288 : vector<128x32xf32>
    %290 = arith.addf %285, %289 : vector<128x32xf32>
    %c2_128 = arith.constant 2 : index
    %c0_129 = arith.constant 0 : index
    %c0_130 = arith.constant 0 : index
    %291 = vector.load %arg6[%c2_128, %c0_129, %c0_130] : memref<3x1x32xf32, #tpu.memory_space<vmem>>, vector<1x1x32xf32>
    %292 = vector.shape_cast %291 : vector<1x1x32xf32> to vector<1x32xf32>
    %c2_131 = arith.constant 2 : index
    %c0_132 = arith.constant 0 : index
    %c0_133 = arith.constant 0 : index
    %293 = vector.load %arg7[%c2_131, %c0_132, %c0_133] : memref<3x1x32xf32, #tpu.memory_space<vmem>>, vector<1x1x32xf32>
    %294 = vector.shape_cast %293 : vector<1x1x32xf32> to vector<1x32xf32>
    %295 = vector.extract_strided_slice %290 {offsets = [0, 0], sizes = [64, 32], strides = [1, 1]} : vector<128x32xf32> to vector<64x32xf32>
    %296 = vector.shape_cast %295 : vector<64x32xf32> to vector<1x64x32xf32>
    %cst_134 = arith.constant dense<0.000000e+00> : vector<1xf32>
    %297 = vector.multi_reduction <add>, %296, %cst_134 [1, 2] : vector<1x64x32xf32> to vector<1xf32>
    %298 = vector.shape_cast %297 : vector<1xf32> to vector<1x1x1xf32>
    %299 = vector.extract %298[0, 0, 0] : f32 from vector<1x1x1xf32>
    %cst_135 = arith.constant 4.8828125E-4 : f32
    %300 = arith.mulf %299, %cst_135 : f32
    %301 = vector.broadcast %300 : f32 to vector<64x32xf32>
    %302 = arith.subf %295, %301 : vector<64x32xf32>
    %303 = arith.mulf %302, %302 : vector<64x32xf32>
    %304 = vector.shape_cast %303 : vector<64x32xf32> to vector<1x64x32xf32>
    %cst_136 = arith.constant dense<0.000000e+00> : vector<1xf32>
    %305 = vector.multi_reduction <add>, %304, %cst_136 [1, 2] : vector<1x64x32xf32> to vector<1xf32>
    %306 = vector.shape_cast %305 : vector<1xf32> to vector<1x1x1xf32>
    %307 = vector.extract %306[0, 0, 0] : f32 from vector<1x1x1xf32>
    %cst_137 = arith.constant 4.8828125E-4 : f32
    %308 = arith.mulf %307, %cst_137 : f32
    %cst_138 = arith.constant 9.99999974E-6 : f32
    %309 = arith.addf %308, %cst_138 : f32
    %310 = math.rsqrt %309 : f32
    %311 = vector.broadcast %310 : f32 to vector<1x32xf32>
    %312 = arith.mulf %292, %311 : vector<1x32xf32>
    %313 = vector.broadcast %312 : vector<1x32xf32> to vector<64x32xf32>
    %314 = arith.mulf %302, %313 : vector<64x32xf32>
    %315 = vector.broadcast %294 : vector<1x32xf32> to vector<64x32xf32>
    %316 = arith.addf %314, %315 : vector<64x32xf32>
    %317 = vector.extract_strided_slice %290 {offsets = [64, 0], sizes = [64, 32], strides = [1, 1]} : vector<128x32xf32> to vector<64x32xf32>
    %318 = vector.shape_cast %317 : vector<64x32xf32> to vector<1x64x32xf32>
    %cst_139 = arith.constant dense<0.000000e+00> : vector<1xf32>
    %319 = vector.multi_reduction <add>, %318, %cst_139 [1, 2] : vector<1x64x32xf32> to vector<1xf32>
    %320 = vector.shape_cast %319 : vector<1xf32> to vector<1x1x1xf32>
    %321 = vector.extract %320[0, 0, 0] : f32 from vector<1x1x1xf32>
    %cst_140 = arith.constant 4.8828125E-4 : f32
    %322 = arith.mulf %321, %cst_140 : f32
    %323 = vector.broadcast %322 : f32 to vector<64x32xf32>
    %324 = arith.subf %317, %323 : vector<64x32xf32>
    %325 = arith.mulf %324, %324 : vector<64x32xf32>
    %326 = vector.shape_cast %325 : vector<64x32xf32> to vector<1x64x32xf32>
    %cst_141 = arith.constant dense<0.000000e+00> : vector<1xf32>
    %327 = vector.multi_reduction <add>, %326, %cst_141 [1, 2] : vector<1x64x32xf32> to vector<1xf32>
    %328 = vector.shape_cast %327 : vector<1xf32> to vector<1x1x1xf32>
    %329 = vector.extract %328[0, 0, 0] : f32 from vector<1x1x1xf32>
    %cst_142 = arith.constant 4.8828125E-4 : f32
    %330 = arith.mulf %329, %cst_142 : f32
    %cst_143 = arith.constant 9.99999974E-6 : f32
    %331 = arith.addf %330, %cst_143 : f32
    %332 = math.rsqrt %331 : f32
    %333 = vector.broadcast %332 : f32 to vector<1x32xf32>
    %334 = arith.mulf %292, %333 : vector<1x32xf32>
    %335 = vector.broadcast %334 : vector<1x32xf32> to vector<64x32xf32>
    %336 = arith.mulf %324, %335 : vector<64x32xf32>
    %337 = vector.broadcast %294 : vector<1x32xf32> to vector<64x32xf32>
    %338 = arith.addf %336, %337 : vector<64x32xf32>
    %339 = tpu.concatenate %316, %338 in 0 : vector<64x32xf32>, vector<64x32xf32> -> vector<128x32xf32>
    %cst_144 = arith.constant 3.000000e+00 : f32
    %340 = vector.broadcast %cst_144 : f32 to vector<128x32xf32>
    %341 = arith.addf %339, %340 : vector<128x32xf32>
    %cst_145 = arith.constant 0.000000e+00 : f32
    %cst_146 = arith.constant 6.000000e+00 : f32
    %342 = vector.broadcast %cst_145 : f32 to vector<128x32xf32>
    %343 = arith.maximumf %342, %341 : vector<128x32xf32>
    %344 = vector.broadcast %cst_146 : f32 to vector<128x32xf32>
    %345 = arith.minimumf %344, %343 : vector<128x32xf32>
    %346 = arith.mulf %339, %345 : vector<128x32xf32>
    %cst_147 = arith.constant 0.166666672 : f32
    %347 = vector.broadcast %cst_147 : f32 to vector<128x32xf32>
    %348 = arith.mulf %346, %347 : vector<128x32xf32>
    %349 = arith.truncf %348 : vector<128x32xf32> to vector<128x32xbf16>
    %c1_148 = arith.constant 1 : index
    %c0_149 = arith.constant 0 : index
    %c0_150 = arith.constant 0 : index
    %350 = vector.load %arg8[%c1_148, %c0_149, %c0_150] : memref<2x32x32xbf16, #tpu.memory_space<vmem>>, vector<1x32x32xbf16>
    %351 = vector.shape_cast %350 : vector<1x32x32xbf16> to vector<32x32xbf16>
    %cst_151 = arith.constant dense<0.000000e+00> : vector<128x32xf32>
    %352 = tpu.matmul %349, %351, %cst_151 {dimension_numbers = #tpu.dot_dimension_numbers<[1], [0], [0], [1], [0, 0, 1, 1], [], []>} : vector<128x32xbf16>, vector<32x32xbf16>, vector<128x32xf32> -> vector<128x32xf32>
    %353 = arith.addf %155, %352 : vector<128x32xf32>
    %c0_152 = arith.constant 0 : index
    %c0_153 = arith.constant 0 : index
    %354 = vector.load %arg9[%c0_152, %c0_153] : memref<1x32xf32, #tpu.memory_space<vmem>>, vector<1x32xf32>
    %355 = vector.broadcast %354 : vector<1x32xf32> to vector<128x32xf32>
    %356 = arith.addf %353, %355 : vector<128x32xf32>
    %c0_154 = arith.constant 0 : index
    %c0_155 = arith.constant 0 : index
    %357 = vector.load %arg10[%c0_154, %c0_155] : memref<128x32xf32, #tpu.memory_space<vmem>>, vector<128x32xf32>
    tpu.vector_store %arg10[%c0_154, %c0_155], %356 {strides = array<i32>} : memref<128x32xf32, #tpu.memory_space<vmem>>, vector<128x32xf32>,
    return
  }
  func.func @transform_0(%arg0: i32) -> (i32, i32) {
    %c0_i32 = arith.constant 0 : i32
    %c0_i32_0 = arith.constant 0 : i32
    return %arg0, %c0_i32 : i32, i32
  }
  func.func @transform_1(%arg0: i32) -> (i32, i32) {
    %c0_i32 = arith.constant 0 : i32
    %c0_i32_0 = arith.constant 0 : i32
    %c0_i32_1 = arith.constant 0 : i32
    return %c0_i32, %c0_i32_0 : i32, i32
  }
  func.func @transform_2(%arg0: i32) -> (i32, i32) {
    %c0_i32 = arith.constant 0 : i32
    %c0_i32_0 = arith.constant 0 : i32
    %c0_i32_1 = arith.constant 0 : i32
    return %c0_i32, %c0_i32_0 : i32, i32
  }
  func.func @transform_3(%arg0: i32) -> (i32, i32) {
    %c0_i32 = arith.constant 0 : i32
    %c0_i32_0 = arith.constant 0 : i32
    %c0_i32_1 = arith.constant 0 : i32
    return %c0_i32, %c0_i32_0 : i32, i32
  }
  func.func @transform_4(%arg0: i32) -> (i32, i32, i32) {
    %c0_i32 = arith.constant 0 : i32
    %c0_i32_0 = arith.constant 0 : i32
    %c0_i32_1 = arith.constant 0 : i32
    %c0_i32_2 = arith.constant 0 : i32
    return %c0_i32, %c0_i32_0, %c0_i32_1 : i32, i32, i32
  }
  func.func @transform_5(%arg0: i32) -> (i32, i32, i32) {
    %c0_i32 = arith.constant 0 : i32
    %c0_i32_0 = arith.constant 0 : i32
    %c0_i32_1 = arith.constant 0 : i32
    %c0_i32_2 = arith.constant 0 : i32
    return %c0_i32, %c0_i32_0, %c0_i32_1 : i32, i32, i32
  }
  func.func @transform_6(%arg0: i32) -> (i32, i32, i32) {
    %c0_i32 = arith.constant 0 : i32
    %c0_i32_0 = arith.constant 0 : i32
    %c0_i32_1 = arith.constant 0 : i32
    %c0_i32_2 = arith.constant 0 : i32
    return %c0_i32, %c0_i32_0, %c0_i32_1 : i32, i32, i32
  }
  func.func @transform_7(%arg0: i32) -> (i32, i32, i32) {
    %c0_i32 = arith.constant 0 : i32
    %c0_i32_0 = arith.constant 0 : i32
    %c0_i32_1 = arith.constant 0 : i32
    %c0_i32_2 = arith.constant 0 : i32
    return %c0_i32, %c0_i32_0, %c0_i32_1 : i32, i32, i32
  }
  func.func @transform_8(%arg0: i32) -> (i32, i32) {
    %c0_i32 = arith.constant 0 : i32
    %c0_i32_0 = arith.constant 0 : i32
    %c0_i32_1 = arith.constant 0 : i32
    return %c0_i32, %c0_i32_0 : i32, i32
  }
  func.func @transform_9(%arg0: i32) -> (i32, i32) {
    %c0_i32 = arith.constant 0 : i32
    %c0_i32_0 = arith.constant 0 : i32
    return %arg0, %c0_i32 : i32, i32
  }
}

</mosaic_0001>

<llo_original>
// kernel: tpu_custom_call.1
$region0: #{tpu_custom_call.1}
  #allocation0 [shape = 'u32[]', space=smem, size = 0x4, offset = 0x4, fixed_abs, tag = 'smem constant byte address 0x4 - core index']
  #allocation1 [shape = 'u32[144,128]{1,0:T(1,128)}', space=vmem, size = 0x12000, scoped, tag = 'internal scratch']
  %s0 = inlined_call_operand.vmem [shape: f32[256,32], index: 0, kind: input, shape index: {}]
  %s1 = inlined_call_operand.vmem [shape: bf16[32,32], index: 1, kind: input, shape index: {}]
  %s2 = inlined_call_operand.vmem [shape: f32[1,32], index: 2, kind: input, shape index: {}]
  %s3 = inlined_call_operand.vmem [shape: f32[1,32], index: 3, kind: input, shape index: {}]
  %s4 = inlined_call_operand.vmem [shape: f32[27,128,32], index: 4, kind: input, shape index: {}]
  %s5 = inlined_call_operand.vmem [shape: f32[3,1,32], index: 5, kind: input, shape index: {}]
  %s6 = inlined_call_operand.vmem [shape: f32[3,1,32], index: 6, kind: input, shape index: {}]
  %s7 = inlined_call_operand.vmem [shape: bf16[2,32,32], index: 7, kind: input, shape index: {}]
  %s8 = inlined_call_operand.vmem [shape: f32[1,32], index: 8, kind: input, shape index: {}]
  %s9 = inlined_call_operand.vmem [shape: f32[256,32], index: 9, kind: output, shape index: {}]
  %s10 = sld [smem:[#allocation0]]
  $region69: #{tpu_custom_call.1} parent=0
    _
  %s12 = ssub.s32 1, %s10
  %s13 = scalar_select 0, %s12, %s10
  loop: start=0, step=1, limit=4
  $region2: #{tpu_custom_call.1} parent=0 // loop_pre_header
    _
  $region3: #{tpu_custom_call.1} parent=0 // loop_header
    %s15 = sphi 0, %s19
    %p16 = scmp.ge.s32.totalorder %s15, 4
    %s25 = sphi 0, %s27
    %s28 = sphi 0, %s25
    %s29 = sphi 0, %s28
    %s45 = sphi 0, %s29
    %s49 = sphi 0, %s49
    %s51 = sphi 0, %s49
    %s52 = sphi 0, %s51
    %s66 = sphi 0, %s52
    %s70 = sphi 0, %s70
    %s72 = sphi 0, %s70
    %s73 = sphi 0, %s72
    %s87 = sphi 0, %s73
    %s91 = sphi 0, %s91
    %s93 = sphi 0, %s91
    %s94 = sphi 0, %s93
    %s108 = sphi 0, %s94
    %s112 = sphi 0, %s112
    %s114 = sphi 0, %s112
    %s115 = sphi 0, %s114
    %s129 = sphi 0, %s115
    %s133 = sphi 0, %s133
    %s135 = sphi 0, %s133
    %s136 = sphi 0, %s135
    %s150 = sphi 0, %s136
    %s154 = sphi 0, %s154
    %s156 = sphi 0, %s154
    %s157 = sphi 0, %s156
    %s171 = sphi 0, %s157
    %s175 = sphi 0, %s175
    %s177 = sphi 0, %s175
    %s178 = sphi 0, %s177
    %s192 = sphi 0, %s178
    %s196 = sphi 0, %s196
    %s198 = sphi 0, %s196
    %s199 = sphi 0, %s198
    %s213 = sphi 0, %s199
    %s219 = sphi 0, %s221
    %s222 = sphi 0, %s219
    %s223 = sphi 0, %s222
    %s239 = sphi 0, %s223
  $region4: #{tpu_custom_call.1} parent=0 // loop_header_branch
    %18 = sbr.rel (%p16) target = $region8
  $region5: #{tpu_custom_call.1} parent=0 // loop_body
    %s20 = ssub.s32 %s15, 1
    %s21 = ssub.s32 %s15, 2
    %s22 = sadd.s32 %s15, 1
    %s23 = ssub.s32 %s15, %s22
    %p24 = scmp.eq.s32.totalorder %s23, 0
    %s26 = sadd.s32 %s25, 1
    %s27 = scalar_select %p24, %s25, %s26
    %p30 = pneg %p24
    %p31 = scmp.eq.s32.totalorder %s15, 1
    %p32 = por %p30, %p31
    %p33 = scmp.ne.s32.totalorder %s25, %s28
    %p34 = scmp.eq.s32.totalorder %s15, 0
    %p35 = por %p33, %p34
    %p36 = scmp.ne.s32.totalorder %s25, %s28
    %p37 = scmp.eq.s32.totalorder %s20, 1
    %p38 = por %p36, %p37
    %p39 = scmp.ne.s32.totalorder %s28, %s29
    %p40 = scmp.eq.s32.totalorder %s20, 0
    %p41 = por %p39, %p40
    %p42 = scmp.ne.s32.totalorder %s28, %s29
    %p43 = scmp.eq.s32.totalorder %s21, 1
    %p44 = por %p42, %p43
    %p46 = scmp.ne.s32.totalorder %s29, %s45
    %p47 = scmp.eq.s32.totalorder %s21, 0
    %p48 = por %p46, %p47
    %s50 = sadd.s32 %s49, 1
    %p53 = scmp.eq.s32.totalorder %s15, 1
    %p54 = scmp.ne.s32.totalorder %s49, %s51
    %p55 = scmp.eq.s32.totalorder %s15, 0
    %p56 = por %p54, %p55
    %p57 = scmp.ne.s32.totalorder %s49, %s51
    %p58 = scmp.eq.s32.totalorder %s20, 1
    %p59 = por %p57, %p58
    %p60 = scmp.ne.s32.totalorder %s51, %s52
    %p61 = scmp.eq.s32.totalorder %s20, 0
    %p62 = por %p60, %p61
    %p63 = scmp.ne.s32.totalorder %s51, %s52
    %p64 = scmp.eq.s32.totalorder %s21, 1
    %p65 = por %p63, %p64
    %p67 = scmp.ne.s32.totalorder %s52, %s66
    %p68 = scmp.eq.s32.totalorder %s21, 0
    %p69 = por %p67, %p68
    %s71 = sadd.s32 %s70, 1
    %p74 = scmp.eq.s32.totalorder %s15, 1
    %p75 = scmp.ne.s32.totalorder %s70, %s72
    %p76 = scmp.eq.s32.totalorder %s15, 0
    %p77 = por %p75, %p76
    %p78 = scmp.ne.s32.totalorder %s70, %s72
    %p79 = scmp.eq.s32.totalorder %s20, 1
    %p80 = por %p78, %p79
    %p81 = scmp.ne.s32.totalorder %s72, %s73
    %p82 = scmp.eq.s32.totalorder %s20, 0
    %p83 = por %p81, %p82
    %p84 = scmp.ne.s32.totalorder %s72, %s73
    %p85 = scmp.eq.s32.totalorder %s21, 1
    %p86 = por %p84, %p85
    %p88 = scmp.ne.s32.totalorder %s73, %s87
    %p89 = scmp.eq.s32.totalorder %s21, 0
    %p90 = por %p88, %p89
    %s92 = sadd.s32 %s91, 1
    %p95 = scmp.eq.s32.totalorder %s15, 1
    %p96 = scmp.ne.s32.totalorder %s91, %s93
    %p97 = scmp.eq.s32.totalorder %s15, 0
    %p98 = por %p96, %p97
    %p99 = scmp.ne.s32.totalorder %s91, %s93
    %p100 = scmp.eq.s32.totalorder %s20, 1
    %p101 = por %p99, %p100
    %p102 = scmp.ne.s32.totalorder %s93, %s94
    %p103 = scmp.eq.s32.totalorder %s20, 0
    %p104 = por %p102, %p103
    %p105 = scmp.ne.s32.totalorder %s93, %s94
    %p106 = scmp.eq.s32.totalorder %s21, 1
    %p107 = por %p105, %p106
    %p109 = scmp.ne.s32.totalorder %s94, %s108
    %p110 = scmp.eq.s32.totalorder %s21, 0
    %p111 = por %p109, %p110
    %s113 = sadd.s32 %s112, 1
    %p116 = scmp.eq.s32.totalorder %s15, 1
    %p117 = scmp.ne.s32.totalorder %s112, %s114
    %p118 = scmp.eq.s32.totalorder %s15, 0
    %p119 = por %p117, %p118
    %p120 = scmp.ne.s32.totalorder %s112, %s114
    %p121 = scmp.eq.s32.totalorder %s20, 1
    %p122 = por %p120, %p121
    %p123 = scmp.ne.s32.totalorder %s114, %s115
    %p124 = scmp.eq.s32.totalorder %s20, 0
    %p125 = por %p123, %p124
    %p126 = scmp.ne.s32.totalorder %s114, %s115
    %p127 = scmp.eq.s32.totalorder %s21, 1
    %p128 = por %p126, %p127
    %p130 = scmp.ne.s32.totalorder %s115, %s129
    %p131 = scmp.eq.s32.totalorder %s21, 0
    %p132 = por %p130, %p131
    %s134 = sadd.s32 %s133, 1
    %p137 = scmp.eq.s32.totalorder %s15, 1
    %p138 = scmp.ne.s32.totalorder %s133, %s135
    %p139 = scmp.eq.s32.totalorder %s15, 0
    %p140 = por %p138, %p139
    %p141 = scmp.ne.s32.totalorder %s133, %s135
    %p142 = scmp.eq.s32.totalorder %s20, 1
    %p143 = por %p141, %p142
    %p144 = scmp.ne.s32.totalorder %s135, %s136
    %p145 = scmp.eq.s32.totalorder %s20, 0
    %p146 = por %p144, %p145
    %p147 = scmp.ne.s32.totalorder %s135, %s136
    %p148 = scmp.eq.s32.totalorder %s21, 1
    %p149 = por %p147, %p148
    %p151 = scmp.ne.s32.totalorder %s136, %s150
    %p152 = scmp.eq.s32.totalorder %s21, 0
    %p153 = por %p151, %p152
    %s155 = sadd.s32 %s154, 1
    %p158 = scmp.eq.s32.totalorder %s15, 1
    %p159 = scmp.ne.s32.totalorder %s154, %s156
    %p160 = scmp.eq.s32.totalorder %s15, 0
    %p161 = por %p159, %p160
    %p162 = scmp.ne.s32.totalorder %s154, %s156
    %p163 = scmp.eq.s32.totalorder %s20, 1
    %p164 = por %p162, %p163
    %p165 = scmp.ne.s32.totalorder %s156, %s157
    %p166 = scmp.eq.s32.totalorder %s20, 0
    %p167 = por %p165, %p166
    %p168 = scmp.ne.s32.totalorder %s156, %s157
    %p169 = scmp.eq.s32.totalorder %s21, 1
    %p170 = por %p168, %p169
    %p172 = scmp.ne.s32.totalorder %s157, %s171
    %p173 = scmp.eq.s32.totalorder %s21, 0
    %p174 = por %p172, %p173
    %s176 = sadd.s32 %s175, 1
    %p179 = scmp.eq.s32.totalorder %s15, 1
    %p180 = scmp.ne.s32.totalorder %s175, %s177
    %p181 = scmp.eq.s32.totalorder %s15, 0
    %p182 = por %p180, %p181
    %p183 = scmp.ne.s32.totalorder %s175, %s177
    %p184 = scmp.eq.s32.totalorder %s20, 1
    %p185 = por %p183, %p184
    %p186 = scmp.ne.s32.totalorder %s177, %s178
    %p187 = scmp.eq.s32.totalorder %s20, 0
    %p188 = por %p186, %p187
    %p189 = scmp.ne.s32.totalorder %s177, %s178
    %p190 = scmp.eq.s32.totalorder %s21, 1
    %p191 = por %p189, %p190
    %p193 = scmp.ne.s32.totalorder %s178, %s192
    %p194 = scmp.eq.s32.totalorder %s21, 0
    %p195 = por %p193, %p194
    %s197 = sadd.s32 %s196, 1
    %p200 = scmp.eq.s32.totalorder %s15, 1
    %p201 = scmp.ne.s32.totalorder %s196, %s198
    %p202 = scmp.eq.s32.totalorder %s15, 0
    %p203 = por %p201, %p202
    %p204 = scmp.ne.s32.totalorder %s196, %s198
    %p205 = scmp.eq.s32.totalorder %s20, 1
    %p206 = por %p204, %p205
    %p207 = scmp.ne.s32.totalorder %s198, %s199
    %p208 = scmp.eq.s32.totalorder %s20, 0
    %p209 = por %p207, %p208
    %p210 = scmp.ne.s32.totalorder %s198, %s199
    %p211 = scmp.eq.s32.totalorder %s21, 1
    %p212 = por %p210, %p211
    %p214 = scmp.ne.s32.totalorder %s199, %s213
    %p215 = scmp.eq.s32.totalorder %s21, 0
    %p216 = por %p214, %p215
    %s217 = ssub.s32 %s15, %s22
    %p218 = scmp.eq.s32.totalorder %s217, 0
    %s220 = sadd.s32 %s219, 1
    %s221 = scalar_select %p218, %s219, %s220
    %p224 = pneg %p218
    %p225 = scmp.eq.s32.totalorder %s15, 1
    %p226 = por %p224, %p225
    %p227 = scmp.ne.s32.totalorder %s219, %s222
    %p228 = scmp.eq.s32.totalorder %s15, 0
    %p229 = por %p227, %p228
    %p230 = scmp.ne.s32.totalorder %s219, %s222
    %p231 = scmp.eq.s32.totalorder %s20, 1
    %p232 = por %p230, %p231
    %p233 = scmp.ne.s32.totalorder %s222, %s223
    %p234 = scmp.eq.s32.totalorder %s20, 0
    %p235 = por %p233, %p234
    %p236 = scmp.ne.s32.totalorder %s222, %s223
    %p237 = scmp.eq.s32.totalorder %s21, 1
    %p238 = por %p236, %p237
    %p240 = scmp.ne.s32.totalorder %s223, %s239
    %p241 = scmp.eq.s32.totalorder %s21, 0
    %p242 = por %p240, %p241
    %p243 = scmp.le.s32.totalorder 1, %s15
    %p244 = scmp.lt.s32.totalorder %s15, 3
    %p245 = pnand %p243, %p244
    %p246 = pneg %p245
    // Predicated region
    $region9: #{tpu_custom_call.1} parent=5 // pred_check
      _
    $region10: #{tpu_custom_call.1} parent=5 // pred_check_branch
      %248 = sbr.rel (%p245) target = $region12
    $region11: #{tpu_custom_call.1} parent=5 // pred_region
      %s249 = ssub.s32 %s15, 1
      // Predicated region
      $region13: #{tpu_custom_call.1} parent=11 // pred_check
        %p250 = pneg %p62
      $region14: #{tpu_custom_call.1} parent=11 // pred_check_branch
        %252 = sbr.rel (%p250) target = $region16
      $region15: #{tpu_custom_call.1} parent=11 // pred_region
        _
      $region16: #{tpu_custom_call.1} parent=11 // pred_fallthru
        _
      // Predicated region
      $region17: #{tpu_custom_call.1} parent=11 // pred_check
        %p253 = pneg %p83
      $region18: #{tpu_custom_call.1} parent=11 // pred_check_branch
        %255 = sbr.rel (%p253) target = $region20
      $region19: #{tpu_custom_call.1} parent=11 // pred_region
        _
      $region20: #{tpu_custom_call.1} parent=11 // pred_fallthru
        _
      // Predicated region
      $region21: #{tpu_custom_call.1} parent=11 // pred_check
        %p256 = pneg %p104
      $region22: #{tpu_custom_call.1} parent=11 // pred_check_branch
        %258 = sbr.rel (%p256) target = $region24
      $region23: #{tpu_custom_call.1} parent=11 // pred_region
        _
      $region24: #{tpu_custom_call.1} parent=11 // pred_fallthru
        _
      // Predicated region
      $region25: #{tpu_custom_call.1} parent=11 // pred_check
        %p259 = pneg %p125
      $region26: #{tpu_custom_call.1} parent=11 // pred_check_branch
        %261 = sbr.rel (%p259) target = $region28
      $region27: #{tpu_custom_call.1} parent=11 // pred_region
        _
      $region28: #{tpu_custom_call.1} parent=11 // pred_fallthru
        _
      // Predicated region
      $region29: #{tpu_custom_call.1} parent=11 // pred_check
        %p262 = pneg %p146
      $region30: #{tpu_custom_call.1} parent=11 // pred_check_branch
        %264 = sbr.rel (%p262) target = $region32
      $region31: #{tpu_custom_call.1} parent=11 // pred_region
        _
      $region32: #{tpu_custom_call.1} parent=11 // pred_fallthru
        _
      // Predicated region
      $region33: #{tpu_custom_call.1} parent=11 // pred_check
        %p265 = pneg %p167
      $region34: #{tpu_custom_call.1} parent=11 // pred_check_branch
        %267 = sbr.rel (%p265) target = $region36
      $region35: #{tpu_custom_call.1} parent=11 // pred_region
        _
      $region36: #{tpu_custom_call.1} parent=11 // pred_fallthru
        _
      // Predicated region
      $region37: #{tpu_custom_call.1} parent=11 // pred_check
        %p268 = pneg %p188
      $region38: #{tpu_custom_call.1} parent=11 // pred_check_branch
        %270 = sbr.rel (%p268) target = $region40
      $region39: #{tpu_custom_call.1} parent=11 // pred_region
        _
      $region40: #{tpu_custom_call.1} parent=11 // pred_fallthru
        _
      // Predicated region
      $region41: #{tpu_custom_call.1} parent=11 // pred_check
        %p271 = pneg %p209
      $region42: #{tpu_custom_call.1} parent=11 // pred_check_branch
        %273 = sbr.rel (%p271) target = $region44
      $region43: #{tpu_custom_call.1} parent=11 // pred_region
        _
      $region44: #{tpu_custom_call.1} parent=11 // pred_fallthru
        _
    $region12: #{tpu_custom_call.1} parent=5 // pred_fallthru
      _
    %p274 = scmp.lt.s32.totalorder %s15, 2
    // Predicated region
    $region45: #{tpu_custom_call.1} parent=5 // pred_check
      %p275 = pneg %p274
    $region46: #{tpu_custom_call.1} parent=5 // pred_check_branch
      %277 = sbr.rel (%p275) target = $region48
    $region47: #{tpu_custom_call.1} parent=5 // pred_region
      // Predicated region
      $region49: #{tpu_custom_call.1} parent=47 // pred_check
        %p278 = pneg %p35
      $region50: #{tpu_custom_call.1} parent=47 // pred_check_branch
        %280 = sbr.rel (%p278) target = $region52
      $region51: #{tpu_custom_call.1} parent=47 // pred_region
        %s281 = smul.u32 16, %s15
        %p282 = scmp.lt.s32.totalorder %s281, 31
        %s283 = scalar_select %p282, %s281, 31
        %s284 = smul.addr %s283, 8
        %s285 = scalar_lea.vmem %s0, %s284
        %s286 = smul.u32 16, %s15
      $region52: #{tpu_custom_call.1} parent=47 // pred_fallthru
        _
    $region48: #{tpu_custom_call.1} parent=5 // pred_fallthru
      _
    %p287 = scmp.le.s32.totalorder 1, %s15
    %p288 = scmp.lt.s32.totalorder %s15, 3
    %p289 = pnand %p287, %p288
    %p290 = pneg %p289
    // Predicated region
    $region53: #{tpu_custom_call.1} parent=5 // pred_check
      _
    $region54: #{tpu_custom_call.1} parent=5 // pred_check_branch
      %292 = sbr.rel (%p289) target = $region56
    $region55: #{tpu_custom_call.1} parent=5 // pred_region
      %s293 = ssub.s32 %s15, 1
      %s294 = smul.u32 16, %s20
      %p295 = scmp.lt.s32.totalorder %s294, 31
      %s296 = scalar_select %p295, %s294, 31
      %s297 = smul.addr %s296, 8
      %s298 = scalar_lea.vmem %s0, %s297
      %p299 = pneg %p41
      %p300 = pneg %p38
      %p301 = pneg %p62
      %p302 = pneg %p59
      %p303 = pneg %p83
      %p304 = pneg %p80
      %p305 = pneg %p104
      %p306 = pneg %p101
      %p307 = pneg %p125
      %p308 = pneg %p122
      %p309 = pneg %p146
      %p310 = pneg %p143
      %p311 = pneg %p167
      %p312 = pneg %p164
      %p313 = pneg %p188
      %p314 = pneg %p185
      %p315 = pneg %p209
      %p316 = pneg %p206
      %p317 = pneg %p235
      %p318 = pneg %p232
      %s319 = smul.u32 16, %s20
      %p320 = scmp.lt.s32.totalorder %s319, 31
      %s321 = scalar_select %p320, %s319, 31
      %s322 = smul.addr %s321, 8
      %s323 = scalar_lea.vmem %s9, %s322
      %s324 = smul.u32 16, %s20
      %p325 = scmp.lt.s32.totalorder %s324, 31
      %s326 = scalar_select %p325, %s324, 31
      %s327 = smul.addr %s326, 8
      %s328 = scalar_lea.vmem %s0, %s327
      %s329 = smul.u32 16, %s20
      %s330 = smul.u32 16, %s20
      %p331 = scmp.lt.s32.totalorder %s330, 31
      %s332 = scalar_select %p331, %s330, 31
      %s333 = smul.addr %s332, 8
      %s334 = scalar_lea.vmem %s9, %s333
      %s335 = smul.u32 16, %s20
      %v337 = vld [vmem:[%s328] sm:$0xff]
      %v338 = vld [vmem:[%s328 + $0x8] sm:$0xff]
      %v339 = vld [vmem:[%s328 + $0x10] sm:$0xff]
      %v340 = vld [vmem:[%s328 + $0x18] sm:$0xff]
      %v341 = vld [vmem:[%s328 + $0x20] sm:$0xff]
      %v342 = vld [vmem:[%s328 + $0x28] sm:$0xff]
      %v343 = vld [vmem:[%s328 + $0x30] sm:$0xff]
      %v344 = vld [vmem:[%s328 + $0x38] sm:$0xff]
      %v345 = vld [vmem:[%s328 + $0x40] sm:$0xff]
      %v346 = vld [vmem:[%s328 + $0x48] sm:$0xff]
      %v347 = vld [vmem:[%s328 + $0x50] sm:$0xff]
      %v348 = vld [vmem:[%s328 + $0x58] sm:$0xff]
      %v349 = vld [vmem:[%s328 + $0x60] sm:$0xff]
      %v350 = vld [vmem:[%s328 + $0x68] sm:$0xff]
      %v351 = vld [vmem:[%s328 + $0x70] sm:$0xff]
      %v352 = vld [vmem:[%s328 + $0x78] sm:$0xff]
      %v353 = vpack.c.bf16 %v338, %v337
      %v354 = vpack.c.bf16 %v340, %v339
      %v355 = vpack.c.bf16 %v342, %v341
      %v356 = vpack.c.bf16 %v344, %v343
      %v357 = vpack.c.bf16 %v346, %v345
      %v358 = vpack.c.bf16 %v348, %v347
      %v359 = vpack.c.bf16 %v350, %v349
      %v360 = vpack.c.bf16 %v352, %v351
      %v361 = vld [vmem:[%s1] sm:$0xf]
      %v362 = vld [vmem:[%s1 + $0x4] sm:$0xf]
      %v363 = vld [vmem:[%s1 + $0x8] sm:$0xf]
      %v364 = vld [vmem:[%s1 + $0xc] sm:$0xf]
      %v369 = vunpack.c.l.b16 %v361
      %v370 = vunpack.c.l.b16 %v362
      %v371 = vunpack.c.l.b16 %v363
      %v372 = vunpack.c.l.b16 %v364
      %v373 = vpack.c.b16 %v370, %v369
      %v374 = vpack.c.b16 %v372, %v371
      %vm377 = vcmask 261120
      %v379 = vsel %vm377, %v353, 0
      %v382 = vsel %vm377, %v354, 0
      %v385 = vsel %vm377, %v355, 0
      %v388 = vsel %vm377, %v356, 0
      %v391 = vsel %vm377, %v357, 0
      %v394 = vsel %vm377, %v358, 0
      %v397 = vsel %vm377, %v359, 0
      %v400 = vsel %vm377, %v360, 0
      %402 = vmatprep.subr.bf16.mxu0 0
      %403 = vmatpush1.bf16.msra.mxu0 %v373
      %404 = vmatprep.subr.bf16.mxu0 0
      %405 = vmatpush1.bf16.msra.mxu0 %v374
      %406 = vmatprep.subr.bf16.mxu0 0
      %407 = vmatpush1.bf16.msra.mxu0 0
      %408 = vmatprep.subr.bf16.mxu0 0
      %409 = vmatpush1.bf16.msra.mxu0 0
      %410 = vmatprep.subr.bf16.mxu0 0
      %411 = vmatpush1.bf16.msra.mxu0 0
      %412 = vmatprep.subr.bf16.mxu0 0
      %413 = vmatpush1.bf16.msra.mxu0 0
      %414 = vmatprep.subr.bf16.mxu0 0
      %415 = vmatpush1.bf16.msra.mxu0 0
      %416 = vmatprep.subr.bf16.mxu0 0
      %417 = vmatpush1.bf16.msra.mxu0 0
      %418 = vmatprep.subr.bf16.mxu0 0
      %419 = vmatpush1.bf16.msra.mxu0 0
      %420 = vmatprep.subr.bf16.mxu0 0
      %421 = vmatpush1.bf16.msra.mxu0 0
      %422 = vmatprep.subr.bf16.mxu0 0
      %423 = vmatpush1.bf16.msra.mxu0 0
      %424 = vmatprep.subr.bf16.mxu0 0
      %425 = vmatpush1.bf16.msra.mxu0 0
      %426 = vmatprep.subr.bf16.mxu0 0
      %427 = vmatpush1.bf16.msra.mxu0 0
      %428 = vmatprep.subr.bf16.mxu0 0
      %429 = vmatpush1.bf16.msra.mxu0 0
      %430 = vmatprep.subr.bf16.mxu0 0
      %431 = vmatpush1.bf16.msra.mxu0 0
      %432 = vmatprep.subr.bf16.mxu0 0
      %433 = vmatpush1.bf16.msra.mxu0 0
      %434 = vmatprep.mubr.bf16.mxu0 0
      %435 = vmatmul.mubr.bf16.gmra.mrb[0].mxu0 %v379
      %v436 = vpop.f32.mrb[0].mxu0
      %v437 = vadd.f32 0.0, %v436
      %v438 = vpop.f32.mrb[0].mxu0
      %v439 = vpop.f32.mrb[0].mxu0
      %v440 = vadd.f32 0.0, %v439
      %v441 = vpop.f32.mrb[0].mxu0
      %442 = vmatprep.mubr.bf16.mxu0 0
      %443 = vmatmul.mubr.bf16.gmra.mrb[0].mxu0 %v382
      %v444 = vpop.f32.mrb[0].mxu0
      %v445 = vadd.f32 0.0, %v444
      %v446 = vpop.f32.mrb[0].mxu0
      %v447 = vpop.f32.mrb[0].mxu0
      %v448 = vadd.f32 0.0, %v447
      %v449 = vpop.f32.mrb[0].mxu0
      %450 = vmatprep.mubr.bf16.mxu0 0
      %451 = vmatmul.mubr.bf16.gmra.mrb[0].mxu0 %v385
      %v452 = vpop.f32.mrb[0].mxu0
      %v453 = vadd.f32 0.0, %v452
      %v454 = vpop.f32.mrb[0].mxu0
      %v455 = vpop.f32.mrb[0].mxu0
      %v456 = vadd.f32 0.0, %v455
      %v457 = vpop.f32.mrb[0].mxu0
      %458 = vmatprep.mubr.bf16.mxu0 0
      %459 = vmatmul.mubr.bf16.gmra.mrb[0].mxu0 %v388
      %v460 = vpop.f32.mrb[0].mxu0
      %v461 = vadd.f32 0.0, %v460
      %v462 = vpop.f32.mrb[0].mxu0
      %v463 = vpop.f32.mrb[0].mxu0
      %v464 = vadd.f32 0.0, %v463
      %v465 = vpop.f32.mrb[0].mxu0
      %466 = vmatprep.mubr.bf16.mxu0 0
      %467 = vmatmul.mubr.bf16.gmra.mrb[0].mxu0 %v391
      %v468 = vpop.f32.mrb[0].mxu0
      %v469 = vadd.f32 0.0, %v468
      %v470 = vpop.f32.mrb[0].mxu0
      %v471 = vpop.f32.mrb[0].mxu0
      %v472 = vadd.f32 0.0, %v471
      %v473 = vpop.f32.mrb[0].mxu0
      %474 = vmatprep.mubr.bf16.mxu0 0
      %475 = vmatmul.mubr.bf16.gmra.mrb[0].mxu0 %v394
      %v476 = vpop.f32.mrb[0].mxu0
      %v477 = vadd.f32 0.0, %v476
      %v478 = vpop.f32.mrb[0].mxu0
      %v479 = vpop.f32.mrb[0].mxu0
      %v480 = vadd.f32 0.0, %v479
      %v481 = vpop.f32.mrb[0].mxu0
      %482 = vmatprep.mubr.bf16.mxu0 0
      %483 = vmatmul.mubr.bf16.gmra.mrb[0].mxu0 %v397
      %v484 = vpop.f32.mrb[0].mxu0
      %v485 = vadd.f32 0.0, %v484
      %v486 = vpop.f32.mrb[0].mxu0
      %v487 = vpop.f32.mrb[0].mxu0
      %v488 = vadd.f32 0.0, %v487
      %v489 = vpop.f32.mrb[0].mxu0
      %490 = vmatprep.mubr.bf16.mxu0 0
      %491 = vmatmul.mubr.bf16.gmra.mrb[0].mxu0 %v400
      %v492 = vpop.f32.mrb[0].mxu0
      %v493 = vadd.f32 0.0, %v492
      %v494 = vpop.f32.mrb[0].mxu0
      %v495 = vpop.f32.mrb[0].mxu0
      %v496 = vadd.f32 0.0, %v495
      %v497 = vpop.f32.mrb[0].mxu0
      %498 = vdwg.mxu0
      %v499 = vld [vmem:[%s2] sm:$0x1]
      %v500 = vld [vmem:[%s3] sm:$0x1]
      %v501 = vsel %vm377, %v437, 0.0
      %v502 = vsel %vm377, %v440, 0.0
      %v503 = vadd.f32 %v501, %v502
      %v504 = vsel %vm377, %v445, 0.0
      %v505 = vadd.f32 %v503, %v504
      %v506 = vsel %vm377, %v448, 0.0
      %v507 = vadd.f32 %v505, %v506
      %v508 = vsel %vm377, %v453, 0.0
      %v509 = vadd.f32 %v507, %v508
      %v510 = vsel %vm377, %v456, 0.0
      %v511 = vadd.f32 %v509, %v510
      %v512 = vsel %vm377, %v461, 0.0
      %v513 = vadd.f32 %v511, %v512
      %v514 = vsel %vm377, %v464, 0.0
      %v515 = vadd.f32 %v513, %v514
      %516 = vadd.xlane.f32.xlu0 %v515
      %v517 = vpop.xlane.xlu0 %516
      %v518 = vrot.slane %v517, 4
      %v519 = vadd.f32 %v517, %v518
      %v520 = vrot.slane %v519, 2
      %v521 = vadd.f32 %v519, %v520
      %v522 = vrot.slane %v521, 1
      %v523 = vadd.f32 %v521, %v522
      %s524 = vtos %v523
      %s525 = smul.f32 %s524, 0.00048828125
      %v526 = vstv %s525
      %v527 = vsub.f32 %v437, %v526
      %v528 = vsub.f32 %v440, %v526
      %v529 = vsub.f32 %v445, %v526
      %v530 = vsub.f32 %v448, %v526
      %v531 = vsub.f32 %v453, %v526
      %v532 = vsub.f32 %v456, %v526
      %v533 = vsub.f32 %v461, %v526
      %v534 = vsub.f32 %v464, %v526
      %v535 = vmul.f32 %v527, %v527
      %v536 = vmul.f32 %v528, %v528
      %v537 = vmul.f32 %v529, %v529
      %v538 = vmul.f32 %v530, %v530
      %v539 = vmul.f32 %v531, %v531
      %v540 = vmul.f32 %v532, %v532
      %v541 = vmul.f32 %v533, %v533
      %v542 = vmul.f32 %v534, %v534
      %v543 = vsel %vm377, %v535, 0.0
      %v544 = vsel %vm377, %v536, 0.0
      %v545 = vadd.f32 %v543, %v544
      %v546 = vsel %vm377, %v537, 0.0
      %v547 = vadd.f32 %v545, %v546
      %v548 = vsel %vm377, %v538, 0.0
      %v549 = vadd.f32 %v547, %v548
      %v550 = vsel %vm377, %v539, 0.0
      %v551 = vadd.f32 %v549, %v550
      %v552 = vsel %vm377, %v540, 0.0
      %v553 = vadd.f32 %v551, %v552
      %v554 = vsel %vm377, %v541, 0.0
      %v555 = vadd.f32 %v553, %v554
      %v556 = vsel %vm377, %v542, 0.0
      %v557 = vadd.f32 %v555, %v556
      %558 = vadd.xlane.f32.xlu0 %v557
      %v559 = vpop.xlane.xlu0 %558
      %v560 = vrot.slane %v559, 4
      %v561 = vadd.f32 %v559, %v560
      %v562 = vrot.slane %v561, 2
      %v563 = vadd.f32 %v561, %v562
      %v564 = vrot.slane %v563, 1
      %v565 = vadd.f32 %v563, %v564
      %s566 = vtos %v565
      %s567 = smul.f32 %s566, 0.00048828125
      %s568 = sadd.f32 %s567, 1e-05
      %v569 = vstv %s568
      %v570 = vrsqrt.pop %v569
      %s571 = vtos %v570
      %v572 = vstv %s571
      %v573 = vmul.f32 %v499, %v572
      %v575 = vlaneseq
      %v576 = vshrl.u32 %v575, 7
      %v577 = vsub.s32 0, %v576
      %v578 = vrot.slane %v573, %v577
      %v580 = vmul.f32 %v527, %v578
      %v581 = vmul.f32 %v528, %v578
      %v582 = vmul.f32 %v529, %v578
      %v583 = vmul.f32 %v530, %v578
      %v584 = vmul.f32 %v531, %v578
      %v585 = vmul.f32 %v532, %v578
      %v586 = vmul.f32 %v533, %v578
      %v587 = vmul.f32 %v534, %v578
      %v589 = vlaneseq
      %v590 = vshrl.u32 %v589, 7
      %v591 = vsub.s32 0, %v590
      %v592 = vrot.slane %v500, %v591
      %v594 = vadd.f32 %v580, %v592
      %v595 = vadd.f32 %v581, %v592
      %v596 = vadd.f32 %v582, %v592
      %v597 = vadd.f32 %v583, %v592
      %v598 = vadd.f32 %v584, %v592
      %v599 = vadd.f32 %v585, %v592
      %v600 = vadd.f32 %v586, %v592
      %v601 = vadd.f32 %v587, %v592
      %v602 = vsel %vm377, %v469, 0.0
      %v603 = vsel %vm377, %v472, 0.0
      %v604 = vadd.f32 %v602, %v603
      %v605 = vsel %vm377, %v477, 0.0
      %v606 = vadd.f32 %v604, %v605
      %v607 = vsel %vm377, %v480, 0.0
      %v608 = vadd.f32 %v606, %v607
      %v609 = vsel %vm377, %v485, 0.0
      %v610 = vadd.f32 %v608, %v609
      %v611 = vsel %vm377, %v488, 0.0
      %v612 = vadd.f32 %v610, %v611
      %v613 = vsel %vm377, %v493, 0.0
      %v614 = vadd.f32 %v612, %v613
      %v615 = vsel %vm377, %v496, 0.0
      %v616 = vadd.f32 %v614, %v615
      %617 = vadd.xlane.f32.xlu0 %v616
      %v618 = vpop.xlane.xlu0 %617
      %v619 = vrot.slane %v618, 4
      %v620 = vadd.f32 %v618, %v619
      %v621 = vrot.slane %v620, 2
      %v622 = vadd.f32 %v620, %v621
      %v623 = vrot.slane %v622, 1
      %v624 = vadd.f32 %v622, %v623
      %s625 = vtos %v624
      %s626 = smul.f32 %s625, 0.00048828125
      %v627 = vstv %s626
      %v628 = vsub.f32 %v469, %v627
      %v629 = vsub.f32 %v472, %v627
      %v630 = vsub.f32 %v477, %v627
      %v631 = vsub.f32 %v480, %v627
      %v632 = vsub.f32 %v485, %v627
      %v633 = vsub.f32 %v488, %v627
      %v634 = vsub.f32 %v493, %v627
      %v635 = vsub.f32 %v496, %v627
      %v636 = vmul.f32 %v628, %v628
      %v637 = vmul.f32 %v629, %v629
      %v638 = vmul.f32 %v630, %v630
      %v639 = vmul.f32 %v631, %v631
      %v640 = vmul.f32 %v632, %v632
      %v641 = vmul.f32 %v633, %v633
      %v642 = vmul.f32 %v634, %v634
      %v643 = vmul.f32 %v635, %v635
      %v644 = vsel %vm377, %v636, 0.0
      %v645 = vsel %vm377, %v637, 0.0
      %v646 = vadd.f32 %v644, %v645
      %v647 = vsel %vm377, %v638, 0.0
      %v648 = vadd.f32 %v646, %v647
      %v649 = vsel %vm377, %v639, 0.0
      %v650 = vadd.f32 %v648, %v649
      %v651 = vsel %vm377, %v640, 0.0
      %v652 = vadd.f32 %v650, %v651
      %v653 = vsel %vm377, %v641, 0.0
      %v654 = vadd.f32 %v652, %v653
      %v655 = vsel %vm377, %v642, 0.0
      %v656 = vadd.f32 %v654, %v655
      %v657 = vsel %vm377, %v643, 0.0
      %v658 = vadd.f32 %v656, %v657
      %659 = vadd.xlane.f32.xlu0 %v658
      %v660 = vpop.xlane.xlu0 %659
      %v661 = vrot.slane %v660, 4
      %v662 = vadd.f32 %v660, %v661
      %v663 = vrot.slane %v662, 2
      %v664 = vadd.f32 %v662, %v663
      %v665 = vrot.slane %v664, 1
      %v666 = vadd.f32 %v664, %v665
      %s667 = vtos %v666
      %s668 = smul.f32 %s667, 0.00048828125
      %s669 = sadd.f32 %s668, 1e-05
      %v670 = vstv %s669
      %v671 = vrsqrt.pop %v670
      %s672 = vtos %v671
      %v673 = vstv %s672
      %v674 = vmul.f32 %v499, %v673
      %v676 = vlaneseq
      %v677 = vshrl.u32 %v676, 7
      %v678 = vsub.s32 0, %v677
      %v679 = vrot.slane %v674, %v678
      %v681 = vmul.f32 %v628, %v679
      %v682 = vmul.f32 %v629, %v679
      %v683 = vmul.f32 %v630, %v679
      %v684 = vmul.f32 %v631, %v679
      %v685 = vmul.f32 %v632, %v679
      %v686 = vmul.f32 %v633, %v679
      %v687 = vmul.f32 %v634, %v679
      %v688 = vmul.f32 %v635, %v679
      %v689 = vadd.f32 %v681, %v592
      %v690 = vadd.f32 %v682, %v592
      %v691 = vadd.f32 %v683, %v592
      %v692 = vadd.f32 %v684, %v592
      %v693 = vadd.f32 %v685, %v592
      %v694 = vadd.f32 %v686, %v592
      %v695 = vadd.f32 %v687, %v592
      %v696 = vadd.f32 %v688, %v592
      %s697 = scalar_lea.vmem %s4, 512
      %v698 = vld [vmem:[%s697] sm:$0xff]
      %v699 = vld [vmem:[%s697 + $0x8] sm:$0xff]
      %v700 = vld [vmem:[%s697 + $0x10] sm:$0xff]
      %v701 = vld [vmem:[%s697 + $0x18] sm:$0xff]
      %v702 = vld [vmem:[%s697 + $0x20] sm:$0xff]
      %v703 = vld [vmem:[%s697 + $0x28] sm:$0xff]
      %v704 = vld [vmem:[%s697 + $0x30] sm:$0xff]
      %v705 = vld [vmem:[%s697 + $0x38] sm:$0xff]
      %v706 = vld [vmem:[%s697 + $0x40] sm:$0xff]
      %v707 = vld [vmem:[%s697 + $0x48] sm:$0xff]
      %v708 = vld [vmem:[%s697 + $0x50] sm:$0xff]
      %v709 = vld [vmem:[%s697 + $0x58] sm:$0xff]
      %v710 = vld [vmem:[%s697 + $0x60] sm:$0xff]
      %v711 = vld [vmem:[%s697 + $0x68] sm:$0xff]
      %v712 = vld [vmem:[%s697 + $0x70] sm:$0xff]
      %v713 = vld [vmem:[%s697 + $0x78] sm:$0xff]
      %v714 = vmul.f32 %v594, %v698
      %v715 = vmul.f32 %v595, %v699
      %v716 = vmul.f32 %v596, %v700
      %v717 = vmul.f32 %v597, %v701
      %v718 = vmul.f32 %v598, %v702
      %v719 = vmul.f32 %v599, %v703
      %v720 = vmul.f32 %v600, %v704
      %v721 = vmul.f32 %v601, %v705
      %v722 = vmul.f32 %v689, %v706
      %v723 = vmul.f32 %v690, %v707
      %v724 = vmul.f32 %v691, %v708
      %v725 = vmul.f32 %v692, %v709
      %v726 = vmul.f32 %v693, %v710
      %v727 = vmul.f32 %v694, %v711
      %v728 = vmul.f32 %v695, %v712
      %v729 = vmul.f32 %v696, %v713
      %v730 = vrot.slane %v594, 7
      %v731 = vrot.slane %v595, 7
      %v732 = vrot.slane %v596, 7
      %v733 = vrot.slane %v597, 7
      %v734 = vrot.slane %v598, 7
      %v735 = vrot.slane %v599, 7
      %v736 = vrot.slane %v600, 7
      %v737 = vrot.slane %v601, 7
      %v738 = vrot.slane %v689, 7
      %v739 = vrot.slane %v690, 7
      %v740 = vrot.slane %v691, 7
      %v741 = vrot.slane %v692, 7
      %v742 = vrot.slane %v693, 7
      %v743 = vrot.slane %v694, 7
      %v744 = vrot.slane %v695, 7
      %v745 = vrot.slane %v696, 7
      %v746 = vlaneseq
      %v747 = vshrl.u32 %v746, 7
      %vm748 = vcmp.lt.s32.totalorder %v747, 1
      %v749 = vsel %vm748, %v744, %v745
      %v750 = vsel %vm748, %v743, %v744
      %v751 = vsel %vm748, %v742, %v743
      %v752 = vsel %vm748, %v741, %v742
      %v753 = vsel %vm748, %v740, %v741
      %v754 = vsel %vm748, %v739, %v740
      %v755 = vsel %vm748, %v738, %v739
      %v756 = vsel %vm748, %v737, %v738
      %v757 = vsel %vm748, %v736, %v737
      %v758 = vsel %vm748, %v735, %v736
      %v759 = vsel %vm748, %v734, %v735
      %v760 = vsel %vm748, %v733, %v734
      %v761 = vsel %vm748, %v732, %v733
      %v762 = vsel %vm748, %v731, %v732
      %v763 = vsel %vm748, %v730, %v731
      %v764 = vsel %vm748, %v745, %v730
      %v765 = vld [vmem:[%s4] sm:$0xff]
      %v766 = vld [vmem:[%s4 + $0x8] sm:$0xff]
      %v767 = vld [vmem:[%s4 + $0x10] sm:$0xff]
      %v768 = vld [vmem:[%s4 + $0x18] sm:$0xff]
      %v769 = vld [vmem:[%s4 + $0x20] sm:$0xff]
      %v770 = vld [vmem:[%s4 + $0x28] sm:$0xff]
      %v771 = vld [vmem:[%s4 + $0x30] sm:$0xff]
      %v772 = vld [vmem:[%s4 + $0x38] sm:$0xff]
      %v773 = vld [vmem:[%s4 + $0x40] sm:$0xff]
      %v774 = vld [vmem:[%s4 + $0x48] sm:$0xff]
      %v775 = vld [vmem:[%s4 + $0x50] sm:$0xff]
      %v776 = vld [vmem:[%s4 + $0x58] sm:$0xff]
      %v777 = vld [vmem:[%s4 + $0x60] sm:$0xff]
      %v778 = vld [vmem:[%s4 + $0x68] sm:$0xff]
      %v779 = vld [vmem:[%s4 + $0x70] sm:$0xff]
      %v780 = vld [vmem:[%s4 + $0x78] sm:$0xff]
      %v781 = vmul.f32 %v749, %v765
      %v782 = vmul.f32 %v764, %v766
      %v783 = vmul.f32 %v763, %v767
      %v784 = vmul.f32 %v762, %v768
      %v785 = vmul.f32 %v761, %v769
      %v786 = vmul.f32 %v760, %v770
      %v787 = vmul.f32 %v759, %v771
      %v788 = vmul.f32 %v758, %v772
      %v789 = vmul.f32 %v757, %v773
      %v790 = vmul.f32 %v756, %v774
      %v791 = vmul.f32 %v755, %v775
      %v792 = vmul.f32 %v754, %v776
      %v793 = vmul.f32 %v753, %v777
      %v794 = vmul.f32 %v752, %v778
      %v795 = vmul.f32 %v751, %v779
      %v796 = vmul.f32 %v750, %v780
      %v797 = vadd.f32 %v714, %v781
      %v798 = vadd.f32 %v715, %v782
      %v799 = vadd.f32 %v716, %v783
      %v800 = vadd.f32 %v717, %v784
      %v801 = vadd.f32 %v718, %v785
      %v802 = vadd.f32 %v719, %v786
      %v803 = vadd.f32 %v720, %v787
      %v804 = vadd.f32 %v721, %v788
      %v805 = vadd.f32 %v722, %v789
      %v806 = vadd.f32 %v723, %v790
      %v807 = vadd.f32 %v724, %v791
      %v808 = vadd.f32 %v725, %v792
      %v809 = vadd.f32 %v726, %v793
      %v810 = vadd.f32 %v727, %v794
      %v811 = vadd.f32 %v728, %v795
      %v812 = vadd.f32 %v729, %v796
      %s813 = scalar_lea.vmem %s4, 128
      %v814 = vld [vmem:[%s813] sm:$0xff]
      %v815 = vld [vmem:[%s813 + $0x8] sm:$0xff]
      %v816 = vld [vmem:[%s813 + $0x10] sm:$0xff]
      %v817 = vld [vmem:[%s813 + $0x18] sm:$0xff]
      %v818 = vld [vmem:[%s813 + $0x20] sm:$0xff]
      %v819 = vld [vmem:[%s813 + $0x28] sm:$0xff]
      %v820 = vld [vmem:[%s813 + $0x30] sm:$0xff]
      %v821 = vld [vmem:[%s813 + $0x38] sm:$0xff]
      %v822 = vld [vmem:[%s813 + $0x40] sm:$0xff]
      %v823 = vld [vmem:[%s813 + $0x48] sm:$0xff]
      %v824 = vld [vmem:[%s813 + $0x50] sm:$0xff]
      %v825 = vld [vmem:[%s813 + $0x58] sm:$0xff]
      %v826 = vld [vmem:[%s813 + $0x60] sm:$0xff]
      %v827 = vld [vmem:[%s813 + $0x68] sm:$0xff]
      %v828 = vld [vmem:[%s813 + $0x70] sm:$0xff]
      %v829 = vld [vmem:[%s813 + $0x78] sm:$0xff]
      %v830 = vmul.f32 %v696, %v814
      %v831 = vmul.f32 %v594, %v815
      %v832 = vmul.f32 %v595, %v816
      %v833 = vmul.f32 %v596, %v817
      %v834 = vmul.f32 %v597, %v818
      %v835 = vmul.f32 %v598, %v819
      %v836 = vmul.f32 %v599, %v820
      %v837 = vmul.f32 %v600, %v821
      %v838 = vmul.f32 %v601, %v822
      %v839 = vmul.f32 %v689, %v823
      %v840 = vmul.f32 %v690, %v824
      %v841 = vmul.f32 %v691, %v825
      %v842 = vmul.f32 %v692, %v826
      %v843 = vmul.f32 %v693, %v827
      %v844 = vmul.f32 %v694, %v828
      %v845 = vmul.f32 %v695, %v829
      %v846 = vadd.f32 %v797, %v830
      %v847 = vadd.f32 %v798, %v831
      %v848 = vadd.f32 %v799, %v832
      %v849 = vadd.f32 %v800, %v833
      %v850 = vadd.f32 %v801, %v834
      %v851 = vadd.f32 %v802, %v835
      %v852 = vadd.f32 %v803, %v836
      %v853 = vadd.f32 %v804, %v837
      %v854 = vadd.f32 %v805, %v838
      %v855 = vadd.f32 %v806, %v839
      %v856 = vadd.f32 %v807, %v840
      %v857 = vadd.f32 %v808, %v841
      %v858 = vadd.f32 %v809, %v842
      %v859 = vadd.f32 %v810, %v843
      %v860 = vadd.f32 %v811, %v844
      %v861 = vadd.f32 %v812, %v845
      %v862 = vrot.slane %v594, 1
      %v863 = vrot.slane %v595, 1
      %v864 = vrot.slane %v596, 1
      %v865 = vrot.slane %v597, 1
      %v866 = vrot.slane %v598, 1
      %v867 = vrot.slane %v599, 1
      %v868 = vrot.slane %v600, 1
      %v869 = vrot.slane %v601, 1
      %v870 = vrot.slane %v689, 1
      %v871 = vrot.slane %v690, 1
      %v872 = vrot.slane %v691, 1
      %v873 = vrot.slane %v692, 1
      %v874 = vrot.slane %v693, 1
      %v875 = vrot.slane %v694, 1
      %v876 = vrot.slane %v695, 1
      %v877 = vrot.slane %v696, 1
      %vm878 = vcmp.lt.s32.totalorder %v747, 7
      %v879 = vsel %vm878, %v876, %v877
      %v880 = vsel %vm878, %v875, %v876
      %v881 = vsel %vm878, %v874, %v875
      %v882 = vsel %vm878, %v873, %v874
      %v883 = vsel %vm878, %v872, %v873
      %v884 = vsel %vm878, %v871, %v872
      %v885 = vsel %vm878, %v870, %v871
      %v886 = vsel %vm878, %v869, %v870
      %v887 = vsel %vm878, %v868, %v869
      %v888 = vsel %vm878, %v867, %v868
      %v889 = vsel %vm878, %v866, %v867
      %v890 = vsel %vm878, %v865, %v866
      %v891 = vsel %vm878, %v864, %v865
      %v892 = vsel %vm878, %v863, %v864
      %v893 = vsel %vm878, %v862, %v863
      %v894 = vsel %vm878, %v877, %v862
      %s895 = scalar_lea.vmem %s4, 256
      %v896 = vld [vmem:[%s895] sm:$0xff]
      %v897 = vld [vmem:[%s895 + $0x8] sm:$0xff]
      %v898 = vld [vmem:[%s895 + $0x10] sm:$0xff]
      %v899 = vld [vmem:[%s895 + $0x18] sm:$0xff]
      %v900 = vld [vmem:[%s895 + $0x20] sm:$0xff]
      %v901 = vld [vmem:[%s895 + $0x28] sm:$0xff]
      %v902 = vld [vmem:[%s895 + $0x30] sm:$0xff]
      %v903 = vld [vmem:[%s895 + $0x38] sm:$0xff]
      %v904 = vld [vmem:[%s895 + $0x40] sm:$0xff]
      %v905 = vld [vmem:[%s895 + $0x48] sm:$0xff]
      %v906 = vld [vmem:[%s895 + $0x50] sm:$0xff]
      %v907 = vld [vmem:[%s895 + $0x58] sm:$0xff]
      %v908 = vld [vmem:[%s895 + $0x60] sm:$0xff]
      %v909 = vld [vmem:[%s895 + $0x68] sm:$0xff]
      %v910 = vld [vmem:[%s895 + $0x70] sm:$0xff]
      %v911 = vld [vmem:[%s895 + $0x78] sm:$0xff]
      %v912 = vmul.f32 %v894, %v896
      %v913 = vmul.f32 %v893, %v897
      %v914 = vmul.f32 %v892, %v898
      %v915 = vmul.f32 %v891, %v899
      %v916 = vmul.f32 %v890, %v900
      %v917 = vmul.f32 %v889, %v901
      %v918 = vmul.f32 %v888, %v902
      %v919 = vmul.f32 %v887, %v903
      %v920 = vmul.f32 %v886, %v904
      %v921 = vmul.f32 %v885, %v905
      %v922 = vmul.f32 %v884, %v906
      %v923 = vmul.f32 %v883, %v907
      %v924 = vmul.f32 %v882, %v908
      %v925 = vmul.f32 %v881, %v909
      %v926 = vmul.f32 %v880, %v910
      %v927 = vmul.f32 %v879, %v911
      %v928 = vadd.f32 %v846, %v912
      %v929 = vadd.f32 %v847, %v913
      %v930 = vadd.f32 %v848, %v914
      %v931 = vadd.f32 %v849, %v915
      %v932 = vadd.f32 %v850, %v916
      %v933 = vadd.f32 %v851, %v917
      %v934 = vadd.f32 %v852, %v918
      %v935 = vadd.f32 %v853, %v919
      %v936 = vadd.f32 %v854, %v920
      %v937 = vadd.f32 %v855, %v921
      %v938 = vadd.f32 %v856, %v922
      %v939 = vadd.f32 %v857, %v923
      %v940 = vadd.f32 %v858, %v924
      %v941 = vadd.f32 %v859, %v925
      %v942 = vadd.f32 %v860, %v926
      %v943 = vadd.f32 %v861, %v927
      %s944 = scalar_lea.vmem %s4, 384
      %v945 = vld [vmem:[%s944] sm:$0xff]
      %v946 = vld [vmem:[%s944 + $0x8] sm:$0xff]
      %v947 = vld [vmem:[%s944 + $0x10] sm:$0xff]
      %v948 = vld [vmem:[%s944 + $0x18] sm:$0xff]
      %v949 = vld [vmem:[%s944 + $0x20] sm:$0xff]
      %v950 = vld [vmem:[%s944 + $0x28] sm:$0xff]
      %v951 = vld [vmem:[%s944 + $0x30] sm:$0xff]
      %v952 = vld [vmem:[%s944 + $0x38] sm:$0xff]
      %v953 = vld [vmem:[%s944 + $0x40] sm:$0xff]
      %v954 = vld [vmem:[%s944 + $0x48] sm:$0xff]
      %v955 = vld [vmem:[%s944 + $0x50] sm:$0xff]
      %v956 = vld [vmem:[%s944 + $0x58] sm:$0xff]
      %v957 = vld [vmem:[%s944 + $0x60] sm:$0xff]
      %v958 = vld [vmem:[%s944 + $0x68] sm:$0xff]
      %v959 = vld [vmem:[%s944 + $0x70] sm:$0xff]
      %v960 = vld [vmem:[%s944 + $0x78] sm:$0xff]
      %v961 = vmul.f32 %v764, %v945
      %v962 = vmul.f32 %v763, %v946
      %v963 = vmul.f32 %v762, %v947
      %v964 = vmul.f32 %v761, %v948
      %v965 = vmul.f32 %v760, %v949
      %v966 = vmul.f32 %v759, %v950
      %v967 = vmul.f32 %v758, %v951
      %v968 = vmul.f32 %v757, %v952
      %v969 = vmul.f32 %v756, %v953
      %v970 = vmul.f32 %v755, %v954
      %v971 = vmul.f32 %v754, %v955
      %v972 = vmul.f32 %v753, %v956
      %v973 = vmul.f32 %v752, %v957
      %v974 = vmul.f32 %v751, %v958
      %v975 = vmul.f32 %v750, %v959
      %v976 = vmul.f32 %v749, %v960
      %v977 = vadd.f32 %v928, %v961
      %v978 = vadd.f32 %v929, %v962
      %v979 = vadd.f32 %v930, %v963
      %v980 = vadd.f32 %v931, %v964
      %v981 = vadd.f32 %v932, %v965
      %v982 = vadd.f32 %v933, %v966
      %v983 = vadd.f32 %v934, %v967
      %v984 = vadd.f32 %v935, %v968
      %v985 = vadd.f32 %v936, %v969
      %v986 = vadd.f32 %v937, %v970
      %v987 = vadd.f32 %v938, %v971
      %v988 = vadd.f32 %v939, %v972
      %v989 = vadd.f32 %v940, %v973
      %v990 = vadd.f32 %v941, %v974
      %v991 = vadd.f32 %v942, %v975
      %v992 = vadd.f32 %v943, %v976
      %s993 = scalar_lea.vmem %s4, 640
      %v994 = vld [vmem:[%s993] sm:$0xff]
      %v995 = vld [vmem:[%s993 + $0x8] sm:$0xff]
      %v996 = vld [vmem:[%s993 + $0x10] sm:$0xff]
      %v997 = vld [vmem:[%s993 + $0x18] sm:$0xff]
      %v998 = vld [vmem:[%s993 + $0x20] sm:$0xff]
      %v999 = vld [vmem:[%s993 + $0x28] sm:$0xff]
      %v1000 = vld [vmem:[%s993 + $0x30] sm:$0xff]
      %v1001 = vld [vmem:[%s993 + $0x38] sm:$0xff]
      %v1002 = vld [vmem:[%s993 + $0x40] sm:$0xff]
      %v1003 = vld [vmem:[%s993 + $0x48] sm:$0xff]
      %v1004 = vld [vmem:[%s993 + $0x50] sm:$0xff]
      %v1005 = vld [vmem:[%s993 + $0x58] sm:$0xff]
      %v1006 = vld [vmem:[%s993 + $0x60] sm:$0xff]
      %v1007 = vld [vmem:[%s993 + $0x68] sm:$0xff]
      %v1008 = vld [vmem:[%s993 + $0x70] sm:$0xff]
      %v1009 = vld [vmem:[%s993 + $0x78] sm:$0xff]
      %v1010 = vmul.f32 %v893, %v994
      %v1011 = vmul.f32 %v892, %v995
      %v1012 = vmul.f32 %v891, %v996
      %v1013 = vmul.f32 %v890, %v997
      %v1014 = vmul.f32 %v889, %v998
      %v1015 = vmul.f32 %v888, %v999
      %v1016 = vmul.f32 %v887, %v1000
      %v1017 = vmul.f32 %v886, %v1001
      %v1018 = vmul.f32 %v885, %v1002
      %v1019 = vmul.f32 %v884, %v1003
      %v1020 = vmul.f32 %v883, %v1004
      %v1021 = vmul.f32 %v882, %v1005
      %v1022 = vmul.f32 %v881, %v1006
      %v1023 = vmul.f32 %v880, %v1007
      %v1024 = vmul.f32 %v879, %v1008
      %v1025 = vmul.f32 %v894, %v1009
      %v1026 = vadd.f32 %v977, %v1010
      %v1027 = vadd.f32 %v978, %v1011
      %v1028 = vadd.f32 %v979, %v1012
      %v1029 = vadd.f32 %v980, %v1013
      %v1030 = vadd.f32 %v981, %v1014
      %v1031 = vadd.f32 %v982, %v1015
      %v1032 = vadd.f32 %v983, %v1016
      %v1033 = vadd.f32 %v984, %v1017
      %v1034 = vadd.f32 %v985, %v1018
      %v1035 = vadd.f32 %v986, %v1019
      %v1036 = vadd.f32 %v987, %v1020
      %v1037 = vadd.f32 %v988, %v1021
      %v1038 = vadd.f32 %v989, %v1022
      %v1039 = vadd.f32 %v990, %v1023
      %v1040 = vadd.f32 %v991, %v1024
      %v1041 = vadd.f32 %v992, %v1025
      %s1042 = scalar_lea.vmem %s4, 768
      %v1043 = vld [vmem:[%s1042] sm:$0xff]
      %v1044 = vld [vmem:[%s1042 + $0x8] sm:$0xff]
      %v1045 = vld [vmem:[%s1042 + $0x10] sm:$0xff]
      %v1046 = vld [vmem:[%s1042 + $0x18] sm:$0xff]
      %v1047 = vld [vmem:[%s1042 + $0x20] sm:$0xff]
      %v1048 = vld [vmem:[%s1042 + $0x28] sm:$0xff]
      %v1049 = vld [vmem:[%s1042 + $0x30] sm:$0xff]
      %v1050 = vld [vmem:[%s1042 + $0x38] sm:$0xff]
      %v1051 = vld [vmem:[%s1042 + $0x40] sm:$0xff]
      %v1052 = vld [vmem:[%s1042 + $0x48] sm:$0xff]
      %v1053 = vld [vmem:[%s1042 + $0x50] sm:$0xff]
      %v1054 = vld [vmem:[%s1042 + $0x58] sm:$0xff]
      %v1055 = vld [vmem:[%s1042 + $0x60] sm:$0xff]
      %v1056 = vld [vmem:[%s1042 + $0x68] sm:$0xff]
      %v1057 = vld [vmem:[%s1042 + $0x70] sm:$0xff]
      %v1058 = vld [vmem:[%s1042 + $0x78] sm:$0xff]
      %v1059 = vmul.f32 %v763, %v1043
      %v1060 = vmul.f32 %v762, %v1044
      %v1061 = vmul.f32 %v761, %v1045
      %v1062 = vmul.f32 %v760, %v1046
      %v1063 = vmul.f32 %v759, %v1047
      %v1064 = vmul.f32 %v758, %v1048
      %v1065 = vmul.f32 %v757, %v1049
      %v1066 = vmul.f32 %v756, %v1050
      %v1067 = vmul.f32 %v755, %v1051
      %v1068 = vmul.f32 %v754, %v1052
      %v1069 = vmul.f32 %v753, %v1053
      %v1070 = vmul.f32 %v752, %v1054
      %v1071 = vmul.f32 %v751, %v1055
      %v1072 = vmul.f32 %v750, %v1056
      %v1073 = vmul.f32 %v749, %v1057
      %v1074 = vmul.f32 %v764, %v1058
      %v1075 = vadd.f32 %v1026, %v1059
      %v1076 = vadd.f32 %v1027, %v1060
      %v1077 = vadd.f32 %v1028, %v1061
      %v1078 = vadd.f32 %v1029, %v1062
      %v1079 = vadd.f32 %v1030, %v1063
      %v1080 = vadd.f32 %v1031, %v1064
      %v1081 = vadd.f32 %v1032, %v1065
      %v1082 = vadd.f32 %v1033, %v1066
      %v1083 = vadd.f32 %v1034, %v1067
      %v1084 = vadd.f32 %v1035, %v1068
      %v1085 = vadd.f32 %v1036, %v1069
      %v1086 = vadd.f32 %v1037, %v1070
      %v1087 = vadd.f32 %v1038, %v1071
      %v1088 = vadd.f32 %v1039, %v1072
      %v1089 = vadd.f32 %v1040, %v1073
      %v1090 = vadd.f32 %v1041, %v1074
      %s1091 = scalar_lea.vmem %s4, 896
      %v1092 = vld [vmem:[%s1091] sm:$0xff]
      %v1093 = vld [vmem:[%s1091 + $0x8] sm:$0xff]
      %v1094 = vld [vmem:[%s1091 + $0x10] sm:$0xff]
      %v1095 = vld [vmem:[%s1091 + $0x18] sm:$0xff]
      %v1096 = vld [vmem:[%s1091 + $0x20] sm:$0xff]
      %v1097 = vld [vmem:[%s1091 + $0x28] sm:$0xff]
      %v1098 = vld [vmem:[%s1091 + $0x30] sm:$0xff]
      %v1099 = vld [vmem:[%s1091 + $0x38] sm:$0xff]
      %v1100 = vld [vmem:[%s1091 + $0x40] sm:$0xff]
      %v1101 = vld [vmem:[%s1091 + $0x48] sm:$0xff]
      %v1102 = vld [vmem:[%s1091 + $0x50] sm:$0xff]
      %v1103 = vld [vmem:[%s1091 + $0x58] sm:$0xff]
      %v1104 = vld [vmem:[%s1091 + $0x60] sm:$0xff]
      %v1105 = vld [vmem:[%s1091 + $0x68] sm:$0xff]
      %v1106 = vld [vmem:[%s1091 + $0x70] sm:$0xff]
      %v1107 = vld [vmem:[%s1091 + $0x78] sm:$0xff]
      %v1108 = vmul.f32 %v595, %v1092
      %v1109 = vmul.f32 %v596, %v1093
      %v1110 = vmul.f32 %v597, %v1094
      %v1111 = vmul.f32 %v598, %v1095
      %v1112 = vmul.f32 %v599, %v1096
      %v1113 = vmul.f32 %v600, %v1097
      %v1114 = vmul.f32 %v601, %v1098
      %v1115 = vmul.f32 %v689, %v1099
      %v1116 = vmul.f32 %v690, %v1100
      %v1117 = vmul.f32 %v691, %v1101
      %v1118 = vmul.f32 %v692, %v1102
      %v1119 = vmul.f32 %v693, %v1103
      %v1120 = vmul.f32 %v694, %v1104
      %v1121 = vmul.f32 %v695, %v1105
      %v1122 = vmul.f32 %v696, %v1106
      %v1123 = vmul.f32 %v594, %v1107
      %v1124 = vadd.f32 %v1075, %v1108
      %v1125 = vadd.f32 %v1076, %v1109
      %v1126 = vadd.f32 %v1077, %v1110
      %v1127 = vadd.f32 %v1078, %v1111
      %v1128 = vadd.f32 %v1079, %v1112
      %v1129 = vadd.f32 %v1080, %v1113
      %v1130 = vadd.f32 %v1081, %v1114
      %v1131 = vadd.f32 %v1082, %v1115
      %v1132 = vadd.f32 %v1083, %v1116
      %v1133 = vadd.f32 %v1084, %v1117
      %v1134 = vadd.f32 %v1085, %v1118
      %v1135 = vadd.f32 %v1086, %v1119
      %v1136 = vadd.f32 %v1087, %v1120
      %v1137 = vadd.f32 %v1088, %v1121
      %v1138 = vadd.f32 %v1089, %v1122
      %v1139 = vadd.f32 %v1090, %v1123
      %s1140 = scalar_lea.vmem %s4, 1024
      %v1141 = vld [vmem:[%s1140] sm:$0xff]
      %v1142 = vld [vmem:[%s1140 + $0x8] sm:$0xff]
      %v1143 = vld [vmem:[%s1140 + $0x10] sm:$0xff]
      %v1144 = vld [vmem:[%s1140 + $0x18] sm:$0xff]
      %v1145 = vld [vmem:[%s1140 + $0x20] sm:$0xff]
      %v1146 = vld [vmem:[%s1140 + $0x28] sm:$0xff]
      %v1147 = vld [vmem:[%s1140 + $0x30] sm:$0xff]
      %v1148 = vld [vmem:[%s1140 + $0x38] sm:$0xff]
      %v1149 = vld [vmem:[%s1140 + $0x40] sm:$0xff]
      %v1150 = vld [vmem:[%s1140 + $0x48] sm:$0xff]
      %v1151 = vld [vmem:[%s1140 + $0x50] sm:$0xff]
      %v1152 = vld [vmem:[%s1140 + $0x58] sm:$0xff]
      %v1153 = vld [vmem:[%s1140 + $0x60] sm:$0xff]
      %v1154 = vld [vmem:[%s1140 + $0x68] sm:$0xff]
      %v1155 = vld [vmem:[%s1140 + $0x70] sm:$0xff]
      %v1156 = vld [vmem:[%s1140 + $0x78] sm:$0xff]
      %v1157 = vmul.f32 %v892, %v1141
      %v1158 = vmul.f32 %v891, %v1142
      %v1159 = vmul.f32 %v890, %v1143
      %v1160 = vmul.f32 %v889, %v1144
      %v1161 = vmul.f32 %v888, %v1145
      %v1162 = vmul.f32 %v887, %v1146
      %v1163 = vmul.f32 %v886, %v1147
      %v1164 = vmul.f32 %v885, %v1148
      %v1165 = vmul.f32 %v884, %v1149
      %v1166 = vmul.f32 %v883, %v1150
      %v1167 = vmul.f32 %v882, %v1151
      %v1168 = vmul.f32 %v881, %v1152
      %v1169 = vmul.f32 %v880, %v1153
      %v1170 = vmul.f32 %v879, %v1154
      %v1171 = vmul.f32 %v894, %v1155
      %v1172 = vmul.f32 %v893, %v1156
      %v1173 = vadd.f32 %v1124, %v1157
      %v1174 = vadd.f32 %v1125, %v1158
      %v1175 = vadd.f32 %v1126, %v1159
      %v1176 = vadd.f32 %v1127, %v1160
      %v1177 = vadd.f32 %v1128, %v1161
      %v1178 = vadd.f32 %v1129, %v1162
      %v1179 = vadd.f32 %v1130, %v1163
      %v1180 = vadd.f32 %v1131, %v1164
      %v1181 = vadd.f32 %v1132, %v1165
      %v1182 = vadd.f32 %v1133, %v1166
      %v1183 = vadd.f32 %v1134, %v1167
      %v1184 = vadd.f32 %v1135, %v1168
      %v1185 = vadd.f32 %v1136, %v1169
      %v1186 = vadd.f32 %v1137, %v1170
      %v1187 = vadd.f32 %v1138, %v1171
      %v1188 = vadd.f32 %v1139, %v1172
      %v1189 = vld [vmem:[%s5] sm:$0x1]
      %v1190 = vld [vmem:[%s6] sm:$0x1]
      %v1191 = vsel %vm377, %v1173, 0.0
      %v1192 = vsel %vm377, %v1174, 0.0
      %v1193 = vadd.f32 %v1191, %v1192
      %v1194 = vsel %vm377, %v1175, 0.0
      %v1195 = vadd.f32 %v1193, %v1194
      %v1196 = vsel %vm377, %v1176, 0.0
      %v1197 = vadd.f32 %v1195, %v1196
      %v1198 = vsel %vm377, %v1177, 0.0
      %v1199 = vadd.f32 %v1197, %v1198
      %v1200 = vsel %vm377, %v1178, 0.0
      %v1201 = vadd.f32 %v1199, %v1200
      %v1202 = vsel %vm377, %v1179, 0.0
      %v1203 = vadd.f32 %v1201, %v1202
      %v1204 = vsel %vm377, %v1180, 0.0
      %v1205 = vadd.f32 %v1203, %v1204
      %1206 = vadd.xlane.f32.xlu0 %v1205
      %v1207 = vpop.xlane.xlu0 %1206
      %v1208 = vrot.slane %v1207, 4
      %v1209 = vadd.f32 %v1207, %v1208
      %v1210 = vrot.slane %v1209, 2
      %v1211 = vadd.f32 %v1209, %v1210
      %v1212 = vrot.slane %v1211, 1
      %v1213 = vadd.f32 %v1211, %v1212
      %s1214 = vtos %v1213
      %s1215 = smul.f32 %s1214, 0.00048828125
      %v1216 = vstv %s1215
      %v1217 = vsub.f32 %v1173, %v1216
      %v1218 = vsub.f32 %v1174, %v1216
      %v1219 = vsub.f32 %v1175, %v1216
      %v1220 = vsub.f32 %v1176, %v1216
      %v1221 = vsub.f32 %v1177, %v1216
      %v1222 = vsub.f32 %v1178, %v1216
      %v1223 = vsub.f32 %v1179, %v1216
      %v1224 = vsub.f32 %v1180, %v1216
      %v1225 = vmul.f32 %v1217, %v1217
      %v1226 = vmul.f32 %v1218, %v1218
      %v1227 = vmul.f32 %v1219, %v1219
      %v1228 = vmul.f32 %v1220, %v1220
      %v1229 = vmul.f32 %v1221, %v1221
      %v1230 = vmul.f32 %v1222, %v1222
      %v1231 = vmul.f32 %v1223, %v1223
      %v1232 = vmul.f32 %v1224, %v1224
      %v1233 = vsel %vm377, %v1225, 0.0
      %v1234 = vsel %vm377, %v1226, 0.0
      %v1235 = vadd.f32 %v1233, %v1234
      %v1236 = vsel %vm377, %v1227, 0.0
      %v1237 = vadd.f32 %v1235, %v1236
      %v1238 = vsel %vm377, %v1228, 0.0
      %v1239 = vadd.f32 %v1237, %v1238
      %v1240 = vsel %vm377, %v1229, 0.0
      %v1241 = vadd.f32 %v1239, %v1240
      %v1242 = vsel %vm377, %v1230, 0.0
      %v1243 = vadd.f32 %v1241, %v1242
      %v1244 = vsel %vm377, %v1231, 0.0
      %v1245 = vadd.f32 %v1243, %v1244
      %v1246 = vsel %vm377, %v1232, 0.0
      %v1247 = vadd.f32 %v1245, %v1246
      %1248 = vadd.xlane.f32.xlu0 %v1247
      %v1249 = vpop.xlane.xlu0 %1248
      %v1250 = vrot.slane %v1249, 4
      %v1251 = vadd.f32 %v1249, %v1250
      %v1252 = vrot.slane %v1251, 2
      %v1253 = vadd.f32 %v1251, %v1252
      %v1254 = vrot.slane %v1253, 1
      %v1255 = vadd.f32 %v1253, %v1254
      %s1256 = vtos %v1255
      %s1257 = smul.f32 %s1256, 0.00048828125
      %s1258 = sadd.f32 %s1257, 1e-05
      %v1259 = vstv %s1258
      %v1260 = vrsqrt.pop %v1259
      %s1261 = vtos %v1260
      %v1262 = vstv %s1261
      %v1263 = vmul.f32 %v1189, %v1262
      %v1265 = vlaneseq
      %v1266 = vshrl.u32 %v1265, 7
      %v1267 = vsub.s32 0, %v1266
      %v1268 = vrot.slane %v1263, %v1267
      %v1270 = vmul.f32 %v1217, %v1268
      %v1271 = vmul.f32 %v1218, %v1268
      %v1272 = vmul.f32 %v1219, %v1268
      %v1273 = vmul.f32 %v1220, %v1268
      %v1274 = vmul.f32 %v1221, %v1268
      %v1275 = vmul.f32 %v1222, %v1268
      %v1276 = vmul.f32 %v1223, %v1268
      %v1277 = vmul.f32 %v1224, %v1268
      %v1279 = vlaneseq
      %v1280 = vshrl.u32 %v1279, 7
      %v1281 = vsub.s32 0, %v1280
      %v1282 = vrot.slane %v1190, %v1281
      %v1284 = vadd.f32 %v1270, %v1282
      %v1285 = vadd.f32 %v1271, %v1282
      %v1286 = vadd.f32 %v1272, %v1282
      %v1287 = vadd.f32 %v1273, %v1282
      %v1288 = vadd.f32 %v1274, %v1282
      %v1289 = vadd.f32 %v1275, %v1282
      %v1290 = vadd.f32 %v1276, %v1282
      %v1291 = vadd.f32 %v1277, %v1282
      %v1292 = vsel %vm377, %v1181, 0.0
      %v1293 = vsel %vm377, %v1182, 0.0
      %v1294 = vadd.f32 %v1292, %v1293
      %v1295 = vsel %vm377, %v1183, 0.0
      %v1296 = vadd.f32 %v1294, %v1295
      %v1297 = vsel %vm377, %v1184, 0.0
      %v1298 = vadd.f32 %v1296, %v1297
      %v1299 = vsel %vm377, %v1185, 0.0
      %v1300 = vadd.f32 %v1298, %v1299
      %v1301 = vsel %vm377, %v1186, 0.0
      %v1302 = vadd.f32 %v1300, %v1301
      %v1303 = vsel %vm377, %v1187, 0.0
      %v1304 = vadd.f32 %v1302, %v1303
      %v1305 = vsel %vm377, %v1188, 0.0
      %v1306 = vadd.f32 %v1304, %v1305
      %1307 = vadd.xlane.f32.xlu0 %v1306
      %v1308 = vpop.xlane.xlu0 %1307
      %v1309 = vrot.slane %v1308, 4
      %v1310 = vadd.f32 %v1308, %v1309
      %v1311 = vrot.slane %v1310, 2
      %v1312 = vadd.f32 %v1310, %v1311
      %v1313 = vrot.slane %v1312, 1
      %v1314 = vadd.f32 %v1312, %v1313
      %s1315 = vtos %v1314
      %s1316 = smul.f32 %s1315, 0.00048828125
      %v1317 = vstv %s1316
      %v1318 = vsub.f32 %v1181, %v1317
      %v1319 = vsub.f32 %v1182, %v1317
      %v1320 = vsub.f32 %v1183, %v1317
      %v1321 = vsub.f32 %v1184, %v1317
      %v1322 = vsub.f32 %v1185, %v1317
      %v1323 = vsub.f32 %v1186, %v1317
      %v1324 = vsub.f32 %v1187, %v1317
      %v1325 = vsub.f32 %v1188, %v1317
      %v1326 = vmul.f32 %v1318, %v1318
      %v1327 = vmul.f32 %v1319, %v1319
      %v1328 = vmul.f32 %v1320, %v1320
      %v1329 = vmul.f32 %v1321, %v1321
      %v1330 = vmul.f32 %v1322, %v1322
      %v1331 = vmul.f32 %v1323, %v1323
      %v1332 = vmul.f32 %v1324, %v1324
      %v1333 = vmul.f32 %v1325, %v1325
      %v1334 = vsel %vm377, %v1326, 0.0
      %v1335 = vsel %vm377, %v1327, 0.0
      %v1336 = vadd.f32 %v1334, %v1335
      %v1337 = vsel %vm377, %v1328, 0.0
      %v1338 = vadd.f32 %v1336, %v1337
      %v1339 = vsel %vm377, %v1329, 0.0
      %v1340 = vadd.f32 %v1338, %v1339
      %v1341 = vsel %vm377, %v1330, 0.0
      %v1342 = vadd.f32 %v1340, %v1341
      %v1343 = vsel %vm377, %v1331, 0.0
      %v1344 = vadd.f32 %v1342, %v1343
      %v1345 = vsel %vm377, %v1332, 0.0
      %v1346 = vadd.f32 %v1344, %v1345
      %v1347 = vsel %vm377, %v1333, 0.0
      %v1348 = vadd.f32 %v1346, %v1347
      %1349 = vadd.xlane.f32.xlu0 %v1348
      %v1350 = vpop.xlane.xlu0 %1349
      %v1351 = vrot.slane %v1350, 4
      %v1352 = vadd.f32 %v1350, %v1351
      %v1353 = vrot.slane %v1352, 2
      %v1354 = vadd.f32 %v1352, %v1353
      %v1355 = vrot.slane %v1354, 1
      %v1356 = vadd.f32 %v1354, %v1355
      %s1357 = vtos %v1356
      %s1358 = smul.f32 %s1357, 0.00048828125
      %s1359 = sadd.f32 %s1358, 1e-05
      %v1360 = vstv %s1359
      %v1361 = vrsqrt.pop %v1360
      %s1362 = vtos %v1361
      %v1363 = vstv %s1362
      %v1364 = vmul.f32 %v1189, %v1363
      %v1366 = vlaneseq
      %v1367 = vshrl.u32 %v1366, 7
      %v1368 = vsub.s32 0, %v1367
      %v1369 = vrot.slane %v1364, %v1368
      %v1371 = vmul.f32 %v1318, %v1369
      %v1372 = vmul.f32 %v1319, %v1369
      %v1373 = vmul.f32 %v1320, %v1369
      %v1374 = vmul.f32 %v1321, %v1369
      %v1375 = vmul.f32 %v1322, %v1369
      %v1376 = vmul.f32 %v1323, %v1369
      %v1377 = vmul.f32 %v1324, %v1369
      %v1378 = vmul.f32 %v1325, %v1369
      %v1379 = vadd.f32 %v1371, %v1282
      %v1380 = vadd.f32 %v1372, %v1282
      %v1381 = vadd.f32 %v1373, %v1282
      %v1382 = vadd.f32 %v1374, %v1282
      %v1383 = vadd.f32 %v1375, %v1282
      %v1384 = vadd.f32 %v1376, %v1282
      %v1385 = vadd.f32 %v1377, %v1282
      %v1386 = vadd.f32 %v1378, %v1282
      %v1387 = vadd.f32 %v1284, 3.0
      %v1388 = vadd.f32 %v1285, 3.0
      %v1389 = vadd.f32 %v1286, 3.0
      %v1390 = vadd.f32 %v1287, 3.0
      %v1391 = vadd.f32 %v1288, 3.0
      %v1392 = vadd.f32 %v1289, 3.0
      %v1393 = vadd.f32 %v1290, 3.0
      %v1394 = vadd.f32 %v1291, 3.0
      %v1395 = vadd.f32 %v1379, 3.0
      %v1396 = vadd.f32 %v1380, 3.0
      %v1397 = vadd.f32 %v1381, 3.0
      %v1398 = vadd.f32 %v1382, 3.0
      %v1399 = vadd.f32 %v1383, 3.0
      %v1400 = vadd.f32 %v1384, 3.0
      %v1401 = vadd.f32 %v1385, 3.0
      %v1402 = vadd.f32 %v1386, 3.0
      %v1403 = vmax.f32 %v1387, 0.0
      %v1404 = vmax.f32 %v1388, 0.0
      %v1405 = vmax.f32 %v1389, 0.0
      %v1406 = vmax.f32 %v1390, 0.0
      %v1407 = vmax.f32 %v1391, 0.0
      %v1408 = vmax.f32 %v1392, 0.0
      %v1409 = vmax.f32 %v1393, 0.0
      %v1410 = vmax.f32 %v1394, 0.0
      %v1411 = vmax.f32 %v1395, 0.0
      %v1412 = vmax.f32 %v1396, 0.0
      %v1413 = vmax.f32 %v1397, 0.0
      %v1414 = vmax.f32 %v1398, 0.0
      %v1415 = vmax.f32 %v1399, 0.0
      %v1416 = vmax.f32 %v1400, 0.0
      %v1417 = vmax.f32 %v1401, 0.0
      %v1418 = vmax.f32 %v1402, 0.0
      %v1419 = vmin.f32 %v1403, 6.0
      %v1420 = vmin.f32 %v1404, 6.0
      %v1421 = vmin.f32 %v1405, 6.0
      %v1422 = vmin.f32 %v1406, 6.0
      %v1423 = vmin.f32 %v1407, 6.0
      %v1424 = vmin.f32 %v1408, 6.0
      %v1425 = vmin.f32 %v1409, 6.0
      %v1426 = vmin.f32 %v1410, 6.0
      %v1427 = vmin.f32 %v1411, 6.0
      %v1428 = vmin.f32 %v1412, 6.0
      %v1429 = vmin.f32 %v1413, 6.0
      %v1430 = vmin.f32 %v1414, 6.0
      %v1431 = vmin.f32 %v1415, 6.0
      %v1432 = vmin.f32 %v1416, 6.0
      %v1433 = vmin.f32 %v1417, 6.0
      %v1434 = vmin.f32 %v1418, 6.0
      %v1435 = vmul.f32 %v1284, %v1419
      %v1436 = vmul.f32 %v1285, %v1420
      %v1437 = vmul.f32 %v1286, %v1421
      %v1438 = vmul.f32 %v1287, %v1422
      %v1439 = vmul.f32 %v1288, %v1423
      %v1440 = vmul.f32 %v1289, %v1424
      %v1441 = vmul.f32 %v1290, %v1425
      %v1442 = vmul.f32 %v1291, %v1426
      %v1443 = vmul.f32 %v1379, %v1427
      %v1444 = vmul.f32 %v1380, %v1428
      %v1445 = vmul.f32 %v1381, %v1429
      %v1446 = vmul.f32 %v1382, %v1430
      %v1447 = vmul.f32 %v1383, %v1431
      %v1448 = vmul.f32 %v1384, %v1432
      %v1449 = vmul.f32 %v1385, %v1433
      %v1450 = vmul.f32 %v1386, %v1434
      %v1451 = vmul.f32 %v1435, 0.16666667
      %v1452 = vmul.f32 %v1436, 0.16666667
      %v1453 = vmul.f32 %v1437, 0.16666667
      %v1454 = vmul.f32 %v1438, 0.16666667
      %v1455 = vmul.f32 %v1439, 0.16666667
      %v1456 = vmul.f32 %v1440, 0.16666667
      %v1457 = vmul.f32 %v1441, 0.16666667
      %v1458 = vmul.f32 %v1442, 0.16666667
      %v1459 = vmul.f32 %v1443, 0.16666667
      %v1460 = vmul.f32 %v1444, 0.16666667
      %v1461 = vmul.f32 %v1445, 0.16666667
      %v1462 = vmul.f32 %v1446, 0.16666667
      %v1463 = vmul.f32 %v1447, 0.16666667
      %v1464 = vmul.f32 %v1448, 0.16666667
      %v1465 = vmul.f32 %v1449, 0.16666667
      %v1466 = vmul.f32 %v1450, 0.16666667
      %v1467 = vpack.c.bf16 %v1452, %v1451
      %v1468 = vpack.c.bf16 %v1454, %v1453
      %v1469 = vpack.c.bf16 %v1456, %v1455
      %v1470 = vpack.c.bf16 %v1458, %v1457
      %v1471 = vpack.c.bf16 %v1460, %v1459
      %v1472 = vpack.c.bf16 %v1462, %v1461
      %v1473 = vpack.c.bf16 %v1464, %v1463
      %v1474 = vpack.c.bf16 %v1466, %v1465
      %v1475 = vld [vmem:[%s7] sm:$0xf]
      %v1476 = vld [vmem:[%s7 + $0x4] sm:$0xf]
      %v1477 = vld [vmem:[%s7 + $0x8] sm:$0xf]
      %v1478 = vld [vmem:[%s7 + $0xc] sm:$0xf]
      %s1479 = scalar_lea.vmem %s4, 1664
      %v1480 = vld [vmem:[%s1479] sm:$0xff]
      %v1481 = vld [vmem:[%s1479 + $0x8] sm:$0xff]
      %v1482 = vld [vmem:[%s1479 + $0x10] sm:$0xff]
      %v1483 = vld [vmem:[%s1479 + $0x18] sm:$0xff]
      %v1484 = vld [vmem:[%s1479 + $0x20] sm:$0xff]
      %v1485 = vld [vmem:[%s1479 + $0x28] sm:$0xff]
      %v1486 = vld [vmem:[%s1479 + $0x30] sm:$0xff]
      %v1487 = vld [vmem:[%s1479 + $0x38] sm:$0xff]
      %v1488 = vld [vmem:[%s1479 + $0x40] sm:$0xff]
      %v1489 = vld [vmem:[%s1479 + $0x48] sm:$0xff]
      %v1490 = vld [vmem:[%s1479 + $0x50] sm:$0xff]
      %v1491 = vld [vmem:[%s1479 + $0x58] sm:$0xff]
      %v1492 = vld [vmem:[%s1479 + $0x60] sm:$0xff]
      %v1493 = vld [vmem:[%s1479 + $0x68] sm:$0xff]
      %v1494 = vld [vmem:[%s1479 + $0x70] sm:$0xff]
      %v1495 = vld [vmem:[%s1479 + $0x78] sm:$0xff]
      %v1496 = vmul.f32 %v594, %v1480
      %v1497 = vmul.f32 %v595, %v1481
      %v1498 = vmul.f32 %v596, %v1482
      %v1499 = vmul.f32 %v597, %v1483
      %v1500 = vmul.f32 %v598, %v1484
      %v1501 = vmul.f32 %v599, %v1485
      %v1502 = vmul.f32 %v600, %v1486
      %v1503 = vmul.f32 %v601, %v1487
      %v1504 = vmul.f32 %v689, %v1488
      %v1505 = vmul.f32 %v690, %v1489
      %v1506 = vmul.f32 %v691, %v1490
      %v1507 = vmul.f32 %v692, %v1491
      %v1508 = vmul.f32 %v693, %v1492
      %v1509 = vmul.f32 %v694, %v1493
      %v1510 = vmul.f32 %v695, %v1494
      %v1511 = vmul.f32 %v696, %v1495
      %s1512 = scalar_lea.vmem %s4, 1152
      %v1513 = vld [vmem:[%s1512] sm:$0xff]
      %v1514 = vld [vmem:[%s1512 + $0x8] sm:$0xff]
      %v1515 = vld [vmem:[%s1512 + $0x10] sm:$0xff]
      %v1516 = vld [vmem:[%s1512 + $0x18] sm:$0xff]
      %v1517 = vld [vmem:[%s1512 + $0x20] sm:$0xff]
      %v1518 = vld [vmem:[%s1512 + $0x28] sm:$0xff]
      %v1519 = vld [vmem:[%s1512 + $0x30] sm:$0xff]
      %v1520 = vld [vmem:[%s1512 + $0x38] sm:$0xff]
      %v1521 = vld [vmem:[%s1512 + $0x40] sm:$0xff]
      %v1522 = vld [vmem:[%s1512 + $0x48] sm:$0xff]
      %v1523 = vld [vmem:[%s1512 + $0x50] sm:$0xff]
      %v1524 = vld [vmem:[%s1512 + $0x58] sm:$0xff]
      %v1525 = vld [vmem:[%s1512 + $0x60] sm:$0xff]
      %v1526 = vld [vmem:[%s1512 + $0x68] sm:$0xff]
      %v1527 = vld [vmem:[%s1512 + $0x70] sm:$0xff]
      %v1528 = vld [vmem:[%s1512 + $0x78] sm:$0xff]
      %v1529 = vmul.f32 %v749, %v1513
      %v1530 = vmul.f32 %v764, %v1514
      %v1531 = vmul.f32 %v763, %v1515
      %v1532 = vmul.f32 %v762, %v1516
      %v1533 = vmul.f32 %v761, %v1517
      %v1534 = vmul.f32 %v760, %v1518
      %v1535 = vmul.f32 %v759, %v1519
      %v1536 = vmul.f32 %v758, %v1520
      %v1537 = vmul.f32 %v757, %v1521
      %v1538 = vmul.f32 %v756, %v1522
      %v1539 = vmul.f32 %v755, %v1523
      %v1540 = vmul.f32 %v754, %v1524
      %v1541 = vmul.f32 %v753, %v1525
      %v1542 = vmul.f32 %v752, %v1526
      %v1543 = vmul.f32 %v751, %v1527
      %v1544 = vmul.f32 %v750, %v1528
      %v1545 = vadd.f32 %v1496, %v1529
      %v1546 = vadd.f32 %v1497, %v1530
      %v1547 = vadd.f32 %v1498, %v1531
      %v1548 = vadd.f32 %v1499, %v1532
      %v1549 = vadd.f32 %v1500, %v1533
      %v1550 = vadd.f32 %v1501, %v1534
      %v1551 = vadd.f32 %v1502, %v1535
      %v1552 = vadd.f32 %v1503, %v1536
      %v1553 = vadd.f32 %v1504, %v1537
      %v1554 = vadd.f32 %v1505, %v1538
      %v1555 = vadd.f32 %v1506, %v1539
      %v1556 = vadd.f32 %v1507, %v1540
      %v1557 = vadd.f32 %v1508, %v1541
      %v1558 = vadd.f32 %v1509, %v1542
      %v1559 = vadd.f32 %v1510, %v1543
      %v1560 = vadd.f32 %v1511, %v1544
      %s1561 = scalar_lea.vmem %s4, 1280
      %v1562 = vld [vmem:[%s1561] sm:$0xff]
      %v1563 = vld [vmem:[%s1561 + $0x8] sm:$0xff]
      %v1564 = vld [vmem:[%s1561 + $0x10] sm:$0xff]
      %v1565 = vld [vmem:[%s1561 + $0x18] sm:$0xff]
      %v1566 = vld [vmem:[%s1561 + $0x20] sm:$0xff]
      %v1567 = vld [vmem:[%s1561 + $0x28] sm:$0xff]
      %v1568 = vld [vmem:[%s1561 + $0x30] sm:$0xff]
      %v1569 = vld [vmem:[%s1561 + $0x38] sm:$0xff]
      %v1570 = vld [vmem:[%s1561 + $0x40] sm:$0xff]
      %v1571 = vld [vmem:[%s1561 + $0x48] sm:$0xff]
      %v1572 = vld [vmem:[%s1561 + $0x50] sm:$0xff]
      %v1573 = vld [vmem:[%s1561 + $0x58] sm:$0xff]
      %v1574 = vld [vmem:[%s1561 + $0x60] sm:$0xff]
      %v1575 = vld [vmem:[%s1561 + $0x68] sm:$0xff]
      %v1576 = vld [vmem:[%s1561 + $0x70] sm:$0xff]
      %v1577 = vld [vmem:[%s1561 + $0x78] sm:$0xff]
      %v1578 = vmul.f32 %v696, %v1562
      %v1579 = vmul.f32 %v594, %v1563
      %v1580 = vmul.f32 %v595, %v1564
      %v1581 = vmul.f32 %v596, %v1565
      %v1582 = vmul.f32 %v597, %v1566
      %v1583 = vmul.f32 %v598, %v1567
      %v1584 = vmul.f32 %v599, %v1568
      %v1585 = vmul.f32 %v600, %v1569
      %v1586 = vmul.f32 %v601, %v1570
      %v1587 = vmul.f32 %v689, %v1571
      %v1588 = vmul.f32 %v690, %v1572
      %v1589 = vmul.f32 %v691, %v1573
      %v1590 = vmul.f32 %v692, %v1574
      %v1591 = vmul.f32 %v693, %v1575
      %v1592 = vmul.f32 %v694, %v1576
      %v1593 = vmul.f32 %v695, %v1577
      %v1594 = vadd.f32 %v1545, %v1578
      %v1595 = vadd.f32 %v1546, %v1579
      %v1596 = vadd.f32 %v1547, %v1580
      %v1597 = vadd.f32 %v1548, %v1581
      %v1598 = vadd.f32 %v1549, %v1582
      %v1599 = vadd.f32 %v1550, %v1583
      %v1600 = vadd.f32 %v1551, %v1584
      %v1601 = vadd.f32 %v1552, %v1585
      %v1602 = vadd.f32 %v1553, %v1586
      %v1603 = vadd.f32 %v1554, %v1587
      %v1604 = vadd.f32 %v1555, %v1588
      %v1605 = vadd.f32 %v1556, %v1589
      %v1606 = vadd.f32 %v1557, %v1590
      %v1607 = vadd.f32 %v1558, %v1591
      %v1608 = vadd.f32 %v1559, %v1592
      %v1609 = vadd.f32 %v1560, %v1593
      %s1610 = scalar_lea.vmem %s4, 1408
      %v1611 = vld [vmem:[%s1610] sm:$0xff]
      %v1612 = vld [vmem:[%s1610 + $0x8] sm:$0xff]
      %v1613 = vld [vmem:[%s1610 + $0x10] sm:$0xff]
      %v1614 = vld [vmem:[%s1610 + $0x18] sm:$0xff]
      %v1615 = vld [vmem:[%s1610 + $0x20] sm:$0xff]
      %v1616 = vld [vmem:[%s1610 + $0x28] sm:$0xff]
      %v1617 = vld [vmem:[%s1610 + $0x30] sm:$0xff]
      %v1618 = vld [vmem:[%s1610 + $0x38] sm:$0xff]
      %v1619 = vld [vmem:[%s1610 + $0x40] sm:$0xff]
      %v1620 = vld [vmem:[%s1610 + $0x48] sm:$0xff]
      %v1621 = vld [vmem:[%s1610 + $0x50] sm:$0xff]
      %v1622 = vld [vmem:[%s1610 + $0x58] sm:$0xff]
      %v1623 = vld [vmem:[%s1610 + $0x60] sm:$0xff]
      %v1624 = vld [vmem:[%s1610 + $0x68] sm:$0xff]
      %v1625 = vld [vmem:[%s1610 + $0x70] sm:$0xff]
      %v1626 = vld [vmem:[%s1610 + $0x78] sm:$0xff]
      %v1627 = vmul.f32 %v894, %v1611
      %v1628 = vmul.f32 %v893, %v1612
      %v1629 = vmul.f32 %v892, %v1613
      %v1630 = vmul.f32 %v891, %v1614
      %v1631 = vmul.f32 %v890, %v1615
      %v1632 = vmul.f32 %v889, %v1616
      %v1633 = vmul.f32 %v888, %v1617
      %v1634 = vmul.f32 %v887, %v1618
      %v1635 = vmul.f32 %v886, %v1619
      %v1636 = vmul.f32 %v885, %v1620
      %v1637 = vmul.f32 %v884, %v1621
      %v1638 = vmul.f32 %v883, %v1622
      %v1639 = vmul.f32 %v882, %v1623
      %v1640 = vmul.f32 %v881, %v1624
      %v1641 = vmul.f32 %v880, %v1625
      %v1642 = vmul.f32 %v879, %v1626
      %v1643 = vadd.f32 %v1594, %v1627
      %v1644 = vadd.f32 %v1595, %v1628
      %v1645 = vadd.f32 %v1596, %v1629
      %v1646 = vadd.f32 %v1597, %v1630
      %v1647 = vadd.f32 %v1598, %v1631
      %v1648 = vadd.f32 %v1599, %v1632
      %v1649 = vadd.f32 %v1600, %v1633
      %v1650 = vadd.f32 %v1601, %v1634
      %v1651 = vadd.f32 %v1602, %v1635
      %v1652 = vadd.f32 %v1603, %v1636
      %v1653 = vadd.f32 %v1604, %v1637
      %v1654 = vadd.f32 %v1605, %v1638
      %v1655 = vadd.f32 %v1606, %v1639
      %v1656 = vadd.f32 %v1607, %v1640
      %v1657 = vadd.f32 %v1608, %v1641
      %v1658 = vadd.f32 %v1609, %v1642
      %s1659 = scalar_lea.vmem %s4, 1536
      %v1660 = vld [vmem:[%s1659] sm:$0xff]
      %v1661 = vld [vmem:[%s1659 + $0x8] sm:$0xff]
      %v1662 = vld [vmem:[%s1659 + $0x10] sm:$0xff]
      %v1663 = vld [vmem:[%s1659 + $0x18] sm:$0xff]
      %v1664 = vld [vmem:[%s1659 + $0x20] sm:$0xff]
      %v1665 = vld [vmem:[%s1659 + $0x28] sm:$0xff]
      %v1666 = vld [vmem:[%s1659 + $0x30] sm:$0xff]
      %v1667 = vld [vmem:[%s1659 + $0x38] sm:$0xff]
      %v1668 = vld [vmem:[%s1659 + $0x40] sm:$0xff]
      %v1669 = vld [vmem:[%s1659 + $0x48] sm:$0xff]
      %v1670 = vld [vmem:[%s1659 + $0x50] sm:$0xff]
      %v1671 = vld [vmem:[%s1659 + $0x58] sm:$0xff]
      %v1672 = vld [vmem:[%s1659 + $0x60] sm:$0xff]
      %v1673 = vld [vmem:[%s1659 + $0x68] sm:$0xff]
      %v1674 = vld [vmem:[%s1659 + $0x70] sm:$0xff]
      %v1675 = vld [vmem:[%s1659 + $0x78] sm:$0xff]
      %v1676 = vmul.f32 %v764, %v1660
      %v1677 = vmul.f32 %v763, %v1661
      %v1678 = vmul.f32 %v762, %v1662
      %v1679 = vmul.f32 %v761, %v1663
      %v1680 = vmul.f32 %v760, %v1664
      %v1681 = vmul.f32 %v759, %v1665
      %v1682 = vmul.f32 %v758, %v1666
      %v1683 = vmul.f32 %v757, %v1667
      %v1684 = vmul.f32 %v756, %v1668
      %v1685 = vmul.f32 %v755, %v1669
      %v1686 = vmul.f32 %v754, %v1670
      %v1687 = vmul.f32 %v753, %v1671
      %v1688 = vmul.f32 %v752, %v1672
      %v1689 = vmul.f32 %v751, %v1673
      %v1690 = vmul.f32 %v750, %v1674
      %v1691 = vmul.f32 %v749, %v1675
      %v1692 = vadd.f32 %v1643, %v1676
      %v1693 = vadd.f32 %v1644, %v1677
      %v1694 = vadd.f32 %v1645, %v1678
      %v1695 = vadd.f32 %v1646, %v1679
      %v1696 = vadd.f32 %v1647, %v1680
      %v1697 = vadd.f32 %v1648, %v1681
      %v1698 = vadd.f32 %v1649, %v1682
      %v1699 = vadd.f32 %v1650, %v1683
      %v1700 = vadd.f32 %v1651, %v1684
      %v1701 = vadd.f32 %v1652, %v1685
      %v1702 = vadd.f32 %v1653, %v1686
      %v1703 = vadd.f32 %v1654, %v1687
      %v1704 = vadd.f32 %v1655, %v1688
      %v1705 = vadd.f32 %v1656, %v1689
      %v1706 = vadd.f32 %v1657, %v1690
      %v1707 = vadd.f32 %v1658, %v1691
      %s1708 = scalar_lea.vmem %s4, 1792
      %v1709 = vld [vmem:[%s1708] sm:$0xff]
      %v1710 = vld [vmem:[%s1708 + $0x8] sm:$0xff]
      %v1711 = vld [vmem:[%s1708 + $0x10] sm:$0xff]
      %v1712 = vld [vmem:[%s1708 + $0x18] sm:$0xff]
      %v1713 = vld [vmem:[%s1708 + $0x20] sm:$0xff]
      %v1714 = vld [vmem:[%s1708 + $0x28] sm:$0xff]
      %v1715 = vld [vmem:[%s1708 + $0x30] sm:$0xff]
      %v1716 = vld [vmem:[%s1708 + $0x38] sm:$0xff]
      %v1717 = vld [vmem:[%s1708 + $0x40] sm:$0xff]
      %v1718 = vld [vmem:[%s1708 + $0x48] sm:$0xff]
      %v1719 = vld [vmem:[%s1708 + $0x50] sm:$0xff]
      %v1720 = vld [vmem:[%s1708 + $0x58] sm:$0xff]
      %v1721 = vld [vmem:[%s1708 + $0x60] sm:$0xff]
      %v1722 = vld [vmem:[%s1708 + $0x68] sm:$0xff]
      %v1723 = vld [vmem:[%s1708 + $0x70] sm:$0xff]
      %v1724 = vld [vmem:[%s1708 + $0x78] sm:$0xff]
      %v1725 = vmul.f32 %v893, %v1709
      %v1726 = vmul.f32 %v892, %v1710
      %v1727 = vmul.f32 %v891, %v1711
      %v1728 = vmul.f32 %v890, %v1712
      %v1729 = vmul.f32 %v889, %v1713
      %v1730 = vmul.f32 %v888, %v1714
      %v1731 = vmul.f32 %v887, %v1715
      %v1732 = vmul.f32 %v886, %v1716
      %v1733 = vmul.f32 %v885, %v1717
      %v1734 = vmul.f32 %v884, %v1718
      %v1735 = vmul.f32 %v883, %v1719
      %v1736 = vmul.f32 %v882, %v1720
      %v1737 = vmul.f32 %v881, %v1721
      %v1738 = vmul.f32 %v880, %v1722
      %v1739 = vmul.f32 %v879, %v1723
      %v1740 = vmul.f32 %v894, %v1724
      %v1741 = vadd.f32 %v1692, %v1725
      %v1742 = vadd.f32 %v1693, %v1726
      %v1743 = vadd.f32 %v1694, %v1727
      %v1744 = vadd.f32 %v1695, %v1728
      %v1745 = vadd.f32 %v1696, %v1729
      %v1746 = vadd.f32 %v1697, %v1730
      %v1747 = vadd.f32 %v1698, %v1731
      %v1748 = vadd.f32 %v1699, %v1732
      %v1749 = vadd.f32 %v1700, %v1733
      %v1750 = vadd.f32 %v1701, %v1734
      %v1751 = vadd.f32 %v1702, %v1735
      %v1752 = vadd.f32 %v1703, %v1736
      %v1753 = vadd.f32 %v1704, %v1737
      %v1754 = vadd.f32 %v1705, %v1738
      %v1755 = vadd.f32 %v1706, %v1739
      %v1756 = vadd.f32 %v1707, %v1740
      %s1757 = scalar_lea.vmem %s4, 1920
      %v1758 = vld [vmem:[%s1757] sm:$0xff]
      %v1759 = vld [vmem:[%s1757 + $0x8] sm:$0xff]
      %v1760 = vld [vmem:[%s1757 + $0x10] sm:$0xff]
      %v1761 = vld [vmem:[%s1757 + $0x18] sm:$0xff]
      %v1762 = vld [vmem:[%s1757 + $0x20] sm:$0xff]
      %v1763 = vld [vmem:[%s1757 + $0x28] sm:$0xff]
      %v1764 = vld [vmem:[%s1757 + $0x30] sm:$0xff]
      %v1765 = vld [vmem:[%s1757 + $0x38] sm:$0xff]
      %v1766 = vld [vmem:[%s1757 + $0x40] sm:$0xff]
      %v1767 = vld [vmem:[%s1757 + $0x48] sm:$0xff]
      %v1768 = vld [vmem:[%s1757 + $0x50] sm:$0xff]
      %v1769 = vld [vmem:[%s1757 + $0x58] sm:$0xff]
      %v1770 = vld [vmem:[%s1757 + $0x60] sm:$0xff]
      %v1771 = vld [vmem:[%s1757 + $0x68] sm:$0xff]
      %v1772 = vld [vmem:[%s1757 + $0x70] sm:$0xff]
      %v1773 = vld [vmem:[%s1757 + $0x78] sm:$0xff]
      %v1774 = vmul.f32 %v763, %v1758
      %v1775 = vmul.f32 %v762, %v1759
      %v1776 = vmul.f32 %v761, %v1760
      %v1777 = vmul.f32 %v760, %v1761
      %v1778 = vmul.f32 %v759, %v1762
      %v1779 = vmul.f32 %v758, %v1763
      %v1780 = vmul.f32 %v757, %v1764
      %v1781 = vmul.f32 %v756, %v1765
      %v1782 = vmul.f32 %v755, %v1766
      %v1783 = vmul.f32 %v754, %v1767
      %v1784 = vmul.f32 %v753, %v1768
      %v1785 = vmul.f32 %v752, %v1769
      %v1786 = vmul.f32 %v751, %v1770
      %v1787 = vmul.f32 %v750, %v1771
      %v1788 = vmul.f32 %v749, %v1772
      %v1789 = vmul.f32 %v764, %v1773
      %v1790 = vadd.f32 %v1741, %v1774
      %v1791 = vadd.f32 %v1742, %v1775
      %v1792 = vadd.f32 %v1743, %v1776
      %v1793 = vadd.f32 %v1744, %v1777
      %v1794 = vadd.f32 %v1745, %v1778
      %v1795 = vadd.f32 %v1746, %v1779
      %v1796 = vadd.f32 %v1747, %v1780
      %v1797 = vadd.f32 %v1748, %v1781
      %v1798 = vadd.f32 %v1749, %v1782
      %v1799 = vadd.f32 %v1750, %v1783
      %v1800 = vadd.f32 %v1751, %v1784
      %v1801 = vadd.f32 %v1752, %v1785
      %v1802 = vadd.f32 %v1753, %v1786
      %v1803 = vadd.f32 %v1754, %v1787
      %v1804 = vadd.f32 %v1755, %v1788
      %v1805 = vadd.f32 %v1756, %v1789
      %s1806 = scalar_lea.vmem %s4, 2048
      %v1807 = vld [vmem:[%s1806] sm:$0xff]
      %v1808 = vld [vmem:[%s1806 + $0x8] sm:$0xff]
      %v1809 = vld [vmem:[%s1806 + $0x10] sm:$0xff]
      %v1810 = vld [vmem:[%s1806 + $0x18] sm:$0xff]
      %v1811 = vld [vmem:[%s1806 + $0x20] sm:$0xff]
      %v1812 = vld [vmem:[%s1806 + $0x28] sm:$0xff]
      %v1813 = vld [vmem:[%s1806 + $0x30] sm:$0xff]
      %v1814 = vld [vmem:[%s1806 + $0x38] sm:$0xff]
      %v1815 = vld [vmem:[%s1806 + $0x40] sm:$0xff]
      %v1816 = vld [vmem:[%s1806 + $0x48] sm:$0xff]
      %v1817 = vld [vmem:[%s1806 + $0x50] sm:$0xff]
      %v1818 = vld [vmem:[%s1806 + $0x58] sm:$0xff]
      %v1819 = vld [vmem:[%s1806 + $0x60] sm:$0xff]
      %v1820 = vld [vmem:[%s1806 + $0x68] sm:$0xff]
      %v1821 = vld [vmem:[%s1806 + $0x70] sm:$0xff]
      %v1822 = vld [vmem:[%s1806 + $0x78] sm:$0xff]
      %v1823 = vmul.f32 %v595, %v1807
      %v1824 = vmul.f32 %v596, %v1808
      %v1825 = vmul.f32 %v597, %v1809
      %v1826 = vmul.f32 %v598, %v1810
      %v1827 = vmul.f32 %v599, %v1811
      %v1828 = vmul.f32 %v600, %v1812
      %v1829 = vmul.f32 %v601, %v1813
      %v1830 = vmul.f32 %v689, %v1814
      %v1831 = vmul.f32 %v690, %v1815
      %v1832 = vmul.f32 %v691, %v1816
      %v1833 = vmul.f32 %v692, %v1817
      %v1834 = vmul.f32 %v693, %v1818
      %v1835 = vmul.f32 %v694, %v1819
      %v1836 = vmul.f32 %v695, %v1820
      %v1837 = vmul.f32 %v696, %v1821
      %v1838 = vmul.f32 %v594, %v1822
      %v1839 = vadd.f32 %v1790, %v1823
      %v1840 = vadd.f32 %v1791, %v1824
      %v1841 = vadd.f32 %v1792, %v1825
      %v1842 = vadd.f32 %v1793, %v1826
      %v1843 = vadd.f32 %v1794, %v1827
      %v1844 = vadd.f32 %v1795, %v1828
      %v1845 = vadd.f32 %v1796, %v1829
      %v1846 = vadd.f32 %v1797, %v1830
      %v1847 = vadd.f32 %v1798, %v1831
      %v1848 = vadd.f32 %v1799, %v1832
      %v1849 = vadd.f32 %v1800, %v1833
      %v1850 = vadd.f32 %v1801, %v1834
      %v1851 = vadd.f32 %v1802, %v1835
      %v1852 = vadd.f32 %v1803, %v1836
      %v1853 = vadd.f32 %v1804, %v1837
      %v1854 = vadd.f32 %v1805, %v1838
      %s1855 = scalar_lea.vmem %s4, 2176
      %v1856 = vld [vmem:[%s1855] sm:$0xff]
      %v1857 = vld [vmem:[%s1855 + $0x8] sm:$0xff]
      %v1858 = vld [vmem:[%s1855 + $0x10] sm:$0xff]
      %v1859 = vld [vmem:[%s1855 + $0x18] sm:$0xff]
      %v1860 = vld [vmem:[%s1855 + $0x20] sm:$0xff]
      %v1861 = vld [vmem:[%s1855 + $0x28] sm:$0xff]
      %v1862 = vld [vmem:[%s1855 + $0x30] sm:$0xff]
      %v1863 = vld [vmem:[%s1855 + $0x38] sm:$0xff]
      %v1864 = vld [vmem:[%s1855 + $0x40] sm:$0xff]
      %v1865 = vld [vmem:[%s1855 + $0x48] sm:$0xff]
      %v1866 = vld [vmem:[%s1855 + $0x50] sm:$0xff]
      %v1867 = vld [vmem:[%s1855 + $0x58] sm:$0xff]
      %v1868 = vld [vmem:[%s1855 + $0x60] sm:$0xff]
      %v1869 = vld [vmem:[%s1855 + $0x68] sm:$0xff]
      %v1870 = vld [vmem:[%s1855 + $0x70] sm:$0xff]
      %v1871 = vld [vmem:[%s1855 + $0x78] sm:$0xff]
      %v1872 = vmul.f32 %v892, %v1856
      %v1873 = vmul.f32 %v891, %v1857
      %v1874 = vmul.f32 %v890, %v1858
      %v1875 = vmul.f32 %v889, %v1859
      %v1876 = vmul.f32 %v888, %v1860
      %v1877 = vmul.f32 %v887, %v1861
      %v1878 = vmul.f32 %v886, %v1862
      %v1879 = vmul.f32 %v885, %v1863
      %v1880 = vmul.f32 %v884, %v1864
      %v1881 = vmul.f32 %v883, %v1865
      %v1882 = vmul.f32 %v882, %v1866
      %v1883 = vmul.f32 %v881, %v1867
      %v1884 = vmul.f32 %v880, %v1868
      %v1885 = vmul.f32 %v879, %v1869
      %v1886 = vmul.f32 %v894, %v1870
      %v1887 = vmul.f32 %v893, %v1871
      %v1888 = vadd.f32 %v1839, %v1872
      %v1889 = vadd.f32 %v1840, %v1873
      %v1890 = vadd.f32 %v1841, %v1874
      %v1891 = vadd.f32 %v1842, %v1875
      %v1892 = vadd.f32 %v1843, %v1876
      %v1893 = vadd.f32 %v1844, %v1877
      %v1894 = vadd.f32 %v1845, %v1878
      %v1895 = vadd.f32 %v1846, %v1879
      %v1896 = vadd.f32 %v1847, %v1880
      %v1897 = vadd.f32 %v1848, %v1881
      %v1898 = vadd.f32 %v1849, %v1882
      %v1899 = vadd.f32 %v1850, %v1883
      %v1900 = vadd.f32 %v1851, %v1884
      %v1901 = vadd.f32 %v1852, %v1885
      %v1902 = vadd.f32 %v1853, %v1886
      %v1903 = vadd.f32 %v1854, %v1887
      %s1904 = scalar_lea.vmem %s5, 1
      %v1905 = vld [vmem:[%s1904] sm:$0x1]
      %s1906 = scalar_lea.vmem %s6, 1
      %v1907 = vld [vmem:[%s1906] sm:$0x1]
      %v1908 = vsel %vm377, %v1888, 0.0
      %v1909 = vsel %vm377, %v1889, 0.0
      %v1910 = vadd.f32 %v1908, %v1909
      %v1911 = vsel %vm377, %v1890, 0.0
      %v1912 = vadd.f32 %v1910, %v1911
      %v1913 = vsel %vm377, %v1891, 0.0
      %v1914 = vadd.f32 %v1912, %v1913
      %v1915 = vsel %vm377, %v1892, 0.0
      %v1916 = vadd.f32 %v1914, %v1915
      %v1917 = vsel %vm377, %v1893, 0.0
      %v1918 = vadd.f32 %v1916, %v1917
      %v1919 = vsel %vm377, %v1894, 0.0
      %v1920 = vadd.f32 %v1918, %v1919
      %v1921 = vsel %vm377, %v1895, 0.0
      %v1922 = vadd.f32 %v1920, %v1921
      %1923 = vadd.xlane.f32.xlu0 %v1922
      %v1924 = vpop.xlane.xlu0 %1923
      %v1925 = vrot.slane %v1924, 4
      %v1926 = vadd.f32 %v1924, %v1925
      %v1927 = vrot.slane %v1926, 2
      %v1928 = vadd.f32 %v1926, %v1927
      %v1929 = vrot.slane %v1928, 1
      %v1930 = vadd.f32 %v1928, %v1929
      %s1931 = vtos %v1930
      %s1932 = smul.f32 %s1931, 0.00048828125
      %v1933 = vstv %s1932
      %v1934 = vsub.f32 %v1888, %v1933
      %v1935 = vsub.f32 %v1889, %v1933
      %v1936 = vsub.f32 %v1890, %v1933
      %v1937 = vsub.f32 %v1891, %v1933
      %v1938 = vsub.f32 %v1892, %v1933
      %v1939 = vsub.f32 %v1893, %v1933
      %v1940 = vsub.f32 %v1894, %v1933
      %v1941 = vsub.f32 %v1895, %v1933
      %v1942 = vmul.f32 %v1934, %v1934
      %v1943 = vmul.f32 %v1935, %v1935
      %v1944 = vmul.f32 %v1936, %v1936
      %v1945 = vmul.f32 %v1937, %v1937
      %v1946 = vmul.f32 %v1938, %v1938
      %v1947 = vmul.f32 %v1939, %v1939
      %v1948 = vmul.f32 %v1940, %v1940
      %v1949 = vmul.f32 %v1941, %v1941
      %v1950 = vsel %vm377, %v1942, 0.0
      %v1951 = vsel %vm377, %v1943, 0.0
      %v1952 = vadd.f32 %v1950, %v1951
      %v1953 = vsel %vm377, %v1944, 0.0
      %v1954 = vadd.f32 %v1952, %v1953
      %v1955 = vsel %vm377, %v1945, 0.0
      %v1956 = vadd.f32 %v1954, %v1955
      %v1957 = vsel %vm377, %v1946, 0.0
      %v1958 = vadd.f32 %v1956, %v1957
      %v1959 = vsel %vm377, %v1947, 0.0
      %v1960 = vadd.f32 %v1958, %v1959
      %v1961 = vsel %vm377, %v1948, 0.0
      %v1962 = vadd.f32 %v1960, %v1961
      %v1963 = vsel %vm377, %v1949, 0.0
      %v1964 = vadd.f32 %v1962, %v1963
      %1965 = vadd.xlane.f32.xlu0 %v1964
      %v1966 = vpop.xlane.xlu0 %1965
      %v1967 = vrot.slane %v1966, 4
      %v1968 = vadd.f32 %v1966, %v1967
      %v1969 = vrot.slane %v1968, 2
      %v1970 = vadd.f32 %v1968, %v1969
      %v1971 = vrot.slane %v1970, 1
      %v1972 = vadd.f32 %v1970, %v1971
      %s1973 = vtos %v1972
      %s1974 = smul.f32 %s1973, 0.00048828125
      %s1975 = sadd.f32 %s1974, 1e-05
      %v1976 = vstv %s1975
      %v1977 = vrsqrt.pop %v1976
      %s1978 = vtos %v1977
      %v1979 = vstv %s1978
      %v1980 = vmul.f32 %v1905, %v1979
      %v1982 = vlaneseq
      %v1983 = vshrl.u32 %v1982, 7
      %v1984 = vsub.s32 0, %v1983
      %v1985 = vrot.slane %v1980, %v1984
      %v1987 = vmul.f32 %v1934, %v1985
      %v1988 = vmul.f32 %v1935, %v1985
      %v1989 = vmul.f32 %v1936, %v1985
      %v1990 = vmul.f32 %v1937, %v1985
      %v1991 = vmul.f32 %v1938, %v1985
      %v1992 = vmul.f32 %v1939, %v1985
      %v1993 = vmul.f32 %v1940, %v1985
      %v1994 = vmul.f32 %v1941, %v1985
      %v1996 = vlaneseq
      %v1997 = vshrl.u32 %v1996, 7
      %v1998 = vsub.s32 0, %v1997
      %v1999 = vrot.slane %v1907, %v1998
      %v2001 = vadd.f32 %v1987, %v1999
      %v2002 = vadd.f32 %v1988, %v1999
      %v2003 = vadd.f32 %v1989, %v1999
      %v2004 = vadd.f32 %v1990, %v1999
      %v2005 = vadd.f32 %v1991, %v1999
      %v2006 = vadd.f32 %v1992, %v1999
      %v2007 = vadd.f32 %v1993, %v1999
      %v2008 = vadd.f32 %v1994, %v1999
      %v2009 = vsel %vm377, %v1896, 0.0
      %v2010 = vsel %vm377, %v1897, 0.0
      %v2011 = vadd.f32 %v2009, %v2010
      %v2012 = vsel %vm377, %v1898, 0.0
      %v2013 = vadd.f32 %v2011, %v2012
      %v2014 = vsel %vm377, %v1899, 0.0
      %v2015 = vadd.f32 %v2013, %v2014
      %v2016 = vsel %vm377, %v1900, 0.0
      %v2017 = vadd.f32 %v2015, %v2016
      %v2018 = vsel %vm377, %v1901, 0.0
      %v2019 = vadd.f32 %v2017, %v2018
      %v2020 = vsel %vm377, %v1902, 0.0
      %v2021 = vadd.f32 %v2019, %v2020
      %v2022 = vsel %vm377, %v1903, 0.0
      %v2023 = vadd.f32 %v2021, %v2022
      %2024 = vadd.xlane.f32.xlu0 %v2023
      %v2025 = vpop.xlane.xlu0 %2024
      %v2026 = vrot.slane %v2025, 4
      %v2027 = vadd.f32 %v2025, %v2026
      %v2028 = vrot.slane %v2027, 2
      %v2029 = vadd.f32 %v2027, %v2028
      %v2030 = vrot.slane %v2029, 1
      %v2031 = vadd.f32 %v2029, %v2030
      %s2032 = vtos %v2031
      %s2033 = smul.f32 %s2032, 0.00048828125
      %v2034 = vstv %s2033
      %v2035 = vsub.f32 %v1896, %v2034
      %v2036 = vsub.f32 %v1897, %v2034
      %v2037 = vsub.f32 %v1898, %v2034
      %v2038 = vsub.f32 %v1899, %v2034
      %v2039 = vsub.f32 %v1900, %v2034
      %v2040 = vsub.f32 %v1901, %v2034
      %v2041 = vsub.f32 %v1902, %v2034
      %v2042 = vsub.f32 %v1903, %v2034
      %v2043 = vmul.f32 %v2035, %v2035
      %v2044 = vmul.f32 %v2036, %v2036
      %v2045 = vmul.f32 %v2037, %v2037
      %v2046 = vmul.f32 %v2038, %v2038
      %v2047 = vmul.f32 %v2039, %v2039
      %v2048 = vmul.f32 %v2040, %v2040
      %v2049 = vmul.f32 %v2041, %v2041
      %v2050 = vmul.f32 %v2042, %v2042
      %v2051 = vsel %vm377, %v2043, 0.0
      %v2052 = vsel %vm377, %v2044, 0.0
      %v2053 = vadd.f32 %v2051, %v2052
      %v2054 = vsel %vm377, %v2045, 0.0
      %v2055 = vadd.f32 %v2053, %v2054
      %v2056 = vsel %vm377, %v2046, 0.0
      %v2057 = vadd.f32 %v2055, %v2056
      %v2058 = vsel %vm377, %v2047, 0.0
      %v2059 = vadd.f32 %v2057, %v2058
      %v2060 = vsel %vm377, %v2048, 0.0
      %v2061 = vadd.f32 %v2059, %v2060
      %v2062 = vsel %vm377, %v2049, 0.0
      %v2063 = vadd.f32 %v2061, %v2062
      %v2064 = vsel %vm377, %v2050, 0.0
      %v2065 = vadd.f32 %v2063, %v2064
      %2066 = vadd.xlane.f32.xlu0 %v2065
      %v2067 = vpop.xlane.xlu0 %2066
      %v2068 = vrot.slane %v2067, 4
      %v2069 = vadd.f32 %v2067, %v2068
      %v2070 = vrot.slane %v2069, 2
      %v2071 = vadd.f32 %v2069, %v2070
      %v2072 = vrot.slane %v2071, 1
      %v2073 = vadd.f32 %v2071, %v2072
      %s2074 = vtos %v2073
      %s2075 = smul.f32 %s2074, 0.00048828125
      %s2076 = sadd.f32 %s2075, 1e-05
      %v2077 = vstv %s2076
      %v2078 = vrsqrt.pop %v2077
      %s2079 = vtos %v2078
      %v2080 = vstv %s2079
      %v2081 = vmul.f32 %v1905, %v2080
      %v2083 = vlaneseq
      %v2084 = vshrl.u32 %v2083, 7
      %v2085 = vsub.s32 0, %v2084
      %v2086 = vrot.slane %v2081, %v2085
      %v2088 = vmul.f32 %v2035, %v2086
      %v2089 = vmul.f32 %v2036, %v2086
      %v2090 = vmul.f32 %v2037, %v2086
      %v2091 = vmul.f32 %v2038, %v2086
      %v2092 = vmul.f32 %v2039, %v2086
      %v2093 = vmul.f32 %v2040, %v2086
      %v2094 = vmul.f32 %v2041, %v2086
      %v2095 = vmul.f32 %v2042, %v2086
      %v2096 = vadd.f32 %v2088, %v1999
      %v2097 = vadd.f32 %v2089, %v1999
      %v2098 = vadd.f32 %v2090, %v1999
      %v2099 = vadd.f32 %v2091, %v1999
      %v2100 = vadd.f32 %v2092, %v1999
      %v2101 = vadd.f32 %v2093, %v1999
      %v2102 = vadd.f32 %v2094, %v1999
      %v2103 = vadd.f32 %v2095, %v1999
      %s2104 = scalar_lea.vmem %s4, 2816
      %v2105 = vld [vmem:[%s2104] sm:$0xff]
      %v2106 = vld [vmem:[%s2104 + $0x8] sm:$0xff]
      %v2107 = vld [vmem:[%s2104 + $0x10] sm:$0xff]
      %v2108 = vld [vmem:[%s2104 + $0x18] sm:$0xff]
      %v2109 = vld [vmem:[%s2104 + $0x20] sm:$0xff]
      %v2110 = vld [vmem:[%s2104 + $0x28] sm:$0xff]
      %v2111 = vld [vmem:[%s2104 + $0x30] sm:$0xff]
      %v2112 = vld [vmem:[%s2104 + $0x38] sm:$0xff]
      %v2113 = vld [vmem:[%s2104 + $0x40] sm:$0xff]
      %v2114 = vld [vmem:[%s2104 + $0x48] sm:$0xff]
      %v2115 = vld [vmem:[%s2104 + $0x50] sm:$0xff]
      %v2116 = vld [vmem:[%s2104 + $0x58] sm:$0xff]
      %v2117 = vld [vmem:[%s2104 + $0x60] sm:$0xff]
      %v2118 = vld [vmem:[%s2104 + $0x68] sm:$0xff]
      %v2119 = vld [vmem:[%s2104 + $0x70] sm:$0xff]
      %v2120 = vld [vmem:[%s2104 + $0x78] sm:$0xff]
      %v2121 = vmul.f32 %v2001, %v2105
      %v2122 = vmul.f32 %v2002, %v2106
      %v2123 = vmul.f32 %v2003, %v2107
      %v2124 = vmul.f32 %v2004, %v2108
      %v2125 = vmul.f32 %v2005, %v2109
      %v2126 = vmul.f32 %v2006, %v2110
      %v2127 = vmul.f32 %v2007, %v2111
      %v2128 = vmul.f32 %v2008, %v2112
      %v2129 = vmul.f32 %v2096, %v2113
      %v2130 = vmul.f32 %v2097, %v2114
      %v2131 = vmul.f32 %v2098, %v2115
      %v2132 = vmul.f32 %v2099, %v2116
      %v2133 = vmul.f32 %v2100, %v2117
      %v2134 = vmul.f32 %v2101, %v2118
      %v2135 = vmul.f32 %v2102, %v2119
      %v2136 = vmul.f32 %v2103, %v2120
      %v2137 = vrot.slane %v2001, 7
      %v2138 = vrot.slane %v2002, 7
      %v2139 = vrot.slane %v2003, 7
      %v2140 = vrot.slane %v2004, 7
      %v2141 = vrot.slane %v2005, 7
      %v2142 = vrot.slane %v2006, 7
      %v2143 = vrot.slane %v2007, 7
      %v2144 = vrot.slane %v2008, 7
      %v2145 = vrot.slane %v2096, 7
      %v2146 = vrot.slane %v2097, 7
      %v2147 = vrot.slane %v2098, 7
      %v2148 = vrot.slane %v2099, 7
      %v2149 = vrot.slane %v2100, 7
      %v2150 = vrot.slane %v2101, 7
      %v2151 = vrot.slane %v2102, 7
      %v2152 = vrot.slane %v2103, 7
      %v2153 = vsel %vm748, %v2151, %v2152
      %v2154 = vsel %vm748, %v2150, %v2151
      %v2155 = vsel %vm748, %v2149, %v2150
      %v2156 = vsel %vm748, %v2148, %v2149
      %v2157 = vsel %vm748, %v2147, %v2148
      %v2158 = vsel %vm748, %v2146, %v2147
      %v2159 = vsel %vm748, %v2145, %v2146
      %v2160 = vsel %vm748, %v2144, %v2145
      %v2161 = vsel %vm748, %v2143, %v2144
      %v2162 = vsel %vm748, %v2142, %v2143
      %v2163 = vsel %vm748, %v2141, %v2142
      %v2164 = vsel %vm748, %v2140, %v2141
      %v2165 = vsel %vm748, %v2139, %v2140
      %v2166 = vsel %vm748, %v2138, %v2139
      %v2167 = vsel %vm748, %v2137, %v2138
      %v2168 = vsel %vm748, %v2152, %v2137
      %s2169 = scalar_lea.vmem %s4, 2304
      %v2170 = vld [vmem:[%s2169] sm:$0xff]
      %v2171 = vld [vmem:[%s2169 + $0x8] sm:$0xff]
      %v2172 = vld [vmem:[%s2169 + $0x10] sm:$0xff]
      %v2173 = vld [vmem:[%s2169 + $0x18] sm:$0xff]
      %v2174 = vld [vmem:[%s2169 + $0x20] sm:$0xff]
      %v2175 = vld [vmem:[%s2169 + $0x28] sm:$0xff]
      %v2176 = vld [vmem:[%s2169 + $0x30] sm:$0xff]
      %v2177 = vld [vmem:[%s2169 + $0x38] sm:$0xff]
      %v2178 = vld [vmem:[%s2169 + $0x40] sm:$0xff]
      %v2179 = vld [vmem:[%s2169 + $0x48] sm:$0xff]
      %v2180 = vld [vmem:[%s2169 + $0x50] sm:$0xff]
      %v2181 = vld [vmem:[%s2169 + $0x58] sm:$0xff]
      %v2182 = vld [vmem:[%s2169 + $0x60] sm:$0xff]
      %v2183 = vld [vmem:[%s2169 + $0x68] sm:$0xff]
      %v2184 = vld [vmem:[%s2169 + $0x70] sm:$0xff]
      %v2185 = vld [vmem:[%s2169 + $0x78] sm:$0xff]
      %v2186 = vmul.f32 %v2153, %v2170
      %v2187 = vmul.f32 %v2168, %v2171
      %v2188 = vmul.f32 %v2167, %v2172
      %v2189 = vmul.f32 %v2166, %v2173
      %v2190 = vmul.f32 %v2165, %v2174
      %v2191 = vmul.f32 %v2164, %v2175
      %v2192 = vmul.f32 %v2163, %v2176
      %v2193 = vmul.f32 %v2162, %v2177
      %v2194 = vmul.f32 %v2161, %v2178
      %v2195 = vmul.f32 %v2160, %v2179
      %v2196 = vmul.f32 %v2159, %v2180
      %v2197 = vmul.f32 %v2158, %v2181
      %v2198 = vmul.f32 %v2157, %v2182
      %v2199 = vmul.f32 %v2156, %v2183
      %v2200 = vmul.f32 %v2155, %v2184
      %v2201 = vmul.f32 %v2154, %v2185
      %v2202 = vadd.f32 %v2121, %v2186
      %v2203 = vadd.f32 %v2122, %v2187
      %v2204 = vadd.f32 %v2123, %v2188
      %v2205 = vadd.f32 %v2124, %v2189
      %v2206 = vadd.f32 %v2125, %v2190
      %v2207 = vadd.f32 %v2126, %v2191
      %v2208 = vadd.f32 %v2127, %v2192
      %v2209 = vadd.f32 %v2128, %v2193
      %v2210 = vadd.f32 %v2129, %v2194
      %v2211 = vadd.f32 %v2130, %v2195
      %v2212 = vadd.f32 %v2131, %v2196
      %v2213 = vadd.f32 %v2132, %v2197
      %v2214 = vadd.f32 %v2133, %v2198
      %v2215 = vadd.f32 %v2134, %v2199
      %v2216 = vadd.f32 %v2135, %v2200
      %v2217 = vadd.f32 %v2136, %v2201
      %s2218 = scalar_lea.vmem %s4, 2432
      %v2219 = vld [vmem:[%s2218] sm:$0xff]
      %v2220 = vld [vmem:[%s2218 + $0x8] sm:$0xff]
      %v2221 = vld [vmem:[%s2218 + $0x10] sm:$0xff]
      %v2222 = vld [vmem:[%s2218 + $0x18] sm:$0xff]
      %v2223 = vld [vmem:[%s2218 + $0x20] sm:$0xff]
      %v2224 = vld [vmem:[%s2218 + $0x28] sm:$0xff]
      %v2225 = vld [vmem:[%s2218 + $0x30] sm:$0xff]
      %v2226 = vld [vmem:[%s2218 + $0x38] sm:$0xff]
      %v2227 = vld [vmem:[%s2218 + $0x40] sm:$0xff]
      %v2228 = vld [vmem:[%s2218 + $0x48] sm:$0xff]
      %v2229 = vld [vmem:[%s2218 + $0x50] sm:$0xff]
      %v2230 = vld [vmem:[%s2218 + $0x58] sm:$0xff]
      %v2231 = vld [vmem:[%s2218 + $0x60] sm:$0xff]
      %v2232 = vld [vmem:[%s2218 + $0x68] sm:$0xff]
      %v2233 = vld [vmem:[%s2218 + $0x70] sm:$0xff]
      %v2234 = vld [vmem:[%s2218 + $0x78] sm:$0xff]
      %v2235 = vmul.f32 %v2103, %v2219
      %v2236 = vmul.f32 %v2001, %v2220
      %v2237 = vmul.f32 %v2002, %v2221
      %v2238 = vmul.f32 %v2003, %v2222
      %v2239 = vmul.f32 %v2004, %v2223
      %v2240 = vmul.f32 %v2005, %v2224
      %v2241 = vmul.f32 %v2006, %v2225
      %v2242 = vmul.f32 %v2007, %v2226
      %v2243 = vmul.f32 %v2008, %v2227
      %v2244 = vmul.f32 %v2096, %v2228
      %v2245 = vmul.f32 %v2097, %v2229
      %v2246 = vmul.f32 %v2098, %v2230
      %v2247 = vmul.f32 %v2099, %v2231
      %v2248 = vmul.f32 %v2100, %v2232
      %v2249 = vmul.f32 %v2101, %v2233
      %v2250 = vmul.f32 %v2102, %v2234
      %v2251 = vadd.f32 %v2202, %v2235
      %v2252 = vadd.f32 %v2203, %v2236
      %v2253 = vadd.f32 %v2204, %v2237
      %v2254 = vadd.f32 %v2205, %v2238
      %v2255 = vadd.f32 %v2206, %v2239
      %v2256 = vadd.f32 %v2207, %v2240
      %v2257 = vadd.f32 %v2208, %v2241
      %v2258 = vadd.f32 %v2209, %v2242
      %v2259 = vadd.f32 %v2210, %v2243
      %v2260 = vadd.f32 %v2211, %v2244
      %v2261 = vadd.f32 %v2212, %v2245
      %v2262 = vadd.f32 %v2213, %v2246
      %v2263 = vadd.f32 %v2214, %v2247
      %v2264 = vadd.f32 %v2215, %v2248
      %v2265 = vadd.f32 %v2216, %v2249
      %v2266 = vadd.f32 %v2217, %v2250
      %v2267 = vrot.slane %v2001, 1
      %v2268 = vrot.slane %v2002, 1
      %v2269 = vrot.slane %v2003, 1
      %v2270 = vrot.slane %v2004, 1
      %v2271 = vrot.slane %v2005, 1
      %v2272 = vrot.slane %v2006, 1
      %v2273 = vrot.slane %v2007, 1
      %v2274 = vrot.slane %v2008, 1
      %v2275 = vrot.slane %v2096, 1
      %v2276 = vrot.slane %v2097, 1
      %v2277 = vrot.slane %v2098, 1
      %v2278 = vrot.slane %v2099, 1
      %v2279 = vrot.slane %v2100, 1
      %v2280 = vrot.slane %v2101, 1
      %v2281 = vrot.slane %v2102, 1
      %v2282 = vrot.slane %v2103, 1
      %v2283 = vsel %vm878, %v2281, %v2282
      %v2284 = vsel %vm878, %v2280, %v2281
      %v2285 = vsel %vm878, %v2279, %v2280
      %v2286 = vsel %vm878, %v2278, %v2279
      %v2287 = vsel %vm878, %v2277, %v2278
      %v2288 = vsel %vm878, %v2276, %v2277
      %v2289 = vsel %vm878, %v2275, %v2276
      %v2290 = vsel %vm878, %v2274, %v2275
      %v2291 = vsel %vm878, %v2273, %v2274
      %v2292 = vsel %vm878, %v2272, %v2273
      %v2293 = vsel %vm878, %v2271, %v2272
      %v2294 = vsel %vm878, %v2270, %v2271
      %v2295 = vsel %vm878, %v2269, %v2270
      %v2296 = vsel %vm878, %v2268, %v2269
      %v2297 = vsel %vm878, %v2267, %v2268
      %v2298 = vsel %vm878, %v2282, %v2267
      %s2299 = scalar_lea.vmem %s4, 2560
      %v2300 = vld [vmem:[%s2299] sm:$0xff]
      %v2301 = vld [vmem:[%s2299 + $0x8] sm:$0xff]
      %v2302 = vld [vmem:[%s2299 + $0x10] sm:$0xff]
      %v2303 = vld [vmem:[%s2299 + $0x18] sm:$0xff]
      %v2304 = vld [vmem:[%s2299 + $0x20] sm:$0xff]
      %v2305 = vld [vmem:[%s2299 + $0x28] sm:$0xff]
      %v2306 = vld [vmem:[%s2299 + $0x30] sm:$0xff]
      %v2307 = vld [vmem:[%s2299 + $0x38] sm:$0xff]
      %v2308 = vld [vmem:[%s2299 + $0x40] sm:$0xff]
      %v2309 = vld [vmem:[%s2299 + $0x48] sm:$0xff]
      %v2310 = vld [vmem:[%s2299 + $0x50] sm:$0xff]
      %v2311 = vld [vmem:[%s2299 + $0x58] sm:$0xff]
      %v2312 = vld [vmem:[%s2299 + $0x60] sm:$0xff]
      %v2313 = vld [vmem:[%s2299 + $0x68] sm:$0xff]
      %v2314 = vld [vmem:[%s2299 + $0x70] sm:$0xff]
      %v2315 = vld [vmem:[%s2299 + $0x78] sm:$0xff]
      %v2316 = vmul.f32 %v2298, %v2300
      %v2317 = vmul.f32 %v2297, %v2301
      %v2318 = vmul.f32 %v2296, %v2302
      %v2319 = vmul.f32 %v2295, %v2303
      %v2320 = vmul.f32 %v2294, %v2304
      %v2321 = vmul.f32 %v2293, %v2305
      %v2322 = vmul.f32 %v2292, %v2306
      %v2323 = vmul.f32 %v2291, %v2307
      %v2324 = vmul.f32 %v2290, %v2308
      %v2325 = vmul.f32 %v2289, %v2309
      %v2326 = vmul.f32 %v2288, %v2310
      %v2327 = vmul.f32 %v2287, %v2311
      %v2328 = vmul.f32 %v2286, %v2312
      %v2329 = vmul.f32 %v2285, %v2313
      %v2330 = vmul.f32 %v2284, %v2314
      %v2331 = vmul.f32 %v2283, %v2315
      %v2332 = vadd.f32 %v2251, %v2316
      %v2333 = vadd.f32 %v2252, %v2317
      %v2334 = vadd.f32 %v2253, %v2318
      %v2335 = vadd.f32 %v2254, %v2319
      %v2336 = vadd.f32 %v2255, %v2320
      %v2337 = vadd.f32 %v2256, %v2321
      %v2338 = vadd.f32 %v2257, %v2322
      %v2339 = vadd.f32 %v2258, %v2323
      %v2340 = vadd.f32 %v2259, %v2324
      %v2341 = vadd.f32 %v2260, %v2325
      %v2342 = vadd.f32 %v2261, %v2326
      %v2343 = vadd.f32 %v2262, %v2327
      %v2344 = vadd.f32 %v2263, %v2328
      %v2345 = vadd.f32 %v2264, %v2329
      %v2346 = vadd.f32 %v2265, %v2330
      %v2347 = vadd.f32 %v2266, %v2331
      %s2348 = scalar_lea.vmem %s4, 2688
      %v2349 = vld [vmem:[%s2348] sm:$0xff]
      %v2350 = vld [vmem:[%s2348 + $0x8] sm:$0xff]
      %v2351 = vld [vmem:[%s2348 + $0x10] sm:$0xff]
      %v2352 = vld [vmem:[%s2348 + $0x18] sm:$0xff]
      %v2353 = vld [vmem:[%s2348 + $0x20] sm:$0xff]
      %v2354 = vld [vmem:[%s2348 + $0x28] sm:$0xff]
      %v2355 = vld [vmem:[%s2348 + $0x30] sm:$0xff]
      %v2356 = vld [vmem:[%s2348 + $0x38] sm:$0xff]
      %v2357 = vld [vmem:[%s2348 + $0x40] sm:$0xff]
      %v2358 = vld [vmem:[%s2348 + $0x48] sm:$0xff]
      %v2359 = vld [vmem:[%s2348 + $0x50] sm:$0xff]
      %v2360 = vld [vmem:[%s2348 + $0x58] sm:$0xff]
      %v2361 = vld [vmem:[%s2348 + $0x60] sm:$0xff]
      %v2362 = vld [vmem:[%s2348 + $0x68] sm:$0xff]
      %v2363 = vld [vmem:[%s2348 + $0x70] sm:$0xff]
      %v2364 = vld [vmem:[%s2348 + $0x78] sm:$0xff]
      %v2365 = vmul.f32 %v2168, %v2349
      %v2366 = vmul.f32 %v2167, %v2350
      %v2367 = vmul.f32 %v2166, %v2351
      %v2368 = vmul.f32 %v2165, %v2352
      %v2369 = vmul.f32 %v2164, %v2353
      %v2370 = vmul.f32 %v2163, %v2354
      %v2371 = vmul.f32 %v2162, %v2355
      %v2372 = vmul.f32 %v2161, %v2356
      %v2373 = vmul.f32 %v2160, %v2357
      %v2374 = vmul.f32 %v2159, %v2358
      %v2375 = vmul.f32 %v2158, %v2359
      %v2376 = vmul.f32 %v2157, %v2360
      %v2377 = vmul.f32 %v2156, %v2361
      %v2378 = vmul.f32 %v2155, %v2362
      %v2379 = vmul.f32 %v2154, %v2363
      %v2380 = vmul.f32 %v2153, %v2364
      %v2381 = vadd.f32 %v2332, %v2365
      %v2382 = vadd.f32 %v2333, %v2366
      %v2383 = vadd.f32 %v2334, %v2367
      %v2384 = vadd.f32 %v2335, %v2368
      %v2385 = vadd.f32 %v2336, %v2369
      %v2386 = vadd.f32 %v2337, %v2370
      %v2387 = vadd.f32 %v2338, %v2371
      %v2388 = vadd.f32 %v2339, %v2372
      %v2389 = vadd.f32 %v2340, %v2373
      %v2390 = vadd.f32 %v2341, %v2374
      %v2391 = vadd.f32 %v2342, %v2375
      %v2392 = vadd.f32 %v2343, %v2376
      %v2393 = vadd.f32 %v2344, %v2377
      %v2394 = vadd.f32 %v2345, %v2378
      %v2395 = vadd.f32 %v2346, %v2379
      %v2396 = vadd.f32 %v2347, %v2380
      %s2397 = scalar_lea.vmem %s4, 2944
      %v2398 = vld [vmem:[%s2397] sm:$0xff]
      %v2399 = vld [vmem:[%s2397 + $0x8] sm:$0xff]
      %v2400 = vld [vmem:[%s2397 + $0x10] sm:$0xff]
      %v2401 = vld [vmem:[%s2397 + $0x18] sm:$0xff]
      %v2402 = vld [vmem:[%s2397 + $0x20] sm:$0xff]
      %v2403 = vld [vmem:[%s2397 + $0x28] sm:$0xff]
      %v2404 = vld [vmem:[%s2397 + $0x30] sm:$0xff]
      %v2405 = vld [vmem:[%s2397 + $0x38] sm:$0xff]
      %v2406 = vld [vmem:[%s2397 + $0x40] sm:$0xff]
      %v2407 = vld [vmem:[%s2397 + $0x48] sm:$0xff]
      %v2408 = vld [vmem:[%s2397 + $0x50] sm:$0xff]
      %v2409 = vld [vmem:[%s2397 + $0x58] sm:$0xff]
      %v2410 = vld [vmem:[%s2397 + $0x60] sm:$0xff]
      %v2411 = vld [vmem:[%s2397 + $0x68] sm:$0xff]
      %v2412 = vld [vmem:[%s2397 + $0x70] sm:$0xff]
      %v2413 = vld [vmem:[%s2397 + $0x78] sm:$0xff]
      %v2414 = vmul.f32 %v2297, %v2398
      %v2415 = vmul.f32 %v2296, %v2399
      %v2416 = vmul.f32 %v2295, %v2400
      %v2417 = vmul.f32 %v2294, %v2401
      %v2418 = vmul.f32 %v2293, %v2402
      %v2419 = vmul.f32 %v2292, %v2403
      %v2420 = vmul.f32 %v2291, %v2404
      %v2421 = vmul.f32 %v2290, %v2405
      %v2422 = vmul.f32 %v2289, %v2406
      %v2423 = vmul.f32 %v2288, %v2407
      %v2424 = vmul.f32 %v2287, %v2408
      %v2425 = vmul.f32 %v2286, %v2409
      %v2426 = vmul.f32 %v2285, %v2410
      %v2427 = vmul.f32 %v2284, %v2411
      %v2428 = vmul.f32 %v2283, %v2412
      %v2429 = vmul.f32 %v2298, %v2413
      %v2430 = vadd.f32 %v2381, %v2414
      %v2431 = vadd.f32 %v2382, %v2415
      %v2432 = vadd.f32 %v2383, %v2416
      %v2433 = vadd.f32 %v2384, %v2417
      %v2434 = vadd.f32 %v2385, %v2418
      %v2435 = vadd.f32 %v2386, %v2419
      %v2436 = vadd.f32 %v2387, %v2420
      %v2437 = vadd.f32 %v2388, %v2421
      %v2438 = vadd.f32 %v2389, %v2422
      %v2439 = vadd.f32 %v2390, %v2423
      %v2440 = vadd.f32 %v2391, %v2424
      %v2441 = vadd.f32 %v2392, %v2425
      %v2442 = vadd.f32 %v2393, %v2426
      %v2443 = vadd.f32 %v2394, %v2427
      %v2444 = vadd.f32 %v2395, %v2428
      %v2445 = vadd.f32 %v2396, %v2429
      %s2446 = scalar_lea.vmem %s4, 3072
      %v2447 = vld [vmem:[%s2446] sm:$0xff]
      %v2448 = vld [vmem:[%s2446 + $0x8] sm:$0xff]
      %v2449 = vld [vmem:[%s2446 + $0x10] sm:$0xff]
      %v2450 = vld [vmem:[%s2446 + $0x18] sm:$0xff]
      %v2451 = vld [vmem:[%s2446 + $0x20] sm:$0xff]
      %v2452 = vld [vmem:[%s2446 + $0x28] sm:$0xff]
      %v2453 = vld [vmem:[%s2446 + $0x30] sm:$0xff]
      %v2454 = vld [vmem:[%s2446 + $0x38] sm:$0xff]
      %v2455 = vld [vmem:[%s2446 + $0x40] sm:$0xff]
      %v2456 = vld [vmem:[%s2446 + $0x48] sm:$0xff]
      %v2457 = vld [vmem:[%s2446 + $0x50] sm:$0xff]
      %v2458 = vld [vmem:[%s2446 + $0x58] sm:$0xff]
      %v2459 = vld [vmem:[%s2446 + $0x60] sm:$0xff]
      %v2460 = vld [vmem:[%s2446 + $0x68] sm:$0xff]
      %v2461 = vld [vmem:[%s2446 + $0x70] sm:$0xff]
      %v2462 = vld [vmem:[%s2446 + $0x78] sm:$0xff]
      %v2463 = vmul.f32 %v2167, %v2447
      %v2464 = vmul.f32 %v2166, %v2448
      %v2465 = vmul.f32 %v2165, %v2449
      %v2466 = vmul.f32 %v2164, %v2450
      %v2467 = vmul.f32 %v2163, %v2451
      %v2468 = vmul.f32 %v2162, %v2452
      %v2469 = vmul.f32 %v2161, %v2453
      %v2470 = vmul.f32 %v2160, %v2454
      %v2471 = vmul.f32 %v2159, %v2455
      %v2472 = vmul.f32 %v2158, %v2456
      %v2473 = vmul.f32 %v2157, %v2457
      %v2474 = vmul.f32 %v2156, %v2458
      %v2475 = vmul.f32 %v2155, %v2459
      %v2476 = vmul.f32 %v2154, %v2460
      %v2477 = vmul.f32 %v2153, %v2461
      %v2478 = vmul.f32 %v2168, %v2462
      %v2479 = vadd.f32 %v2430, %v2463
      %v2480 = vadd.f32 %v2431, %v2464
      %v2481 = vadd.f32 %v2432, %v2465
      %v2482 = vadd.f32 %v2433, %v2466
      %v2483 = vadd.f32 %v2434, %v2467
      %v2484 = vadd.f32 %v2435, %v2468
      %v2485 = vadd.f32 %v2436, %v2469
      %v2486 = vadd.f32 %v2437, %v2470
      %v2487 = vadd.f32 %v2438, %v2471
      %v2488 = vadd.f32 %v2439, %v2472
      %v2489 = vadd.f32 %v2440, %v2473
      %v2490 = vadd.f32 %v2441, %v2474
      %v2491 = vadd.f32 %v2442, %v2475
      %v2492 = vadd.f32 %v2443, %v2476
      %v2493 = vadd.f32 %v2444, %v2477
      %v2494 = vadd.f32 %v2445, %v2478
      %s2495 = scalar_lea.vmem %s4, 3200
      %v2496 = vld [vmem:[%s2495] sm:$0xff]
      %v2497 = vld [vmem:[%s2495 + $0x8] sm:$0xff]
      %v2498 = vld [vmem:[%s2495 + $0x10] sm:$0xff]
      %v2499 = vld [vmem:[%s2495 + $0x18] sm:$0xff]
      %v2500 = vld [vmem:[%s2495 + $0x20] sm:$0xff]
      %v2501 = vld [vmem:[%s2495 + $0x28] sm:$0xff]
      %v2502 = vld [vmem:[%s2495 + $0x30] sm:$0xff]
      %v2503 = vld [vmem:[%s2495 + $0x38] sm:$0xff]
      %v2504 = vld [vmem:[%s2495 + $0x40] sm:$0xff]
      %v2505 = vld [vmem:[%s2495 + $0x48] sm:$0xff]
      %v2506 = vld [vmem:[%s2495 + $0x50] sm:$0xff]
      %v2507 = vld [vmem:[%s2495 + $0x58] sm:$0xff]
      %v2508 = vld [vmem:[%s2495 + $0x60] sm:$0xff]
      %v2509 = vld [vmem:[%s2495 + $0x68] sm:$0xff]
      %v2510 = vld [vmem:[%s2495 + $0x70] sm:$0xff]
      %v2511 = vld [vmem:[%s2495 + $0x78] sm:$0xff]
      %v2512 = vmul.f32 %v2002, %v2496
      %v2513 = vmul.f32 %v2003, %v2497
      %v2514 = vmul.f32 %v2004, %v2498
      %v2515 = vmul.f32 %v2005, %v2499
      %v2516 = vmul.f32 %v2006, %v2500
      %v2517 = vmul.f32 %v2007, %v2501
      %v2518 = vmul.f32 %v2008, %v2502
      %v2519 = vmul.f32 %v2096, %v2503
      %v2520 = vmul.f32 %v2097, %v2504
      %v2521 = vmul.f32 %v2098, %v2505
      %v2522 = vmul.f32 %v2099, %v2506
      %v2523 = vmul.f32 %v2100, %v2507
      %v2524 = vmul.f32 %v2101, %v2508
      %v2525 = vmul.f32 %v2102, %v2509
      %v2526 = vmul.f32 %v2103, %v2510
      %v2527 = vmul.f32 %v2001, %v2511
      %v2528 = vadd.f32 %v2479, %v2512
      %v2529 = vadd.f32 %v2480, %v2513
      %v2530 = vadd.f32 %v2481, %v2514
      %v2531 = vadd.f32 %v2482, %v2515
      %v2532 = vadd.f32 %v2483, %v2516
      %v2533 = vadd.f32 %v2484, %v2517
      %v2534 = vadd.f32 %v2485, %v2518
      %v2535 = vadd.f32 %v2486, %v2519
      %v2536 = vadd.f32 %v2487, %v2520
      %v2537 = vadd.f32 %v2488, %v2521
      %v2538 = vadd.f32 %v2489, %v2522
      %v2539 = vadd.f32 %v2490, %v2523
      %v2540 = vadd.f32 %v2491, %v2524
      %v2541 = vadd.f32 %v2492, %v2525
      %v2542 = vadd.f32 %v2493, %v2526
      %v2543 = vadd.f32 %v2494, %v2527
      %s2544 = scalar_lea.vmem %s4, 3328
      %v2545 = vld [vmem:[%s2544] sm:$0xff]
      %v2546 = vld [vmem:[%s2544 + $0x8] sm:$0xff]
      %v2547 = vld [vmem:[%s2544 + $0x10] sm:$0xff]
      %v2548 = vld [vmem:[%s2544 + $0x18] sm:$0xff]
      %v2549 = vld [vmem:[%s2544 + $0x20] sm:$0xff]
      %v2550 = vld [vmem:[%s2544 + $0x28] sm:$0xff]
      %v2551 = vld [vmem:[%s2544 + $0x30] sm:$0xff]
      %v2552 = vld [vmem:[%s2544 + $0x38] sm:$0xff]
      %v2553 = vld [vmem:[%s2544 + $0x40] sm:$0xff]
      %v2554 = vld [vmem:[%s2544 + $0x48] sm:$0xff]
      %v2555 = vld [vmem:[%s2544 + $0x50] sm:$0xff]
      %v2556 = vld [vmem:[%s2544 + $0x58] sm:$0xff]
      %v2557 = vld [vmem:[%s2544 + $0x60] sm:$0xff]
      %v2558 = vld [vmem:[%s2544 + $0x68] sm:$0xff]
      %v2559 = vld [vmem:[%s2544 + $0x70] sm:$0xff]
      %v2560 = vld [vmem:[%s2544 + $0x78] sm:$0xff]
      %v2561 = vmul.f32 %v2296, %v2545
      %v2562 = vmul.f32 %v2295, %v2546
      %v2563 = vmul.f32 %v2294, %v2547
      %v2564 = vmul.f32 %v2293, %v2548
      %v2565 = vmul.f32 %v2292, %v2549
      %v2566 = vmul.f32 %v2291, %v2550
      %v2567 = vmul.f32 %v2290, %v2551
      %v2568 = vmul.f32 %v2289, %v2552
      %v2569 = vmul.f32 %v2288, %v2553
      %v2570 = vmul.f32 %v2287, %v2554
      %v2571 = vmul.f32 %v2286, %v2555
      %v2572 = vmul.f32 %v2285, %v2556
      %v2573 = vmul.f32 %v2284, %v2557
      %v2574 = vmul.f32 %v2283, %v2558
      %v2575 = vmul.f32 %v2298, %v2559
      %v2576 = vmul.f32 %v2297, %v2560
      %v2577 = vadd.f32 %v2528, %v2561
      %v2578 = vadd.f32 %v2529, %v2562
      %v2579 = vadd.f32 %v2530, %v2563
      %v2580 = vadd.f32 %v2531, %v2564
      %v2581 = vadd.f32 %v2532, %v2565
      %v2582 = vadd.f32 %v2533, %v2566
      %v2583 = vadd.f32 %v2534, %v2567
      %v2584 = vadd.f32 %v2535, %v2568
      %v2585 = vadd.f32 %v2536, %v2569
      %v2586 = vadd.f32 %v2537, %v2570
      %v2587 = vadd.f32 %v2538, %v2571
      %v2588 = vadd.f32 %v2539, %v2572
      %v2589 = vadd.f32 %v2540, %v2573
      %v2590 = vadd.f32 %v2541, %v2574
      %v2591 = vadd.f32 %v2542, %v2575
      %v2592 = vadd.f32 %v2543, %v2576
      %s2593 = scalar_lea.vmem %s5, 2
      %v2594 = vld [vmem:[%s2593] sm:$0x1]
      %s2595 = scalar_lea.vmem %s6, 2
      %v2596 = vld [vmem:[%s2595] sm:$0x1]
      %v2597 = vsel %vm377, %v2577, 0.0
      %v2598 = vsel %vm377, %v2578, 0.0
      %v2599 = vadd.f32 %v2597, %v2598
      %v2600 = vsel %vm377, %v2579, 0.0
      %v2601 = vadd.f32 %v2599, %v2600
      %v2602 = vsel %vm377, %v2580, 0.0
      %v2603 = vadd.f32 %v2601, %v2602
      %v2604 = vsel %vm377, %v2581, 0.0
      %v2605 = vadd.f32 %v2603, %v2604
      %v2606 = vsel %vm377, %v2582, 0.0
      %v2607 = vadd.f32 %v2605, %v2606
      %v2608 = vsel %vm377, %v2583, 0.0
      %v2609 = vadd.f32 %v2607, %v2608
      %v2610 = vsel %vm377, %v2584, 0.0
      %v2611 = vadd.f32 %v2609, %v2610
      %2612 = vadd.xlane.f32.xlu0 %v2611
      %v2613 = vpop.xlane.xlu0 %2612
      %v2614 = vrot.slane %v2613, 4
      %v2615 = vadd.f32 %v2613, %v2614
      %v2616 = vrot.slane %v2615, 2
      %v2617 = vadd.f32 %v2615, %v2616
      %v2618 = vrot.slane %v2617, 1
      %v2619 = vadd.f32 %v2617, %v2618
      %s2620 = vtos %v2619
      %s2621 = smul.f32 %s2620, 0.00048828125
      %v2622 = vstv %s2621
      %v2623 = vsub.f32 %v2577, %v2622
      %v2624 = vsub.f32 %v2578, %v2622
      %v2625 = vsub.f32 %v2579, %v2622
      %v2626 = vsub.f32 %v2580, %v2622
      %v2627 = vsub.f32 %v2581, %v2622
      %v2628 = vsub.f32 %v2582, %v2622
      %v2629 = vsub.f32 %v2583, %v2622
      %v2630 = vsub.f32 %v2584, %v2622
      %v2631 = vmul.f32 %v2623, %v2623
      %v2632 = vmul.f32 %v2624, %v2624
      %v2633 = vmul.f32 %v2625, %v2625
      %v2634 = vmul.f32 %v2626, %v2626
      %v2635 = vmul.f32 %v2627, %v2627
      %v2636 = vmul.f32 %v2628, %v2628
      %v2637 = vmul.f32 %v2629, %v2629
      %v2638 = vmul.f32 %v2630, %v2630
      %v2639 = vsel %vm377, %v2631, 0.0
      %v2640 = vsel %vm377, %v2632, 0.0
      %v2641 = vadd.f32 %v2639, %v2640
      %v2642 = vsel %vm377, %v2633, 0.0
      %v2643 = vadd.f32 %v2641, %v2642
      %v2644 = vsel %vm377, %v2634, 0.0
      %v2645 = vadd.f32 %v2643, %v2644
      %v2646 = vsel %vm377, %v2635, 0.0
      %v2647 = vadd.f32 %v2645, %v2646
      %v2648 = vsel %vm377, %v2636, 0.0
      %v2649 = vadd.f32 %v2647, %v2648
      %v2650 = vsel %vm377, %v2637, 0.0
      %v2651 = vadd.f32 %v2649, %v2650
      %v2652 = vsel %vm377, %v2638, 0.0
      %v2653 = vadd.f32 %v2651, %v2652
      %2654 = vadd.xlane.f32.xlu0 %v2653
      %v2655 = vpop.xlane.xlu0 %2654
      %v2656 = vrot.slane %v2655, 4
      %v2657 = vadd.f32 %v2655, %v2656
      %v2658 = vrot.slane %v2657, 2
      %v2659 = vadd.f32 %v2657, %v2658
      %v2660 = vrot.slane %v2659, 1
      %v2661 = vadd.f32 %v2659, %v2660
      %s2662 = vtos %v2661
      %s2663 = smul.f32 %s2662, 0.00048828125
      %s2664 = sadd.f32 %s2663, 1e-05
      %v2665 = vstv %s2664
      %v2666 = vrsqrt.pop %v2665
      %s2667 = vtos %v2666
      %v2668 = vstv %s2667
      %v2669 = vmul.f32 %v2594, %v2668
      %v2671 = vlaneseq
      %v2672 = vshrl.u32 %v2671, 7
      %v2673 = vsub.s32 0, %v2672
      %v2674 = vrot.slane %v2669, %v2673
      %v2676 = vmul.f32 %v2623, %v2674
      %v2677 = vmul.f32 %v2624, %v2674
      %v2678 = vmul.f32 %v2625, %v2674
      %v2679 = vmul.f32 %v2626, %v2674
      %v2680 = vmul.f32 %v2627, %v2674
      %v2681 = vmul.f32 %v2628, %v2674
      %v2682 = vmul.f32 %v2629, %v2674
      %v2683 = vmul.f32 %v2630, %v2674
      %v2685 = vlaneseq
      %v2686 = vshrl.u32 %v2685, 7
      %v2687 = vsub.s32 0, %v2686
      %v2688 = vrot.slane %v2596, %v2687
      %v2690 = vadd.f32 %v2676, %v2688
      %v2691 = vadd.f32 %v2677, %v2688
      %v2692 = vadd.f32 %v2678, %v2688
      %v2693 = vadd.f32 %v2679, %v2688
      %v2694 = vadd.f32 %v2680, %v2688
      %v2695 = vadd.f32 %v2681, %v2688
      %v2696 = vadd.f32 %v2682, %v2688
      %v2697 = vadd.f32 %v2683, %v2688
      %v2698 = vsel %vm377, %v2585, 0.0
      %v2699 = vsel %vm377, %v2586, 0.0
      %v2700 = vadd.f32 %v2698, %v2699
      %v2701 = vsel %vm377, %v2587, 0.0
      %v2702 = vadd.f32 %v2700, %v2701
      %v2703 = vsel %vm377, %v2588, 0.0
      %v2704 = vadd.f32 %v2702, %v2703
      %v2705 = vsel %vm377, %v2589, 0.0
      %v2706 = vadd.f32 %v2704, %v2705
      %v2707 = vsel %vm377, %v2590, 0.0
      %v2708 = vadd.f32 %v2706, %v2707
      %v2709 = vsel %vm377, %v2591, 0.0
      %v2710 = vadd.f32 %v2708, %v2709
      %v2711 = vsel %vm377, %v2592, 0.0
      %v2712 = vadd.f32 %v2710, %v2711
      %2713 = vadd.xlane.f32.xlu0 %v2712
      %v2714 = vpop.xlane.xlu0 %2713
      %v2715 = vrot.slane %v2714, 4
      %v2716 = vadd.f32 %v2714, %v2715
      %v2717 = vrot.slane %v2716, 2
      %v2718 = vadd.f32 %v2716, %v2717
      %v2719 = vrot.slane %v2718, 1
      %v2720 = vadd.f32 %v2718, %v2719
      %s2721 = vtos %v2720
      %s2722 = smul.f32 %s2721, 0.00048828125
      %v2723 = vstv %s2722
      %v2724 = vsub.f32 %v2585, %v2723
      %v2725 = vsub.f32 %v2586, %v2723
      %v2726 = vsub.f32 %v2587, %v2723
      %v2727 = vsub.f32 %v2588, %v2723
      %v2728 = vsub.f32 %v2589, %v2723
      %v2729 = vsub.f32 %v2590, %v2723
      %v2730 = vsub.f32 %v2591, %v2723
      %v2731 = vsub.f32 %v2592, %v2723
      %v2732 = vmul.f32 %v2724, %v2724
      %v2733 = vmul.f32 %v2725, %v2725
      %v2734 = vmul.f32 %v2726, %v2726
      %v2735 = vmul.f32 %v2727, %v2727
      %v2736 = vmul.f32 %v2728, %v2728
      %v2737 = vmul.f32 %v2729, %v2729
      %v2738 = vmul.f32 %v2730, %v2730
      %v2739 = vmul.f32 %v2731, %v2731
      %v2740 = vsel %vm377, %v2732, 0.0
      %v2741 = vsel %vm377, %v2733, 0.0
      %v2742 = vadd.f32 %v2740, %v2741
      %v2743 = vsel %vm377, %v2734, 0.0
      %v2744 = vadd.f32 %v2742, %v2743
      %v2745 = vsel %vm377, %v2735, 0.0
      %v2746 = vadd.f32 %v2744, %v2745
      %v2747 = vsel %vm377, %v2736, 0.0
      %v2748 = vadd.f32 %v2746, %v2747
      %v2749 = vsel %vm377, %v2737, 0.0
      %v2750 = vadd.f32 %v2748, %v2749
      %v2751 = vsel %vm377, %v2738, 0.0
      %v2752 = vadd.f32 %v2750, %v2751
      %v2753 = vsel %vm377, %v2739, 0.0
      %v2754 = vadd.f32 %v2752, %v2753
      %2755 = vadd.xlane.f32.xlu0 %v2754
      %v2756 = vpop.xlane.xlu0 %2755
      %v2757 = vrot.slane %v2756, 4
      %v2758 = vadd.f32 %v2756, %v2757
      %v2759 = vrot.slane %v2758, 2
      %v2760 = vadd.f32 %v2758, %v2759
      %v2761 = vrot.slane %v2760, 1
      %v2762 = vadd.f32 %v2760, %v2761
      %s2763 = vtos %v2762
      %s2764 = smul.f32 %s2763, 0.00048828125
      %s2765 = sadd.f32 %s2764, 1e-05
      %v2766 = vstv %s2765
      %v2767 = vrsqrt.pop %v2766
      %s2768 = vtos %v2767
      %v2769 = vstv %s2768
      %v2770 = vmul.f32 %v2594, %v2769
      %v2772 = vlaneseq
      %v2773 = vshrl.u32 %v2772, 7
      %v2774 = vsub.s32 0, %v2773
      %v2775 = vrot.slane %v2770, %v2774
      %v2777 = vmul.f32 %v2724, %v2775
      %v2778 = vmul.f32 %v2725, %v2775
      %v2779 = vmul.f32 %v2726, %v2775
      %v2780 = vmul.f32 %v2727, %v2775
      %v2781 = vmul.f32 %v2728, %v2775
      %v2782 = vmul.f32 %v2729, %v2775
      %v2783 = vmul.f32 %v2730, %v2775
      %v2784 = vmul.f32 %v2731, %v2775
      %v2785 = vadd.f32 %v2777, %v2688
      %v2786 = vadd.f32 %v2778, %v2688
      %v2787 = vadd.f32 %v2779, %v2688
      %v2788 = vadd.f32 %v2780, %v2688
      %v2789 = vadd.f32 %v2781, %v2688
      %v2790 = vadd.f32 %v2782, %v2688
      %v2791 = vadd.f32 %v2783, %v2688
      %v2792 = vadd.f32 %v2784, %v2688
      %v2793 = vadd.f32 %v2690, 3.0
      %v2794 = vadd.f32 %v2691, 3.0
      %v2795 = vadd.f32 %v2692, 3.0
      %v2796 = vadd.f32 %v2693, 3.0
      %v2797 = vadd.f32 %v2694, 3.0
      %v2798 = vadd.f32 %v2695, 3.0
      %v2799 = vadd.f32 %v2696, 3.0
      %v2800 = vadd.f32 %v2697, 3.0
      %v2801 = vadd.f32 %v2785, 3.0
      %v2802 = vadd.f32 %v2786, 3.0
      %v2803 = vadd.f32 %v2787, 3.0
      %v2804 = vadd.f32 %v2788, 3.0
      %v2805 = vadd.f32 %v2789, 3.0
      %v2806 = vadd.f32 %v2790, 3.0
      %v2807 = vadd.f32 %v2791, 3.0
      %v2808 = vadd.f32 %v2792, 3.0
      %v2809 = vmax.f32 %v2793, 0.0
      %v2810 = vmax.f32 %v2794, 0.0
      %v2811 = vmax.f32 %v2795, 0.0
      %v2812 = vmax.f32 %v2796, 0.0
      %v2813 = vmax.f32 %v2797, 0.0
      %v2814 = vmax.f32 %v2798, 0.0
      %v2815 = vmax.f32 %v2799, 0.0
      %v2816 = vmax.f32 %v2800, 0.0
      %v2817 = vmax.f32 %v2801, 0.0
      %v2818 = vmax.f32 %v2802, 0.0
      %v2819 = vmax.f32 %v2803, 0.0
      %v2820 = vmax.f32 %v2804, 0.0
      %v2821 = vmax.f32 %v2805, 0.0
      %v2822 = vmax.f32 %v2806, 0.0
      %v2823 = vmax.f32 %v2807, 0.0
      %v2824 = vmax.f32 %v2808, 0.0
      %v2825 = vmin.f32 %v2809, 6.0
      %v2826 = vmin.f32 %v2810, 6.0
      %v2827 = vmin.f32 %v2811, 6.0
      %v2828 = vmin.f32 %v2812, 6.0
      %v2829 = vmin.f32 %v2813, 6.0
      %v2830 = vmin.f32 %v2814, 6.0
      %v2831 = vmin.f32 %v2815, 6.0
      %v2832 = vmin.f32 %v2816, 6.0
      %v2833 = vmin.f32 %v2817, 6.0
      %v2834 = vmin.f32 %v2818, 6.0
      %v2835 = vmin.f32 %v2819, 6.0
      %v2836 = vmin.f32 %v2820, 6.0
      %v2837 = vmin.f32 %v2821, 6.0
      %v2838 = vmin.f32 %v2822, 6.0
      %v2839 = vmin.f32 %v2823, 6.0
      %v2840 = vmin.f32 %v2824, 6.0
      %v2841 = vmul.f32 %v2690, %v2825
      %v2842 = vmul.f32 %v2691, %v2826
      %v2843 = vmul.f32 %v2692, %v2827
      %v2844 = vmul.f32 %v2693, %v2828
      %v2845 = vmul.f32 %v2694, %v2829
      %v2846 = vmul.f32 %v2695, %v2830
      %v2847 = vmul.f32 %v2696, %v2831
      %v2848 = vmul.f32 %v2697, %v2832
      %v2849 = vmul.f32 %v2785, %v2833
      %v2850 = vmul.f32 %v2786, %v2834
      %v2851 = vmul.f32 %v2787, %v2835
      %v2852 = vmul.f32 %v2788, %v2836
      %v2853 = vmul.f32 %v2789, %v2837
      %v2854 = vmul.f32 %v2790, %v2838
      %v2855 = vmul.f32 %v2791, %v2839
      %v2856 = vmul.f32 %v2792, %v2840
      %v2857 = vmul.f32 %v2841, 0.16666667
      %v2858 = vmul.f32 %v2842, 0.16666667
      %v2859 = vmul.f32 %v2843, 0.16666667
      %v2860 = vmul.f32 %v2844, 0.16666667
      %v2861 = vmul.f32 %v2845, 0.16666667
      %v2862 = vmul.f32 %v2846, 0.16666667
      %v2863 = vmul.f32 %v2847, 0.16666667
      %v2864 = vmul.f32 %v2848, 0.16666667
      %v2865 = vmul.f32 %v2849, 0.16666667
      %v2866 = vmul.f32 %v2850, 0.16666667
      %v2867 = vmul.f32 %v2851, 0.16666667
      %v2868 = vmul.f32 %v2852, 0.16666667
      %v2869 = vmul.f32 %v2853, 0.16666667
      %v2870 = vmul.f32 %v2854, 0.16666667
      %v2871 = vmul.f32 %v2855, 0.16666667
      %v2872 = vmul.f32 %v2856, 0.16666667
      %v2873 = vpack.c.bf16 %v2858, %v2857
      %v2874 = vpack.c.bf16 %v2860, %v2859
      %v2875 = vpack.c.bf16 %v2862, %v2861
      %v2876 = vpack.c.bf16 %v2864, %v2863
      %v2877 = vpack.c.bf16 %v2866, %v2865
      %v2878 = vpack.c.bf16 %v2868, %v2867
      %v2879 = vpack.c.bf16 %v2870, %v2869
      %v2880 = vpack.c.bf16 %v2872, %v2871
      %s2881 = scalar_lea.vmem %s7, 16
      %v2882 = vld [vmem:[%s2881] sm:$0xf]
      %v2883 = vld [vmem:[%s2881 + $0x4] sm:$0xf]
      %v2884 = vld [vmem:[%s2881 + $0x8] sm:$0xf]
      %v2885 = vld [vmem:[%s2881 + $0xc] sm:$0xf]
      %v2890 = vunpack.c.l.b16 %v2882
      %v2891 = vunpack.c.l.b16 %v2883
      %v2892 = vunpack.c.l.b16 %v2884
      %v2893 = vunpack.c.l.b16 %v2885
      %v2894 = vpack.c.b16 %v2891, %v2890
      %v2895 = vpack.c.b16 %v2893, %v2892
      %v2899 = vsel %vm377, %v2873, 0
      %v2902 = vsel %vm377, %v2874, 0
      %v2905 = vsel %vm377, %v2875, 0
      %v2908 = vsel %vm377, %v2876, 0
      %v2911 = vsel %vm377, %v2877, 0
      %v2914 = vsel %vm377, %v2878, 0
      %v2917 = vsel %vm377, %v2879, 0
      %v2920 = vsel %vm377, %v2880, 0
      %2922 = vmatprep.subr.bf16.mxu0 0
      %2923 = vmatpush1.bf16.msra.mxu0 %v2894
      %2924 = vmatprep.subr.bf16.mxu0 0
      %2925 = vmatpush1.bf16.msra.mxu0 %v2895
      %2926 = vmatprep.subr.bf16.mxu0 0
      %2927 = vmatpush1.bf16.msra.mxu0 0
      %2928 = vmatprep.subr.bf16.mxu0 0
      %2929 = vmatpush1.bf16.msra.mxu0 0
      %2930 = vmatprep.subr.bf16.mxu0 0
      %2931 = vmatpush1.bf16.msra.mxu0 0
      %2932 = vmatprep.subr.bf16.mxu0 0
      %2933 = vmatpush1.bf16.msra.mxu0 0
      %2934 = vmatprep.subr.bf16.mxu0 0
      %2935 = vmatpush1.bf16.msra.mxu0 0
      %2936 = vmatprep.subr.bf16.mxu0 0
      %2937 = vmatpush1.bf16.msra.mxu0 0
      %2938 = vmatprep.subr.bf16.mxu0 0
      %2939 = vmatpush1.bf16.msra.mxu0 0
      %2940 = vmatprep.subr.bf16.mxu0 0
      %2941 = vmatpush1.bf16.msra.mxu0 0
      %2942 = vmatprep.subr.bf16.mxu0 0
      %2943 = vmatpush1.bf16.msra.mxu0 0
      %2944 = vmatprep.subr.bf16.mxu0 0
      %2945 = vmatpush1.bf16.msra.mxu0 0
      %2946 = vmatprep.subr.bf16.mxu0 0
      %2947 = vmatpush1.bf16.msra.mxu0 0
      %2948 = vmatprep.subr.bf16.mxu0 0
      %2949 = vmatpush1.bf16.msra.mxu0 0
      %2950 = vmatprep.subr.bf16.mxu0 0
      %2951 = vmatpush1.bf16.msra.mxu0 0
      %2952 = vmatprep.subr.bf16.mxu0 0
      %2953 = vmatpush1.bf16.msra.mxu0 0
      %2954 = vmatprep.mubr.bf16.mxu0 0
      %2955 = vmatmul.mubr.bf16.gmra.mrb[0].mxu0 %v2899
      %v2956 = vpop.f32.mrb[0].mxu0
      %v2957 = vadd.f32 0.0, %v2956
      %v2958 = vpop.f32.mrb[0].mxu0
      %v2959 = vpop.f32.mrb[0].mxu0
      %v2960 = vadd.f32 0.0, %v2959
      %v2961 = vpop.f32.mrb[0].mxu0
      %2962 = vmatprep.mubr.bf16.mxu0 0
      %2963 = vmatmul.mubr.bf16.gmra.mrb[0].mxu0 %v2902
      %v2964 = vpop.f32.mrb[0].mxu0
      %v2965 = vadd.f32 0.0, %v2964
      %v2966 = vpop.f32.mrb[0].mxu0
      %v2967 = vpop.f32.mrb[0].mxu0
      %v2968 = vadd.f32 0.0, %v2967
      %v2969 = vpop.f32.mrb[0].mxu0
      %2970 = vmatprep.mubr.bf16.mxu0 0
      %2971 = vmatmul.mubr.bf16.gmra.mrb[0].mxu0 %v2905
      %v2972 = vpop.f32.mrb[0].mxu0
      %v2973 = vadd.f32 0.0, %v2972
      %v2974 = vpop.f32.mrb[0].mxu0
      %v2975 = vpop.f32.mrb[0].mxu0
      %v2976 = vadd.f32 0.0, %v2975
      %v2977 = vpop.f32.mrb[0].mxu0
      %2978 = vmatprep.mubr.bf16.mxu0 0
      %2979 = vmatmul.mubr.bf16.gmra.mrb[0].mxu0 %v2908
      %v2980 = vpop.f32.mrb[0].mxu0
      %v2981 = vadd.f32 0.0, %v2980
      %v2982 = vpop.f32.mrb[0].mxu0
      %v2983 = vpop.f32.mrb[0].mxu0
      %v2984 = vadd.f32 0.0, %v2983
      %v2985 = vpop.f32.mrb[0].mxu0
      %2986 = vmatprep.mubr.bf16.mxu0 0
      %2987 = vmatmul.mubr.bf16.gmra.mrb[0].mxu0 %v2911
      %v2988 = vpop.f32.mrb[0].mxu0
      %v2989 = vadd.f32 0.0, %v2988
      %v2990 = vpop.f32.mrb[0].mxu0
      %v2991 = vpop.f32.mrb[0].mxu0
      %v2992 = vadd.f32 0.0, %v2991
      %v2993 = vpop.f32.mrb[0].mxu0
      %2994 = vmatprep.mubr.bf16.mxu0 0
      %2995 = vmatmul.mubr.bf16.gmra.mrb[0].mxu0 %v2914
      %v2996 = vpop.f32.mrb[0].mxu0
      %v2997 = vadd.f32 0.0, %v2996
      %v2998 = vpop.f32.mrb[0].mxu0
      %v2999 = vpop.f32.mrb[0].mxu0
      %v3000 = vadd.f32 0.0, %v2999
      %v3001 = vpop.f32.mrb[0].mxu0
      %3002 = vmatprep.mubr.bf16.mxu0 0
      %3003 = vmatmul.mubr.bf16.gmra.mrb[0].mxu0 %v2917
      %v3004 = vpop.f32.mrb[0].mxu0
      %v3005 = vadd.f32 0.0, %v3004
      %v3006 = vpop.f32.mrb[0].mxu0
      %v3007 = vpop.f32.mrb[0].mxu0
      %v3008 = vadd.f32 0.0, %v3007
      %v3009 = vpop.f32.mrb[0].mxu0
      %3010 = vmatprep.mubr.bf16.mxu0 0
      %3011 = vmatmul.mubr.bf16.gmra.mrb[0].mxu0 %v2920
      %v3012 = vpop.f32.mrb[0].mxu0
      %v3013 = vadd.f32 0.0, %v3012
      %v3014 = vpop.f32.mrb[0].mxu0
      %v3015 = vpop.f32.mrb[0].mxu0
      %v3016 = vadd.f32 0.0, %v3015
      %v3017 = vpop.f32.mrb[0].mxu0
      %3018 = vdwg.mxu0
      %v3023 = vunpack.c.l.b16 %v1475
      %v3024 = vunpack.c.l.b16 %v1476
      %v3025 = vunpack.c.l.b16 %v1477
      %v3026 = vunpack.c.l.b16 %v1478
      %v3027 = vpack.c.b16 %v3024, %v3023
      %v3028 = vpack.c.b16 %v3026, %v3025
      %v3032 = vsel %vm377, %v1467, 0
      %v3035 = vsel %vm377, %v1468, 0
      %v3038 = vsel %vm377, %v1469, 0
      %v3041 = vsel %vm377, %v1470, 0
      %v3044 = vsel %vm377, %v1471, 0
      %v3047 = vsel %vm377, %v1472, 0
      %v3050 = vsel %vm377, %v1473, 0
      %v3053 = vsel %vm377, %v1474, 0
      %3055 = vmatprep.subr.bf16.mxu0 0
      %3056 = vmatpush1.bf16.msra.mxu0 %v3027
      %3057 = vmatprep.subr.bf16.mxu0 0
      %3058 = vmatpush1.bf16.msra.mxu0 %v3028
      %3059 = vmatprep.subr.bf16.mxu0 0
      %3060 = vmatpush1.bf16.msra.mxu0 0
      %3061 = vmatprep.subr.bf16.mxu0 0
      %3062 = vmatpush1.bf16.msra.mxu0 0
      %3063 = vmatprep.subr.bf16.mxu0 0
      %3064 = vmatpush1.bf16.msra.mxu0 0
      %3065 = vmatprep.subr.bf16.mxu0 0
      %3066 = vmatpush1.bf16.msra.mxu0 0
      %3067 = vmatprep.subr.bf16.mxu0 0
      %3068 = vmatpush1.bf16.msra.mxu0 0
      %3069 = vmatprep.subr.bf16.mxu0 0
      %3070 = vmatpush1.bf16.msra.mxu0 0
      %3071 = vmatprep.subr.bf16.mxu0 0
      %3072 = vmatpush1.bf16.msra.mxu0 0
      %3073 = vmatprep.subr.bf16.mxu0 0
      %3074 = vmatpush1.bf16.msra.mxu0 0
      %3075 = vmatprep.subr.bf16.mxu0 0
      %3076 = vmatpush1.bf16.msra.mxu0 0
      %3077 = vmatprep.subr.bf16.mxu0 0
      %3078 = vmatpush1.bf16.msra.mxu0 0
      %3079 = vmatprep.subr.bf16.mxu0 0
      %3080 = vmatpush1.bf16.msra.mxu0 0
      %3081 = vmatprep.subr.bf16.mxu0 0
      %3082 = vmatpush1.bf16.msra.mxu0 0
      %3083 = vmatprep.subr.bf16.mxu0 0
      %3084 = vmatpush1.bf16.msra.mxu0 0
      %3085 = vmatprep.subr.bf16.mxu0 0
      %3086 = vmatpush1.bf16.msra.mxu0 0
      %3087 = vmatprep.mubr.bf16.mxu0 0
      %3088 = vmatmul.mubr.bf16.gmra.mrb[0].mxu0 %v3032
      %v3089 = vpop.f32.mrb[0].mxu0
      %v3090 = vadd.f32 %v2957, %v3089
      %v3091 = vpop.f32.mrb[0].mxu0
      %v3092 = vpop.f32.mrb[0].mxu0
      %v3093 = vadd.f32 %v2960, %v3092
      %v3094 = vpop.f32.mrb[0].mxu0
      %3095 = vmatprep.mubr.bf16.mxu0 0
      %3096 = vmatmul.mubr.bf16.gmra.mrb[0].mxu0 %v3035
      %v3097 = vpop.f32.mrb[0].mxu0
      %v3098 = vadd.f32 %v2965, %v3097
      %v3099 = vpop.f32.mrb[0].mxu0
      %v3100 = vpop.f32.mrb[0].mxu0
      %v3101 = vadd.f32 %v2968, %v3100
      %v3102 = vpop.f32.mrb[0].mxu0
      %3103 = vmatprep.mubr.bf16.mxu0 0
      %3104 = vmatmul.mubr.bf16.gmra.mrb[0].mxu0 %v3038
      %v3105 = vpop.f32.mrb[0].mxu0
      %v3106 = vadd.f32 %v2973, %v3105
      %v3107 = vpop.f32.mrb[0].mxu0
      %v3108 = vpop.f32.mrb[0].mxu0
      %v3109 = vadd.f32 %v2976, %v3108
      %v3110 = vpop.f32.mrb[0].mxu0
      %3111 = vmatprep.mubr.bf16.mxu0 0
      %3112 = vmatmul.mubr.bf16.gmra.mrb[0].mxu0 %v3041
      %v3113 = vpop.f32.mrb[0].mxu0
      %v3114 = vadd.f32 %v2981, %v3113
      %v3115 = vpop.f32.mrb[0].mxu0
      %v3116 = vpop.f32.mrb[0].mxu0
      %v3117 = vadd.f32 %v2984, %v3116
      %v3118 = vpop.f32.mrb[0].mxu0
      %3119 = vmatprep.mubr.bf16.mxu0 0
      %3120 = vmatmul.mubr.bf16.gmra.mrb[0].mxu0 %v3044
      %v3121 = vpop.f32.mrb[0].mxu0
      %v3122 = vadd.f32 %v2989, %v3121
      %v3123 = vpop.f32.mrb[0].mxu0
      %v3124 = vpop.f32.mrb[0].mxu0
      %v3125 = vadd.f32 %v2992, %v3124
      %v3126 = vpop.f32.mrb[0].mxu0
      %3127 = vmatprep.mubr.bf16.mxu0 0
      %3128 = vmatmul.mubr.bf16.gmra.mrb[0].mxu0 %v3047
      %v3129 = vpop.f32.mrb[0].mxu0
      %v3130 = vadd.f32 %v2997, %v3129
      %v3131 = vpop.f32.mrb[0].mxu0
      %v3132 = vpop.f32.mrb[0].mxu0
      %v3133 = vadd.f32 %v3000, %v3132
      %v3134 = vpop.f32.mrb[0].mxu0
      %3135 = vmatprep.mubr.bf16.mxu0 0
      %3136 = vmatmul.mubr.bf16.gmra.mrb[0].mxu0 %v3050
      %v3137 = vpop.f32.mrb[0].mxu0
      %v3138 = vadd.f32 %v3005, %v3137
      %v3139 = vpop.f32.mrb[0].mxu0
      %v3140 = vpop.f32.mrb[0].mxu0
      %v3141 = vadd.f32 %v3008, %v3140
      %v3142 = vpop.f32.mrb[0].mxu0
      %3143 = vmatprep.mubr.bf16.mxu0 0
      %3144 = vmatmul.mubr.bf16.gmra.mrb[0].mxu0 %v3053
      %v3145 = vpop.f32.mrb[0].mxu0
      %v3146 = vadd.f32 %v3013, %v3145
      %v3147 = vpop.f32.mrb[0].mxu0
      %v3148 = vpop.f32.mrb[0].mxu0
      %v3149 = vadd.f32 %v3016, %v3148
      %v3150 = vpop.f32.mrb[0].mxu0
      %3151 = vdwg.mxu0
      %v3152 = vld [vmem:[%s8] sm:$0x1]
      %v3154 = vlaneseq
      %v3155 = vshrl.u32 %v3154, 7
      %v3156 = vsub.s32 0, %v3155
      %v3157 = vrot.slane %v3152, %v3156
      %v3159 = vadd.f32 %v3090, %v3157
      %v3160 = vadd.f32 %v3093, %v3157
      %v3161 = vadd.f32 %v3098, %v3157
      %v3162 = vadd.f32 %v3101, %v3157
      %v3163 = vadd.f32 %v3106, %v3157
      %v3164 = vadd.f32 %v3109, %v3157
      %v3165 = vadd.f32 %v3114, %v3157
      %v3166 = vadd.f32 %v3117, %v3157
      %v3167 = vadd.f32 %v3122, %v3157
      %v3168 = vadd.f32 %v3125, %v3157
      %v3169 = vadd.f32 %v3130, %v3157
      %v3170 = vadd.f32 %v3133, %v3157
      %v3171 = vadd.f32 %v3138, %v3157
      %v3172 = vadd.f32 %v3141, %v3157
      %v3173 = vadd.f32 %v3146, %v3157
      %v3174 = vadd.f32 %v3149, %v3157
      %3175 = vst.msk [vmem:[%s334] sm:$0xff] %vm377, %v3159
      %3176 = vst.msk [vmem:[%s334 + $0x8] sm:$0xff] %vm377, %v3160
      %3177 = vst.msk [vmem:[%s334 + $0x10] sm:$0xff] %vm377, %v3161
      %3178 = vst.msk [vmem:[%s334 + $0x18] sm:$0xff] %vm377, %v3162
      %3179 = vst.msk [vmem:[%s334 + $0x20] sm:$0xff] %vm377, %v3163
      %3180 = vst.msk [vmem:[%s334 + $0x28] sm:$0xff] %vm377, %v3164
      %3181 = vst.msk [vmem:[%s334 + $0x30] sm:$0xff] %vm377, %v3165
      %3182 = vst.msk [vmem:[%s334 + $0x38] sm:$0xff] %vm377, %v3166
      %3183 = vst.msk [vmem:[%s334 + $0x40] sm:$0xff] %vm377, %v3167
      %3184 = vst.msk [vmem:[%s334 + $0x48] sm:$0xff] %vm377, %v3168
      %3185 = vst.msk [vmem:[%s334 + $0x50] sm:$0xff] %vm377, %v3169
      %3186 = vst.msk [vmem:[%s334 + $0x58] sm:$0xff] %vm377, %v3170
      %3187 = vst.msk [vmem:[%s334 + $0x60] sm:$0xff] %vm377, %v3171
      %3188 = vst.msk [vmem:[%s334 + $0x68] sm:$0xff] %vm377, %v3172
      %3189 = vst.msk [vmem:[%s334 + $0x70] sm:$0xff] %vm377, %v3173
      %3190 = vst.msk [vmem:[%s334 + $0x78] sm:$0xff] %vm377, %v3174
      %s3191 = smul.u32 16, %s20
      %p3192 = scmp.lt.s32.totalorder %s3191, 31
      %s3193 = scalar_select %p3192, %s3191, 31
      %s3194 = smul.addr %s3193, 8
      %s3195 = scalar_lea.vmem %s9, %s3194
      // Predicated region
      $region57: #{tpu_custom_call.1} parent=55 // pred_check
        %p3196 = pneg %p232
      $region58: #{tpu_custom_call.1} parent=55 // pred_check_branch
        %3198 = sbr.rel (%p3196) target = $region60
      $region59: #{tpu_custom_call.1} parent=55 // pred_region
        %s3199 = smul.u32 16, %s20
      $region60: #{tpu_custom_call.1} parent=55 // pred_fallthru
        _
    $region56: #{tpu_custom_call.1} parent=5 // pred_fallthru
      _
    %p3200 = scmp.le.s32.totalorder 2, %s15
    // Predicated region
    $region61: #{tpu_custom_call.1} parent=5 // pred_check
      %p3201 = pneg %p3200
    $region62: #{tpu_custom_call.1} parent=5 // pred_check_branch
      %3203 = sbr.rel (%p3201) target = $region64
    $region63: #{tpu_custom_call.1} parent=5 // pred_region
      %s3204 = ssub.s32 %s15, 2
      // Predicated region
      $region65: #{tpu_custom_call.1} parent=63 // pred_check
        %p3205 = pneg %p238
      $region66: #{tpu_custom_call.1} parent=63 // pred_check_branch
        %3207 = sbr.rel (%p3205) target = $region68
      $region67: #{tpu_custom_call.1} parent=63 // pred_region
        %s3208 = smul.u32 16, %s21
        %p3209 = scmp.lt.s32.totalorder %s3208, 31
        %s3210 = scalar_select %p3209, %s3208, 31
        %s3211 = smul.addr %s3210, 8
        %s3212 = scalar_lea.vmem %s9, %s3211
      $region68: #{tpu_custom_call.1} parent=63 // pred_fallthru
        _
    $region64: #{tpu_custom_call.1} parent=5 // pred_fallthru
      _
  $region6: #{tpu_custom_call.1} parent=0 // loop_footer
    %s19 = sadd.s32 1, %s15
  $region7: #{tpu_custom_call.1} parent=0 // loop_footer_branch
    %14 = sbr.rel target = $region3
  $region8: #{tpu_custom_call.1} parent=0 // loop_exit
    _

</llo_original>
